<compile_context>
chip_gen: v6e
topology: v6e:2x2x1
jax: 0.10.0
libtpu: 0.0.40
codegen_flags: <defaults>
</compile_context>

<pallas_src>
import functools
import math
import random

import jax
import jax.numpy as jnp
from jax.experimental import pallas as pl
from jax.experimental.pallas import tpu as pltpu


_SQRT_2_OVER_PI = math.sqrt(2.0 / math.pi)


# ----------------------------- in-kernel helpers -----------------------------

def _gelu_tanh(x):
    return 0.5 * x * (1.0 + jnp.tanh(_SQRT_2_OVER_PI * (x + 0.044715 * x * x * x)))


def _layer_norm(x, g, b, eps=1e-5):
    mu = jnp.mean(x, axis=-1, keepdims=True)
    var = jnp.mean((x - mu) ** 2, axis=-1, keepdims=True)
    return (x - mu) * jax.lax.rsqrt(var + eps) * g + b


def _bf16(x):
    return x.astype(jnp.bfloat16)


# ------------------------------ fused forward kernel --------------------------

def _fused_kernel(q_ref, tok_ref,
                  qe_w0, qe_b0, qe_w1, qe_b1,
                  wq, wk, wv, bq, bk, bv, wo, bo,
                  g1, be1, w1, b1, w2, b2, g2, be2,
                  ow0, ob0, ow1, ob1, ow2, ob2,
                  o_ref, x_scr, *, num_heads):
    """Grid = (batch_tile, layer).  x_scr [BT*S, D] (bf16) carries the residual
    stream across the layer axis; tok_ref is the flattened [BT*S, D] token slab."""
    layer = pl.program_id(1)
    last_layer = pl.num_programs(1) - 1

    BT = q_ref.shape[0]
    M, D = x_scr.shape
    S = M // BT
    hd = D // num_heads
    scale = 1.0 / math.sqrt(hd)

    # ---- layer 0: build token sequence (query-embedding MLP + time + img) ----
    @pl.when(layer == 0)
    def _build_tokens():
        x_scr[...] = tok_ref[...]                       # rows per batch: [qry, time, img...]
        h = jnp.dot(_bf16(q_ref[...]), qe_w0[...],
                    preferred_element_type=jnp.float32) + qe_b0[...]
        h = _gelu_tanh(h)
        h = jnp.dot(_bf16(h), qe_w1[...],
                    preferred_element_type=jnp.float32) + qe_b1[...]
        h = _gelu_tanh(h)                               # [BT, D]
        h_bf = _bf16(h)
        for b in range(BT):                             # query token = row 0 of each batch
            x_scr[b * S:b * S + 1, :] = h_bf[b:b + 1, :]

    # --------------------- transformer encoder layer `layer` ------------------
    x_bf = x_scr[...]                                   # [M, D] bf16 matmul operand
    x_f32 = x_bf.astype(jnp.float32)                    # residual / LN math in f32

    # Multi-head self-attention with head-major weights; per-head contexts are
    # accumulated through the out-projection (== concat(ctx) @ Wo), so there is
    # no lane-dimension slicing or concatenation anywhere.
    attn = jnp.zeros((M, D), jnp.float32)
    for h_ in range(num_heads):
        qh = (jnp.dot(x_bf, wq[h_], preferred_element_type=jnp.float32)
              + bq[h_]) * scale                         # 1/sqrt(hd) folded into Q
        kh = jnp.dot(x_bf, wk[h_], preferred_element_type=jnp.float32) + bk[h_]
        vh = jnp.dot(x_bf, wv[h_], preferred_element_type=jnp.float32) + bv[h_]
        q3 = _bf16(qh).reshape(BT, S, hd)
        k3 = _bf16(kh).reshape(BT, S, hd)
        v3 = _bf16(vh).reshape(BT, S, hd)
        s = jnp.einsum('bqd,bkd->bqk', q3, k3,
                       preferred_element_type=jnp.float32)       # [BT, S, S]
        s = s - jnp.max(s, axis=-1, keepdims=True)
        p = jnp.exp(s)
        p = p / jnp.sum(p, axis=-1, keepdims=True)                # exact softmax
        ctx = jnp.einsum('bqk,bkd->bqd', _bf16(p), v3,
                         preferred_element_type=jnp.float32)      # [BT, S, hd]
        attn = attn + jnp.dot(_bf16(ctx.reshape(M, hd)), wo[h_],
                              preferred_element_type=jnp.float32)  # [M, D]
    attn = attn + bo[...]

    # post-norm encoder layer (PyTorch default norm_first=False), dropout = 0
    y = _layer_norm(x_f32 + attn, g1[...], be1[...])
    h1 = jnp.dot(_bf16(y), w1[...], preferred_element_type=jnp.float32) + b1[...]
    h1 = _gelu_tanh(h1)
    f = jnp.dot(_bf16(h1), w2[...], preferred_element_type=jnp.float32) + b2[...]
    x_new = _layer_norm(y + f, g2[...], be2[...])                 # [M, D] f32
    x_scr[...] = _bf16(x_new)

    # ------------------------- last layer: output MLP -------------------------
    @pl.when(layer == last_layer)
    def _finalize():
        # token 0 of every batch element in the tile -> motion feature [BT, D]
        m = jnp.concatenate([x_new[b * S:b * S + 1, :] for b in range(BT)], axis=0)
        o = _gelu_tanh(jnp.dot(_bf16(m), ow0[...],
                               preferred_element_type=jnp.float32) + ob0[...])
        o = _gelu_tanh(jnp.dot(_bf16(o), ow1[...],
                               preferred_element_type=jnp.float32) + ob1[...])
        o = jnp.dot(_bf16(o), ow2[...],
                    preferred_element_type=jnp.float32) + ob2[...]
        o_ref[...] = o                                            # [BT, P] lane-dense


# --------------------------------- dispatcher ---------------------------------

def _pick_batch_tile(batch, seq, max_rows=512):
    """Largest divisor of `batch` keeping BT*S <= max_rows (MXU M-dim fill vs VMEM).
    NOTE: on v7x megacore, B // BT >= 2 is required to keep both TensorCores busy."""
    bt = 1
    for d in range(1, batch + 1):
        if batch % d == 0 and d * seq <= max_rows:
            bt = d
    return bt


def _vmem_capacity_bytes(default=64 * 1024 * 1024):
    try:
        cap = getattr(pltpu.get_tpu_info(), "vmem_capacity_bytes", None)
        if cap:
            return int(cap)
    except Exception:
        pass
    return default


def _fused_forward(params, query_latent, tok, num_heads):
    B, S, D = tok.shape
    ae = query_latent.shape[1]
    P = params["out_w2"].shape[1]                     # lane-padded output width
    ls = params["layers"]
    L = int(ls["wq"].shape[0])
    FF = int(ls["w1"].shape[2])

    BT = _pick_batch_tile(B, S)
    n_bt = B // BT
    M = BT * S

    tok_flat = tok.reshape(B * S, D).astype(jnp.bfloat16)

    fixed_names = ("qe_w0", "qe_b0", "qe_w1", "qe_b1",
                   "out_w0", "out_b0", "out_w1", "out_b1", "out_w2", "out_b2")
    layer_names = ("wq", "wk", "wv", "bq", "bk", "bv", "wo", "bo",
                   "g1", "be1", "w1", "b1", "w2", "b2", "g2", "be2")

    inputs = ((query_latent, tok_flat)
              + tuple(params[k] for k in fixed_names[:4])
              + tuple(ls[k] for k in layer_names)
              + tuple(params[k] for k in fixed_names[4:]))

    def _fixed(arr):
        zeros = (0,) * arr.ndim
        return pl.BlockSpec(tuple(arr.shape), lambda b, l, _z=zeros: _z)

    def _per_layer(arr):
        tail = (0,) * (arr.ndim - 1)
        return pl.BlockSpec((None,) + tuple(arr.shape[1:]),
                            lambda b, l, _t=tail: (l,) + _t)

    in_specs = ([pl.BlockSpec((BT, ae), lambda b, l: (b, 0)),
                 pl.BlockSpec((M, D), lambda b, l: (b, 0))]
                + [_fixed(params[k]) for k in fixed_names[:4]]
                + [_per_layer(ls[k]) for k in layer_names]
                + [_fixed(params[k]) for k in fixed_names[4:]])
    out_spec = pl.BlockSpec((BT, P), lambda b, l: (b, 0))

    # VMEM budget: fixed + double-buffered per-layer weights + IO blocks +
    # resident bf16 scratch + rough live temporaries; clamp vs physical VMEM.
    nbytes = lambda a: int(a.size) * a.dtype.itemsize
    per_layer_w_bytes = sum(nbytes(ls[k]) // L for k in layer_names)
    fixed_w_bytes = sum(nbytes(params[k]) for k in fixed_names)
    io_bytes = 2 * (BT * ae * 4 + M * D * 2 + BT * P * 4)
    scratch_bytes = M * D * 2
    work_bytes = M * FF * 4 + 10 * M * D * 4 + 2 * BT * S * S * 4
    est = 2 * (fixed_w_bytes + per_layer_w_bytes) + io_bytes + scratch_bytes + work_bytes
    vmem_limit = int(min(int(0.75 * _vmem_capacity_bytes()),
                         max(2 * est, 32 * 1024 * 1024)))

    # advisory cost estimate (per-layer weights are read once per batch tile)
    flops = int(B * L * (8 * S * D * D + 4 * S * S * D + 4 * S * D * FF)
                + B * (2 * ae * ae + 2 * ae * D)
                + B * (2 * D * (D // 2) + 2 * (D // 2) ** 2 + 2 * (D // 2) * P))
    transcendentals = int(B * L * (S * S + S * FF) + B * (ae + 2 * D))
    bytes_accessed = int(fixed_w_bytes + n_bt * L * per_layer_w_bytes
                         + B * S * D * 2 + B * ae * 4 + B * P * 4)

    out = pl.pallas_call(
        functools.partial(_fused_kernel, num_heads=num_heads),
        out_shape=jax.ShapeDtypeStruct((B, P), jnp.float32),
        grid=(n_bt, L),
        in_specs=in_specs,
        out_specs=out_spec,
        scratch_shapes=[pltpu.VMEM((M, D), jnp.bfloat16)],
        compiler_params=pltpu.CompilerParams(
            dimension_semantics=("parallel", "arbitrary"),
            vmem_limit_bytes=vmem_limit),
        cost_estimate=pl.CostEstimate(flops=flops,
                                      transcendentals=transcendentals,
                                      bytes_accessed=bytes_accessed),
    )(*inputs)
    return out                                         # [B, P]


# --------------------------------- glue (JAX) ---------------------------------

def sinusoidal_table(positions, d_model):
    """pe[p, 2i] = sin(p * exp(-ln(1e4)*2i/d)), pe[p, 2i+1] = cos(...)."""
    pos = positions.astype(jnp.float32)[:, None]
    div = jnp.exp(jnp.arange(0, d_model, 2, dtype=jnp.float32)
                  * (-math.log(10000.0) / d_model))
    ang = pos * div[None, :]
    pe = jnp.zeros((positions.shape[0], d_model), jnp.float32)
    pe = pe.at[:, 0::2].set(jnp.sin(ang))
    pe = pe.at[:, 1::2].set(jnp.cos(ang))
    return pe


def init_params(key, ae_dim, d_model, ff, num_layers, num_heads):
    assert d_model % num_heads == 0
    hd = d_model // num_heads
    half = d_model // 2
    out_pad = ((ae_dim + 127) // 128) * 128            # lane-dense output width

    keys = iter(jax.random.split(key, 5 + 6 * num_layers))

    def w(shape):   # bf16 weights (MXU-native); accumulation is f32 in-kernel
        return (0.02 * jax.random.normal(next(keys), shape, jnp.float32)).astype(jnp.bfloat16)

    zeros = lambda s: jnp.zeros(s, jnp.float32)
    ones = lambda s: jnp.ones(s, jnp.float32)

    p = {
        "d_model": d_model,
        "ae_dim": ae_dim,
        # query_emb_model: LinearBlock(ae, ae, gelu) -> LinearBlock(ae, d, gelu)
        "qe_w0": w((ae_dim, ae_dim)), "qe_b0": zeros((1, ae_dim)),
        "qe_w1": w((ae_dim, d_model)), "qe_b1": zeros((1, d_model)),
        # output_module: d -> d/2 (gelu) -> d/2 (gelu) -> ae (none)
        "out_w0": w((d_model, half)), "out_b0": zeros((1, half)),
        "out_w1": w((half, half)), "out_b1": zeros((1, half)),
    }
    # last output weight zero-padded to `out_pad` lanes (wrapper slices back)
    out_w2 = jnp.zeros((half, out_pad), jnp.bfloat16)
    p["out_w2"] = out_w2.at[:, :ae_dim].set(w((half, ae_dim)))
    p["out_b2"] = zeros((1, out_pad))

    layers = []
    for _ in range(num_layers):
        layers.append({
            # head-major attention weights: no lane slicing / concatenation in-kernel
            "wq": w((num_heads, d_model, hd)),
            "wk": w((num_heads, d_model, hd)),
            "wv": w((num_heads, d_model, hd)),
            "bq": zeros((num_heads, 1, hd)),
            "bk": zeros((num_heads, 1, hd)),
            "bv": zeros((num_heads, 1, hd)),
            "wo": w((num_heads, hd, d_model)), "bo": zeros((1, d_model)),
            "g1": ones((1, d_model)), "be1": zeros((1, d_model)),
            "w1": w((d_model, ff)), "b1": zeros((1, ff)),
            "w2": w((ff, d_model)), "b2": zeros((1, d_model)),
            "g2": ones((1, d_model)), "be2": zeros((1, d_model)),
        })
    # stack per-layer params into [L, ...] so a single kernel grids over layers
    p["layers"] = {k: jnp.stack([lp[k] for lp in layers], axis=0) for k in layers[0]}
    return p


def latent_transformer_predictor(params, img_feature_sbd, query_latent, time_step,
                                 num_heads=4, img_guidance_rate=1.0):
    """img_feature_sbd: [S_img, B, D] (PyTorch convention), query_latent: [B, ae],
    time_step: [B] int.  Returns {'latent': [B, ae]}."""
    d_model = params["d_model"]
    ae = query_latent.shape[1]
    B = query_latent.shape[0]

    # step (timestep) encoding -> [B, D]
    time_emb = sinusoidal_table(time_step, d_model)

    # classifier-free style guidance gate (host-side python random, same as the
    # PyTorch reference; NOTE: decided at trace time if jitted).
    use_img = random.random() <= img_guidance_rate
    qry_placeholder = jnp.zeros((B, 1, d_model), jnp.float32)   # filled in-kernel
    if use_img:
        img = jnp.transpose(img_feature_sbd, (1, 0, 2))          # [B, S_img, D]
        pe = sinusoidal_table(jnp.arange(img.shape[1]), d_model)
        img = img + pe[None, :, :]
        tok = jnp.concatenate([qry_placeholder, time_emb[:, None, :], img], axis=1)
    else:
        tok = jnp.concatenate([qry_placeholder, time_emb[:, None, :]], axis=1)

    out_pad = _fused_forward(params, query_latent, tok, num_heads)   # [B, P]
    # residual on the query latent (matches `query['latent'] + output_module(...)`)
    return {"latent": query_latent + out_pad[:, :ae]}


# ------------------------------------ main ------------------------------------

if __name__ == "__main__":
    random.seed(0)
    B, AE_DIM, D_MODEL, FF, HEADS, LAYERS, S_IMG = 2, 16, 32, 64, 4, 2, 6

    key = jax.random.PRNGKey(0)
    k_img, k_q, k_t, k_p = jax.random.split(key, 4)

    img_feature = jax.random.normal(k_img, (S_IMG, B, D_MODEL), jnp.float32)
    query_latent = jax.random.normal(k_q, (B, AE_DIM), jnp.float32)
    time_step = jax.random.randint(k_t, (B,), 0, 1000)

    params = init_params(k_p, AE_DIM, D_MODEL, FF, LAYERS, HEADS)

    out = latent_transformer_predictor(params, img_feature, query_latent, time_step,
                                       num_heads=HEADS, img_guidance_rate=1.0)
    jax.block_until_ready(out["latent"])
    assert out["latent"].shape == (B, AE_DIM)
    print("KERNEL_OK")
</pallas_src>

<mosaic_0001>
module attributes {stable_mosaic.version = 11 : i64} {
  func.func @_fused_kernel(%arg0: i32, %arg1: i32, %arg2: memref<2x16xf32, #tpu.memory_space<vmem>>, %arg3: memref<16x32xbf16, #tpu.memory_space<vmem>>, %arg4: memref<16x16xbf16, #tpu.memory_space<vmem>>, %arg5: memref<1x16xf32, #tpu.memory_space<vmem>>, %arg6: memref<16x32xbf16, #tpu.memory_space<vmem>>, %arg7: memref<1x32xf32, #tpu.memory_space<vmem>>, %arg8: memref<1x4x32x8xbf16, #tpu.memory_space<vmem>>, %arg9: memref<1x4x32x8xbf16, #tpu.memory_space<vmem>>, %arg10: memref<1x4x32x8xbf16, #tpu.memory_space<vmem>>, %arg11: memref<1x4x1x8xf32, #tpu.memory_space<vmem>>, %arg12: memref<1x4x1x8xf32, #tpu.memory_space<vmem>>, %arg13: memref<1x4x1x8xf32, #tpu.memory_space<vmem>>, %arg14: memref<1x4x8x32xbf16, #tpu.memory_space<vmem>>, %arg15: memref<1x1x32xf32, #tpu.memory_space<vmem>>, %arg16: memref<1x1x32xf32, #tpu.memory_space<vmem>>, %arg17: memref<1x1x32xf32, #tpu.memory_space<vmem>>, %arg18: memref<1x32x64xbf16, #tpu.memory_space<vmem>>, %arg19: memref<1x1x64xf32, #tpu.memory_space<vmem>>, %arg20: memref<1x64x32xbf16, #tpu.memory_space<vmem>>, %arg21: memref<1x1x32xf32, #tpu.memory_space<vmem>>, %arg22: memref<1x1x32xf32, #tpu.memory_space<vmem>>, %arg23: memref<1x1x32xf32, #tpu.memory_space<vmem>>, %arg24: memref<32x16xbf16, #tpu.memory_space<vmem>>, %arg25: memref<1x16xf32, #tpu.memory_space<vmem>>, %arg26: memref<16x16xbf16, #tpu.memory_space<vmem>>, %arg27: memref<1x16xf32, #tpu.memory_space<vmem>>, %arg28: memref<16x128xbf16, #tpu.memory_space<vmem>>, %arg29: memref<1x128xf32, #tpu.memory_space<vmem>>, %arg30: memref<2x128xf32, #tpu.memory_space<vmem>>, %arg31: memref<16x32xbf16, #tpu.memory_space<vmem>>) attributes {dimension_semantics = [#tpu.dimension_semantics<parallel>, #tpu.dimension_semantics<arbitrary>], iteration_bounds = array<i64: 1, 2>, scalar_prefetch = 0 : i64, scratch_operands = 1 : i64, tpu.core_type = #tpu.core_type<tc>, window_params = [{transform_indices = @transform_0, window_bounds = array<i64: 2, 16>}, {transform_indices = @transform_1, window_bounds = array<i64: 16, 32>}, {pipeline_mode = #tpu.pipeline_mode<synchronous>, transform_indices = @transform_2, window_bounds = array<i64: 16, 16>}, {pipeline_mode = #tpu.pipeline_mode<synchronous>, transform_indices = @transform_3, window_bounds = array<i64: 1, 16>}, {pipeline_mode = #tpu.pipeline_mode<synchronous>, transform_indices = @transform_4, window_bounds = array<i64: 16, 32>}, {pipeline_mode = #tpu.pipeline_mode<synchronous>, transform_indices = @transform_5, window_bounds = array<i64: 1, 32>}, {transform_indices = @transform_6, window_bounds = array<i64: 1, 4, 32, 8>}, {transform_indices = @transform_7, window_bounds = array<i64: 1, 4, 32, 8>}, {transform_indices = @transform_8, window_bounds = array<i64: 1, 4, 32, 8>}, {transform_indices = @transform_9, window_bounds = array<i64: 1, 4, 1, 8>}, {transform_indices = @transform_10, window_bounds = array<i64: 1, 4, 1, 8>}, {transform_indices = @transform_11, window_bounds = array<i64: 1, 4, 1, 8>}, {transform_indices = @transform_12, window_bounds = array<i64: 1, 4, 8, 32>}, {transform_indices = @transform_13, window_bounds = array<i64: 1, 1, 32>}, {transform_indices = @transform_14, window_bounds = array<i64: 1, 1, 32>}, {transform_indices = @transform_15, window_bounds = array<i64: 1, 1, 32>}, {transform_indices = @transform_16, window_bounds = array<i64: 1, 32, 64>}, {transform_indices = @transform_17, window_bounds = array<i64: 1, 1, 64>}, {transform_indices = @transform_18, window_bounds = array<i64: 1, 64, 32>}, {transform_indices = @transform_19, window_bounds = array<i64: 1, 1, 32>}, {transform_indices = @transform_20, window_bounds = array<i64: 1, 1, 32>}, {transform_indices = @transform_21, window_bounds = array<i64: 1, 1, 32>}, {pipeline_mode = #tpu.pipeline_mode<synchronous>, transform_indices = @transform_22, window_bounds = array<i64: 32, 16>}, {pipeline_mode = #tpu.pipeline_mode<synchronous>, transform_indices = @transform_23, window_bounds = array<i64: 1, 16>}, {pipeline_mode = #tpu.pipeline_mode<synchronous>, transform_indices = @transform_24, window_bounds = array<i64: 16, 16>}, {pipeline_mode = #tpu.pipeline_mode<synchronous>, transform_indices = @transform_25, window_bounds = array<i64: 1, 16>}, {pipeline_mode = #tpu.pipeline_mode<synchronous>, transform_indices = @transform_26, window_bounds = array<i64: 16, 128>}, {pipeline_mode = #tpu.pipeline_mode<synchronous>, transform_indices = @transform_27, window_bounds = array<i64: 1, 128>}, {transform_indices = @transform_28, window_bounds = array<i64: 2, 128>}]} {
    %c0_i32 = arith.constant 0 : i32
    %0 = arith.cmpi eq, %arg1, %c0_i32 : i32
    %1 = arith.extui %0 : i1 to i32
    %c0_i32_0 = arith.constant 0 : i32
    %2 = arith.cmpi ne, %1, %c0_i32_0 : i32
    scf.if %2 {
      %c0_193 = arith.constant 0 : index
      %c0_194 = arith.constant 0 : index
      %286 = vector.load %arg3[%c0_193, %c0_194] : memref<16x32xbf16, #tpu.memory_space<vmem>>, vector<16x32xbf16>
      %c0_195 = arith.constant 0 : index
      %c0_196 = arith.constant 0 : index
      %287 = vector.load %arg31[%c0_195, %c0_196] : memref<16x32xbf16, #tpu.memory_space<vmem>>, vector<16x32xbf16>
      tpu.vector_store %arg31[%c0_195, %c0_196], %286 {strides = array<i32>} : memref<16x32xbf16, #tpu.memory_space<vmem>>, vector<16x32xbf16>,
      %c0_197 = arith.constant 0 : index
      %c0_198 = arith.constant 0 : index
      %288 = vector.load %arg2[%c0_197, %c0_198] : memref<2x16xf32, #tpu.memory_space<vmem>>, vector<2x16xf32>
      %289 = arith.truncf %288 : vector<2x16xf32> to vector<2x16xbf16>
      %c0_199 = arith.constant 0 : index
      %c0_200 = arith.constant 0 : index
      %290 = vector.load %arg4[%c0_199, %c0_200] : memref<16x16xbf16, #tpu.memory_space<vmem>>, vector<16x16xbf16>
      %cst_201 = arith.constant dense<0.000000e+00> : vector<2x16xf32>
      %291 = tpu.matmul %289, %290, %cst_201 {dimension_numbers = #tpu.dot_dimension_numbers<[1], [0], [0], [1], [0, 0, 1, 1], [], []>} : vector<2x16xbf16>, vector<16x16xbf16>, vector<2x16xf32> -> vector<2x16xf32>
      %c0_202 = arith.constant 0 : index
      %c0_203 = arith.constant 0 : index
      %292 = vector.load %arg5[%c0_202, %c0_203] : memref<1x16xf32, #tpu.memory_space<vmem>>, vector<1x16xf32>
      %293 = vector.broadcast %292 : vector<1x16xf32> to vector<2x16xf32>
      %294 = arith.addf %291, %293 : vector<2x16xf32>
      %cst_204 = arith.constant 5.000000e-01 : f32
      %295 = vector.broadcast %cst_204 : f32 to vector<2x16xf32>
      %296 = arith.mulf %295, %294 : vector<2x16xf32>
      %cst_205 = arith.constant 4.471500e-02 : f32
      %297 = vector.broadcast %cst_205 : f32 to vector<2x16xf32>
      %298 = arith.mulf %297, %294 : vector<2x16xf32>
      %299 = arith.mulf %298, %294 : vector<2x16xf32>
      %300 = arith.mulf %299, %294 : vector<2x16xf32>
      %301 = arith.addf %294, %300 : vector<2x16xf32>
      %cst_206 = arith.constant 0.797884583 : f32
      %302 = vector.broadcast %cst_206 : f32 to vector<2x16xf32>
      %303 = arith.mulf %302, %301 : vector<2x16xf32>
      %304 = math.tanh %303 : vector<2x16xf32>
      %cst_207 = arith.constant 1.000000e+00 : f32
      %305 = vector.broadcast %cst_207 : f32 to vector<2x16xf32>
      %306 = arith.addf %305, %304 : vector<2x16xf32>
      %307 = arith.mulf %296, %306 : vector<2x16xf32>
      %308 = arith.truncf %307 : vector<2x16xf32> to vector<2x16xbf16>
      %c0_208 = arith.constant 0 : index
      %c0_209 = arith.constant 0 : index
      %309 = vector.load %arg6[%c0_208, %c0_209] : memref<16x32xbf16, #tpu.memory_space<vmem>>, vector<16x32xbf16>
      %cst_210 = arith.constant dense<0.000000e+00> : vector<2x32xf32>
      %310 = tpu.matmul %308, %309, %cst_210 {dimension_numbers = #tpu.dot_dimension_numbers<[1], [0], [0], [1], [0, 0, 1, 1], [], []>} : vector<2x16xbf16>, vector<16x32xbf16>, vector<2x32xf32> -> vector<2x32xf32>
      %c0_211 = arith.constant 0 : index
      %c0_212 = arith.constant 0 : index
      %311 = vector.load %arg7[%c0_211, %c0_212] : memref<1x32xf32, #tpu.memory_space<vmem>>, vector<1x32xf32>
      %312 = vector.broadcast %311 : vector<1x32xf32> to vector<2x32xf32>
      %313 = arith.addf %310, %312 : vector<2x32xf32>
      %cst_213 = arith.constant 5.000000e-01 : f32
      %314 = vector.broadcast %cst_213 : f32 to vector<2x32xf32>
      %315 = arith.mulf %314, %313 : vector<2x32xf32>
      %cst_214 = arith.constant 4.471500e-02 : f32
      %316 = vector.broadcast %cst_214 : f32 to vector<2x32xf32>
      %317 = arith.mulf %316, %313 : vector<2x32xf32>
      %318 = arith.mulf %317, %313 : vector<2x32xf32>
      %319 = arith.mulf %318, %313 : vector<2x32xf32>
      %320 = arith.addf %313, %319 : vector<2x32xf32>
      %cst_215 = arith.constant 0.797884583 : f32
      %321 = vector.broadcast %cst_215 : f32 to vector<2x32xf32>
      %322 = arith.mulf %321, %320 : vector<2x32xf32>
      %323 = math.tanh %322 : vector<2x32xf32>
      %cst_216 = arith.constant 1.000000e+00 : f32
      %324 = vector.broadcast %cst_216 : f32 to vector<2x32xf32>
      %325 = arith.addf %324, %323 : vector<2x32xf32>
      %326 = arith.mulf %315, %325 : vector<2x32xf32>
      %327 = arith.truncf %326 : vector<2x32xf32> to vector<2x32xbf16>
      %328 = vector.extract_strided_slice %327 {offsets = [0, 0], sizes = [1, 32], strides = [1, 1]} : vector<2x32xbf16> to vector<1x32xbf16>
      %c0_217 = arith.constant 0 : index
      %c0_218 = arith.constant 0 : index
      %329 = vector.load %arg31[%c0_217, %c0_218] : memref<16x32xbf16, #tpu.memory_space<vmem>>, vector<1x32xbf16>
      tpu.vector_store %arg31[%c0_217, %c0_218], %328 {strides = array<i32>} : memref<16x32xbf16, #tpu.memory_space<vmem>>, vector<1x32xbf16>,
      %330 = vector.extract_strided_slice %327 {offsets = [1, 0], sizes = [1, 32], strides = [1, 1]} : vector<2x32xbf16> to vector<1x32xbf16>
      %c8 = arith.constant 8 : index
      %c0_219 = arith.constant 0 : index
      %331 = vector.load %arg31[%c8, %c0_219] : memref<16x32xbf16, #tpu.memory_space<vmem>>, vector<1x32xbf16>
      tpu.vector_store %arg31[%c8, %c0_219], %330 {strides = array<i32>} : memref<16x32xbf16, #tpu.memory_space<vmem>>, vector<1x32xbf16>,
    } else {
    }
    %c0 = arith.constant 0 : index
    %c0_1 = arith.constant 0 : index
    %3 = vector.load %arg31[%c0, %c0_1] : memref<16x32xbf16, #tpu.memory_space<vmem>>, vector<16x32xbf16>
    %4 = arith.extf %3 : vector<16x32xbf16> to vector<16x32xf32>
    %cst = arith.constant 0.000000e+00 : f32
    %5 = vector.broadcast %cst : f32 to vector<16x32xf32>
    %c0_2 = arith.constant 0 : index
    %c0_3 = arith.constant 0 : index
    %c0_4 = arith.constant 0 : index
    %c0_5 = arith.constant 0 : index
    %6 = vector.load %arg8[%c0_2, %c0_3, %c0_4, %c0_5] : memref<1x4x32x8xbf16, #tpu.memory_space<vmem>>, vector<1x1x32x8xbf16>
    %7 = vector.shape_cast %6 : vector<1x1x32x8xbf16> to vector<32x8xbf16>
    %cst_6 = arith.constant dense<0.000000e+00> : vector<16x8xf32>
    %8 = tpu.matmul %3, %7, %cst_6 {dimension_numbers = #tpu.dot_dimension_numbers<[1], [0], [0], [1], [0, 0, 1, 1], [], []>} : vector<16x32xbf16>, vector<32x8xbf16>, vector<16x8xf32> -> vector<16x8xf32>
    %c0_7 = arith.constant 0 : index
    %c0_8 = arith.constant 0 : index
    %c0_9 = arith.constant 0 : index
    %c0_10 = arith.constant 0 : index
    %9 = vector.load %arg11[%c0_7, %c0_8, %c0_9, %c0_10] : memref<1x4x1x8xf32, #tpu.memory_space<vmem>>, vector<1x1x1x8xf32>
    %10 = vector.shape_cast %9 : vector<1x1x1x8xf32> to vector<1x8xf32>
    %11 = vector.broadcast %10 : vector<1x8xf32> to vector<16x8xf32>
    %12 = arith.addf %8, %11 : vector<16x8xf32>
    %cst_11 = arith.constant 0.353553385 : f32
    %13 = vector.broadcast %cst_11 : f32 to vector<16x8xf32>
    %14 = arith.mulf %12, %13 : vector<16x8xf32>
    %c0_12 = arith.constant 0 : index
    %c0_13 = arith.constant 0 : index
    %c0_14 = arith.constant 0 : index
    %c0_15 = arith.constant 0 : index
    %15 = vector.load %arg9[%c0_12, %c0_13, %c0_14, %c0_15] : memref<1x4x32x8xbf16, #tpu.memory_space<vmem>>, vector<1x1x32x8xbf16>
    %16 = vector.shape_cast %15 : vector<1x1x32x8xbf16> to vector<32x8xbf16>
    %cst_16 = arith.constant dense<0.000000e+00> : vector<16x8xf32>
    %17 = tpu.matmul %3, %16, %cst_16 {dimension_numbers = #tpu.dot_dimension_numbers<[1], [0], [0], [1], [0, 0, 1, 1], [], []>} : vector<16x32xbf16>, vector<32x8xbf16>, vector<16x8xf32> -> vector<16x8xf32>
    %c0_17 = arith.constant 0 : index
    %c0_18 = arith.constant 0 : index
    %c0_19 = arith.constant 0 : index
    %c0_20 = arith.constant 0 : index
    %18 = vector.load %arg12[%c0_17, %c0_18, %c0_19, %c0_20] : memref<1x4x1x8xf32, #tpu.memory_space<vmem>>, vector<1x1x1x8xf32>
    %19 = vector.shape_cast %18 : vector<1x1x1x8xf32> to vector<1x8xf32>
    %20 = vector.broadcast %19 : vector<1x8xf32> to vector<16x8xf32>
    %21 = arith.addf %17, %20 : vector<16x8xf32>
    %c0_21 = arith.constant 0 : index
    %c0_22 = arith.constant 0 : index
    %c0_23 = arith.constant 0 : index
    %c0_24 = arith.constant 0 : index
    %22 = vector.load %arg10[%c0_21, %c0_22, %c0_23, %c0_24] : memref<1x4x32x8xbf16, #tpu.memory_space<vmem>>, vector<1x1x32x8xbf16>
    %23 = vector.shape_cast %22 : vector<1x1x32x8xbf16> to vector<32x8xbf16>
    %cst_25 = arith.constant dense<0.000000e+00> : vector<16x8xf32>
    %24 = tpu.matmul %3, %23, %cst_25 {dimension_numbers = #tpu.dot_dimension_numbers<[1], [0], [0], [1], [0, 0, 1, 1], [], []>} : vector<16x32xbf16>, vector<32x8xbf16>, vector<16x8xf32> -> vector<16x8xf32>
    %c0_26 = arith.constant 0 : index
    %c0_27 = arith.constant 0 : index
    %c0_28 = arith.constant 0 : index
    %c0_29 = arith.constant 0 : index
    %25 = vector.load %arg13[%c0_26, %c0_27, %c0_28, %c0_29] : memref<1x4x1x8xf32, #tpu.memory_space<vmem>>, vector<1x1x1x8xf32>
    %26 = vector.shape_cast %25 : vector<1x1x1x8xf32> to vector<1x8xf32>
    %27 = vector.broadcast %26 : vector<1x8xf32> to vector<16x8xf32>
    %28 = arith.addf %24, %27 : vector<16x8xf32>
    %29 = arith.truncf %14 : vector<16x8xf32> to vector<16x8xbf16>
    %30 = vector.shape_cast %29 : vector<16x8xbf16> to vector<2x8x8xbf16>
    %31 = arith.truncf %21 : vector<16x8xf32> to vector<16x8xbf16>
    %32 = vector.shape_cast %31 : vector<16x8xbf16> to vector<2x8x8xbf16>
    %33 = arith.truncf %28 : vector<16x8xf32> to vector<16x8xbf16>
    %34 = vector.shape_cast %33 : vector<16x8xbf16> to vector<2x8x8xbf16>
    "tpu.trace_start"() <{level = 10 : i32, message = "bqd,bkd->bqk"}> : () -> ()
    %cst_30 = arith.constant dense<0.000000e+00> : vector<2x8x8xf32>
    %35 = tpu.matmul %30, %32, %cst_30 {dimension_numbers = #tpu.dot_dimension_numbers<[2], [2], [1], [1], [0, 0, 0, 1, 1, 1], [0], [0]>} : vector<2x8x8xbf16>, vector<2x8x8xbf16>, vector<2x8x8xf32> -> vector<2x8x8xf32>
    "tpu.trace_stop"() : () -> ()
    %cst_31 = arith.constant dense<0xFF800000> : vector<2x8xf32>
    %36 = vector.multi_reduction <maximumf>, %35, %cst_31 [2] : vector<2x8x8xf32> to vector<2x8xf32>
    %37 = vector.shape_cast %36 : vector<2x8xf32> to vector<2x8x1xf32>
    %38 = vector.broadcast %37 : vector<2x8x1xf32> to vector<2x8x8xf32>
    %39 = arith.subf %35, %38 : vector<2x8x8xf32>
    %40 = math.exp %39 : vector<2x8x8xf32>
    %cst_32 = arith.constant dense<0.000000e+00> : vector<2x8xf32>
    %41 = vector.multi_reduction <add>, %40, %cst_32 [2] : vector<2x8x8xf32> to vector<2x8xf32>
    %42 = vector.shape_cast %41 : vector<2x8xf32> to vector<2x8x1xf32>
    %43 = vector.broadcast %42 : vector<2x8x1xf32> to vector<2x8x8xf32>
    %44 = arith.divf %40, %43 : vector<2x8x8xf32>
    %45 = arith.truncf %44 : vector<2x8x8xf32> to vector<2x8x8xbf16>
    "tpu.trace_start"() <{level = 10 : i32, message = "bqk,bkd->bqd"}> : () -> ()
    %cst_33 = arith.constant dense<0.000000e+00> : vector<2x8x8xf32>
    %46 = tpu.matmul %45, %34, %cst_33 {dimension_numbers = #tpu.dot_dimension_numbers<[2], [1], [1], [2], [0, 0, 0, 1, 1, 2], [0], [0]>} : vector<2x8x8xbf16>, vector<2x8x8xbf16>, vector<2x8x8xf32> -> vector<2x8x8xf32>
    "tpu.trace_stop"() : () -> ()
    %47 = vector.shape_cast %46 : vector<2x8x8xf32> to vector<16x8xf32>
    %48 = arith.truncf %47 : vector<16x8xf32> to vector<16x8xbf16>
    %c0_34 = arith.constant 0 : index
    %c0_35 = arith.constant 0 : index
    %c0_36 = arith.constant 0 : index
    %c0_37 = arith.constant 0 : index
    %49 = vector.load %arg14[%c0_34, %c0_35, %c0_36, %c0_37] : memref<1x4x8x32xbf16, #tpu.memory_space<vmem>>, vector<1x1x8x32xbf16>
    %50 = vector.shape_cast %49 : vector<1x1x8x32xbf16> to vector<8x32xbf16>
    %cst_38 = arith.constant dense<0.000000e+00> : vector<16x32xf32>
    %51 = tpu.matmul %48, %50, %cst_38 {dimension_numbers = #tpu.dot_dimension_numbers<[1], [0], [0], [1], [0, 0, 1, 1], [], []>} : vector<16x8xbf16>, vector<8x32xbf16>, vector<16x32xf32> -> vector<16x32xf32>
    %52 = arith.addf %5, %51 : vector<16x32xf32>
    %c0_39 = arith.constant 0 : index
    %c1 = arith.constant 1 : index
    %c0_40 = arith.constant 0 : index
    %c0_41 = arith.constant 0 : index
    %53 = vector.load %arg8[%c0_39, %c1, %c0_40, %c0_41] : memref<1x4x32x8xbf16, #tpu.memory_space<vmem>>, vector<1x1x32x8xbf16>
    %54 = vector.shape_cast %53 : vector<1x1x32x8xbf16> to vector<32x8xbf16>
    %cst_42 = arith.constant dense<0.000000e+00> : vector<16x8xf32>
    %55 = tpu.matmul %3, %54, %cst_42 {dimension_numbers = #tpu.dot_dimension_numbers<[1], [0], [0], [1], [0, 0, 1, 1], [], []>} : vector<16x32xbf16>, vector<32x8xbf16>, vector<16x8xf32> -> vector<16x8xf32>
    %c0_43 = arith.constant 0 : index
    %c1_44 = arith.constant 1 : index
    %c0_45 = arith.constant 0 : index
    %c0_46 = arith.constant 0 : index
    %56 = vector.load %arg11[%c0_43, %c1_44, %c0_45, %c0_46] : memref<1x4x1x8xf32, #tpu.memory_space<vmem>>, vector<1x1x1x8xf32>
    %57 = vector.shape_cast %56 : vector<1x1x1x8xf32> to vector<1x8xf32>
    %58 = vector.broadcast %57 : vector<1x8xf32> to vector<16x8xf32>
    %59 = arith.addf %55, %58 : vector<16x8xf32>
    %cst_47 = arith.constant 0.353553385 : f32
    %60 = vector.broadcast %cst_47 : f32 to vector<16x8xf32>
    %61 = arith.mulf %59, %60 : vector<16x8xf32>
    %c0_48 = arith.constant 0 : index
    %c1_49 = arith.constant 1 : index
    %c0_50 = arith.constant 0 : index
    %c0_51 = arith.constant 0 : index
    %62 = vector.load %arg9[%c0_48, %c1_49, %c0_50, %c0_51] : memref<1x4x32x8xbf16, #tpu.memory_space<vmem>>, vector<1x1x32x8xbf16>
    %63 = vector.shape_cast %62 : vector<1x1x32x8xbf16> to vector<32x8xbf16>
    %cst_52 = arith.constant dense<0.000000e+00> : vector<16x8xf32>
    %64 = tpu.matmul %3, %63, %cst_52 {dimension_numbers = #tpu.dot_dimension_numbers<[1], [0], [0], [1], [0, 0, 1, 1], [], []>} : vector<16x32xbf16>, vector<32x8xbf16>, vector<16x8xf32> -> vector<16x8xf32>
    %c0_53 = arith.constant 0 : index
    %c1_54 = arith.constant 1 : index
    %c0_55 = arith.constant 0 : index
    %c0_56 = arith.constant 0 : index
    %65 = vector.load %arg12[%c0_53, %c1_54, %c0_55, %c0_56] : memref<1x4x1x8xf32, #tpu.memory_space<vmem>>, vector<1x1x1x8xf32>
    %66 = vector.shape_cast %65 : vector<1x1x1x8xf32> to vector<1x8xf32>
    %67 = vector.broadcast %66 : vector<1x8xf32> to vector<16x8xf32>
    %68 = arith.addf %64, %67 : vector<16x8xf32>
    %c0_57 = arith.constant 0 : index
    %c1_58 = arith.constant 1 : index
    %c0_59 = arith.constant 0 : index
    %c0_60 = arith.constant 0 : index
    %69 = vector.load %arg10[%c0_57, %c1_58, %c0_59, %c0_60] : memref<1x4x32x8xbf16, #tpu.memory_space<vmem>>, vector<1x1x32x8xbf16>
    %70 = vector.shape_cast %69 : vector<1x1x32x8xbf16> to vector<32x8xbf16>
    %cst_61 = arith.constant dense<0.000000e+00> : vector<16x8xf32>
    %71 = tpu.matmul %3, %70, %cst_61 {dimension_numbers = #tpu.dot_dimension_numbers<[1], [0], [0], [1], [0, 0, 1, 1], [], []>} : vector<16x32xbf16>, vector<32x8xbf16>, vector<16x8xf32> -> vector<16x8xf32>
    %c0_62 = arith.constant 0 : index
    %c1_63 = arith.constant 1 : index
    %c0_64 = arith.constant 0 : index
    %c0_65 = arith.constant 0 : index
    %72 = vector.load %arg13[%c0_62, %c1_63, %c0_64, %c0_65] : memref<1x4x1x8xf32, #tpu.memory_space<vmem>>, vector<1x1x1x8xf32>
    %73 = vector.shape_cast %72 : vector<1x1x1x8xf32> to vector<1x8xf32>
    %74 = vector.broadcast %73 : vector<1x8xf32> to vector<16x8xf32>
    %75 = arith.addf %71, %74 : vector<16x8xf32>
    %76 = arith.truncf %61 : vector<16x8xf32> to vector<16x8xbf16>
    %77 = vector.shape_cast %76 : vector<16x8xbf16> to vector<2x8x8xbf16>
    %78 = arith.truncf %68 : vector<16x8xf32> to vector<16x8xbf16>
    %79 = vector.shape_cast %78 : vector<16x8xbf16> to vector<2x8x8xbf16>
    %80 = arith.truncf %75 : vector<16x8xf32> to vector<16x8xbf16>
    %81 = vector.shape_cast %80 : vector<16x8xbf16> to vector<2x8x8xbf16>
    "tpu.trace_start"() <{level = 10 : i32, message = "bqd,bkd->bqk"}> : () -> ()
    %cst_66 = arith.constant dense<0.000000e+00> : vector<2x8x8xf32>
    %82 = tpu.matmul %77, %79, %cst_66 {dimension_numbers = #tpu.dot_dimension_numbers<[2], [2], [1], [1], [0, 0, 0, 1, 1, 1], [0], [0]>} : vector<2x8x8xbf16>, vector<2x8x8xbf16>, vector<2x8x8xf32> -> vector<2x8x8xf32>
    "tpu.trace_stop"() : () -> ()
    %cst_67 = arith.constant dense<0xFF800000> : vector<2x8xf32>
    %83 = vector.multi_reduction <maximumf>, %82, %cst_67 [2] : vector<2x8x8xf32> to vector<2x8xf32>
    %84 = vector.shape_cast %83 : vector<2x8xf32> to vector<2x8x1xf32>
    %85 = vector.broadcast %84 : vector<2x8x1xf32> to vector<2x8x8xf32>
    %86 = arith.subf %82, %85 : vector<2x8x8xf32>
    %87 = math.exp %86 : vector<2x8x8xf32>
    %cst_68 = arith.constant dense<0.000000e+00> : vector<2x8xf32>
    %88 = vector.multi_reduction <add>, %87, %cst_68 [2] : vector<2x8x8xf32> to vector<2x8xf32>
    %89 = vector.shape_cast %88 : vector<2x8xf32> to vector<2x8x1xf32>
    %90 = vector.broadcast %89 : vector<2x8x1xf32> to vector<2x8x8xf32>
    %91 = arith.divf %87, %90 : vector<2x8x8xf32>
    %92 = arith.truncf %91 : vector<2x8x8xf32> to vector<2x8x8xbf16>
    "tpu.trace_start"() <{level = 10 : i32, message = "bqk,bkd->bqd"}> : () -> ()
    %cst_69 = arith.constant dense<0.000000e+00> : vector<2x8x8xf32>
    %93 = tpu.matmul %92, %81, %cst_69 {dimension_numbers = #tpu.dot_dimension_numbers<[2], [1], [1], [2], [0, 0, 0, 1, 1, 2], [0], [0]>} : vector<2x8x8xbf16>, vector<2x8x8xbf16>, vector<2x8x8xf32> -> vector<2x8x8xf32>
    "tpu.trace_stop"() : () -> ()
    %94 = vector.shape_cast %93 : vector<2x8x8xf32> to vector<16x8xf32>
    %95 = arith.truncf %94 : vector<16x8xf32> to vector<16x8xbf16>
    %c0_70 = arith.constant 0 : index
    %c1_71 = arith.constant 1 : index
    %c0_72 = arith.constant 0 : index
    %c0_73 = arith.constant 0 : index
    %96 = vector.load %arg14[%c0_70, %c1_71, %c0_72, %c0_73] : memref<1x4x8x32xbf16, #tpu.memory_space<vmem>>, vector<1x1x8x32xbf16>
    %97 = vector.shape_cast %96 : vector<1x1x8x32xbf16> to vector<8x32xbf16>
    %cst_74 = arith.constant dense<0.000000e+00> : vector<16x32xf32>
    %98 = tpu.matmul %95, %97, %cst_74 {dimension_numbers = #tpu.dot_dimension_numbers<[1], [0], [0], [1], [0, 0, 1, 1], [], []>} : vector<16x8xbf16>, vector<8x32xbf16>, vector<16x32xf32> -> vector<16x32xf32>
    %99 = arith.addf %52, %98 : vector<16x32xf32>
    %c0_75 = arith.constant 0 : index
    %c2 = arith.constant 2 : index
    %c0_76 = arith.constant 0 : index
    %c0_77 = arith.constant 0 : index
    %100 = vector.load %arg8[%c0_75, %c2, %c0_76, %c0_77] : memref<1x4x32x8xbf16, #tpu.memory_space<vmem>>, vector<1x1x32x8xbf16>
    %101 = vector.shape_cast %100 : vector<1x1x32x8xbf16> to vector<32x8xbf16>
    %cst_78 = arith.constant dense<0.000000e+00> : vector<16x8xf32>
    %102 = tpu.matmul %3, %101, %cst_78 {dimension_numbers = #tpu.dot_dimension_numbers<[1], [0], [0], [1], [0, 0, 1, 1], [], []>} : vector<16x32xbf16>, vector<32x8xbf16>, vector<16x8xf32> -> vector<16x8xf32>
    %c0_79 = arith.constant 0 : index
    %c2_80 = arith.constant 2 : index
    %c0_81 = arith.constant 0 : index
    %c0_82 = arith.constant 0 : index
    %103 = vector.load %arg11[%c0_79, %c2_80, %c0_81, %c0_82] : memref<1x4x1x8xf32, #tpu.memory_space<vmem>>, vector<1x1x1x8xf32>
    %104 = vector.shape_cast %103 : vector<1x1x1x8xf32> to vector<1x8xf32>
    %105 = vector.broadcast %104 : vector<1x8xf32> to vector<16x8xf32>
    %106 = arith.addf %102, %105 : vector<16x8xf32>
    %cst_83 = arith.constant 0.353553385 : f32
    %107 = vector.broadcast %cst_83 : f32 to vector<16x8xf32>
    %108 = arith.mulf %106, %107 : vector<16x8xf32>
    %c0_84 = arith.constant 0 : index
    %c2_85 = arith.constant 2 : index
    %c0_86 = arith.constant 0 : index
    %c0_87 = arith.constant 0 : index
    %109 = vector.load %arg9[%c0_84, %c2_85, %c0_86, %c0_87] : memref<1x4x32x8xbf16, #tpu.memory_space<vmem>>, vector<1x1x32x8xbf16>
    %110 = vector.shape_cast %109 : vector<1x1x32x8xbf16> to vector<32x8xbf16>
    %cst_88 = arith.constant dense<0.000000e+00> : vector<16x8xf32>
    %111 = tpu.matmul %3, %110, %cst_88 {dimension_numbers = #tpu.dot_dimension_numbers<[1], [0], [0], [1], [0, 0, 1, 1], [], []>} : vector<16x32xbf16>, vector<32x8xbf16>, vector<16x8xf32> -> vector<16x8xf32>
    %c0_89 = arith.constant 0 : index
    %c2_90 = arith.constant 2 : index
    %c0_91 = arith.constant 0 : index
    %c0_92 = arith.constant 0 : index
    %112 = vector.load %arg12[%c0_89, %c2_90, %c0_91, %c0_92] : memref<1x4x1x8xf32, #tpu.memory_space<vmem>>, vector<1x1x1x8xf32>
    %113 = vector.shape_cast %112 : vector<1x1x1x8xf32> to vector<1x8xf32>
    %114 = vector.broadcast %113 : vector<1x8xf32> to vector<16x8xf32>
    %115 = arith.addf %111, %114 : vector<16x8xf32>
    %c0_93 = arith.constant 0 : index
    %c2_94 = arith.constant 2 : index
    %c0_95 = arith.constant 0 : index
    %c0_96 = arith.constant 0 : index
    %116 = vector.load %arg10[%c0_93, %c2_94, %c0_95, %c0_96] : memref<1x4x32x8xbf16, #tpu.memory_space<vmem>>, vector<1x1x32x8xbf16>
    %117 = vector.shape_cast %116 : vector<1x1x32x8xbf16> to vector<32x8xbf16>
    %cst_97 = arith.constant dense<0.000000e+00> : vector<16x8xf32>
    %118 = tpu.matmul %3, %117, %cst_97 {dimension_numbers = #tpu.dot_dimension_numbers<[1], [0], [0], [1], [0, 0, 1, 1], [], []>} : vector<16x32xbf16>, vector<32x8xbf16>, vector<16x8xf32> -> vector<16x8xf32>
    %c0_98 = arith.constant 0 : index
    %c2_99 = arith.constant 2 : index
    %c0_100 = arith.constant 0 : index
    %c0_101 = arith.constant 0 : index
    %119 = vector.load %arg13[%c0_98, %c2_99, %c0_100, %c0_101] : memref<1x4x1x8xf32, #tpu.memory_space<vmem>>, vector<1x1x1x8xf32>
    %120 = vector.shape_cast %119 : vector<1x1x1x8xf32> to vector<1x8xf32>
    %121 = vector.broadcast %120 : vector<1x8xf32> to vector<16x8xf32>
    %122 = arith.addf %118, %121 : vector<16x8xf32>
    %123 = arith.truncf %108 : vector<16x8xf32> to vector<16x8xbf16>
    %124 = vector.shape_cast %123 : vector<16x8xbf16> to vector<2x8x8xbf16>
    %125 = arith.truncf %115 : vector<16x8xf32> to vector<16x8xbf16>
    %126 = vector.shape_cast %125 : vector<16x8xbf16> to vector<2x8x8xbf16>
    %127 = arith.truncf %122 : vector<16x8xf32> to vector<16x8xbf16>
    %128 = vector.shape_cast %127 : vector<16x8xbf16> to vector<2x8x8xbf16>
    "tpu.trace_start"() <{level = 10 : i32, message = "bqd,bkd->bqk"}> : () -> ()
    %cst_102 = arith.constant dense<0.000000e+00> : vector<2x8x8xf32>
    %129 = tpu.matmul %124, %126, %cst_102 {dimension_numbers = #tpu.dot_dimension_numbers<[2], [2], [1], [1], [0, 0, 0, 1, 1, 1], [0], [0]>} : vector<2x8x8xbf16>, vector<2x8x8xbf16>, vector<2x8x8xf32> -> vector<2x8x8xf32>
    "tpu.trace_stop"() : () -> ()
    %cst_103 = arith.constant dense<0xFF800000> : vector<2x8xf32>
    %130 = vector.multi_reduction <maximumf>, %129, %cst_103 [2] : vector<2x8x8xf32> to vector<2x8xf32>
    %131 = vector.shape_cast %130 : vector<2x8xf32> to vector<2x8x1xf32>
    %132 = vector.broadcast %131 : vector<2x8x1xf32> to vector<2x8x8xf32>
    %133 = arith.subf %129, %132 : vector<2x8x8xf32>
    %134 = math.exp %133 : vector<2x8x8xf32>
    %cst_104 = arith.constant dense<0.000000e+00> : vector<2x8xf32>
    %135 = vector.multi_reduction <add>, %134, %cst_104 [2] : vector<2x8x8xf32> to vector<2x8xf32>
    %136 = vector.shape_cast %135 : vector<2x8xf32> to vector<2x8x1xf32>
    %137 = vector.broadcast %136 : vector<2x8x1xf32> to vector<2x8x8xf32>
    %138 = arith.divf %134, %137 : vector<2x8x8xf32>
    %139 = arith.truncf %138 : vector<2x8x8xf32> to vector<2x8x8xbf16>
    "tpu.trace_start"() <{level = 10 : i32, message = "bqk,bkd->bqd"}> : () -> ()
    %cst_105 = arith.constant dense<0.000000e+00> : vector<2x8x8xf32>
    %140 = tpu.matmul %139, %128, %cst_105 {dimension_numbers = #tpu.dot_dimension_numbers<[2], [1], [1], [2], [0, 0, 0, 1, 1, 2], [0], [0]>} : vector<2x8x8xbf16>, vector<2x8x8xbf16>, vector<2x8x8xf32> -> vector<2x8x8xf32>
    "tpu.trace_stop"() : () -> ()
    %141 = vector.shape_cast %140 : vector<2x8x8xf32> to vector<16x8xf32>
    %142 = arith.truncf %141 : vector<16x8xf32> to vector<16x8xbf16>
    %c0_106 = arith.constant 0 : index
    %c2_107 = arith.constant 2 : index
    %c0_108 = arith.constant 0 : index
    %c0_109 = arith.constant 0 : index
    %143 = vector.load %arg14[%c0_106, %c2_107, %c0_108, %c0_109] : memref<1x4x8x32xbf16, #tpu.memory_space<vmem>>, vector<1x1x8x32xbf16>
    %144 = vector.shape_cast %143 : vector<1x1x8x32xbf16> to vector<8x32xbf16>
    %cst_110 = arith.constant dense<0.000000e+00> : vector<16x32xf32>
    %145 = tpu.matmul %142, %144, %cst_110 {dimension_numbers = #tpu.dot_dimension_numbers<[1], [0], [0], [1], [0, 0, 1, 1], [], []>} : vector<16x8xbf16>, vector<8x32xbf16>, vector<16x32xf32> -> vector<16x32xf32>
    %146 = arith.addf %99, %145 : vector<16x32xf32>
    %c0_111 = arith.constant 0 : index
    %c3 = arith.constant 3 : index
    %c0_112 = arith.constant 0 : index
    %c0_113 = arith.constant 0 : index
    %147 = vector.load %arg8[%c0_111, %c3, %c0_112, %c0_113] : memref<1x4x32x8xbf16, #tpu.memory_space<vmem>>, vector<1x1x32x8xbf16>
    %148 = vector.shape_cast %147 : vector<1x1x32x8xbf16> to vector<32x8xbf16>
    %cst_114 = arith.constant dense<0.000000e+00> : vector<16x8xf32>
    %149 = tpu.matmul %3, %148, %cst_114 {dimension_numbers = #tpu.dot_dimension_numbers<[1], [0], [0], [1], [0, 0, 1, 1], [], []>} : vector<16x32xbf16>, vector<32x8xbf16>, vector<16x8xf32> -> vector<16x8xf32>
    %c0_115 = arith.constant 0 : index
    %c3_116 = arith.constant 3 : index
    %c0_117 = arith.constant 0 : index
    %c0_118 = arith.constant 0 : index
    %150 = vector.load %arg11[%c0_115, %c3_116, %c0_117, %c0_118] : memref<1x4x1x8xf32, #tpu.memory_space<vmem>>, vector<1x1x1x8xf32>
    %151 = vector.shape_cast %150 : vector<1x1x1x8xf32> to vector<1x8xf32>
    %152 = vector.broadcast %151 : vector<1x8xf32> to vector<16x8xf32>
    %153 = arith.addf %149, %152 : vector<16x8xf32>
    %cst_119 = arith.constant 0.353553385 : f32
    %154 = vector.broadcast %cst_119 : f32 to vector<16x8xf32>
    %155 = arith.mulf %153, %154 : vector<16x8xf32>
    %c0_120 = arith.constant 0 : index
    %c3_121 = arith.constant 3 : index
    %c0_122 = arith.constant 0 : index
    %c0_123 = arith.constant 0 : index
    %156 = vector.load %arg9[%c0_120, %c3_121, %c0_122, %c0_123] : memref<1x4x32x8xbf16, #tpu.memory_space<vmem>>, vector<1x1x32x8xbf16>
    %157 = vector.shape_cast %156 : vector<1x1x32x8xbf16> to vector<32x8xbf16>
    %cst_124 = arith.constant dense<0.000000e+00> : vector<16x8xf32>
    %158 = tpu.matmul %3, %157, %cst_124 {dimension_numbers = #tpu.dot_dimension_numbers<[1], [0], [0], [1], [0, 0, 1, 1], [], []>} : vector<16x32xbf16>, vector<32x8xbf16>, vector<16x8xf32> -> vector<16x8xf32>
    %c0_125 = arith.constant 0 : index
    %c3_126 = arith.constant 3 : index
    %c0_127 = arith.constant 0 : index
    %c0_128 = arith.constant 0 : index
    %159 = vector.load %arg12[%c0_125, %c3_126, %c0_127, %c0_128] : memref<1x4x1x8xf32, #tpu.memory_space<vmem>>, vector<1x1x1x8xf32>
    %160 = vector.shape_cast %159 : vector<1x1x1x8xf32> to vector<1x8xf32>
    %161 = vector.broadcast %160 : vector<1x8xf32> to vector<16x8xf32>
    %162 = arith.addf %158, %161 : vector<16x8xf32>
    %c0_129 = arith.constant 0 : index
    %c3_130 = arith.constant 3 : index
    %c0_131 = arith.constant 0 : index
    %c0_132 = arith.constant 0 : index
    %163 = vector.load %arg10[%c0_129, %c3_130, %c0_131, %c0_132] : memref<1x4x32x8xbf16, #tpu.memory_space<vmem>>, vector<1x1x32x8xbf16>
    %164 = vector.shape_cast %163 : vector<1x1x32x8xbf16> to vector<32x8xbf16>
    %cst_133 = arith.constant dense<0.000000e+00> : vector<16x8xf32>
    %165 = tpu.matmul %3, %164, %cst_133 {dimension_numbers = #tpu.dot_dimension_numbers<[1], [0], [0], [1], [0, 0, 1, 1], [], []>} : vector<16x32xbf16>, vector<32x8xbf16>, vector<16x8xf32> -> vector<16x8xf32>
    %c0_134 = arith.constant 0 : index
    %c3_135 = arith.constant 3 : index
    %c0_136 = arith.constant 0 : index
    %c0_137 = arith.constant 0 : index
    %166 = vector.load %arg13[%c0_134, %c3_135, %c0_136, %c0_137] : memref<1x4x1x8xf32, #tpu.memory_space<vmem>>, vector<1x1x1x8xf32>
    %167 = vector.shape_cast %166 : vector<1x1x1x8xf32> to vector<1x8xf32>
    %168 = vector.broadcast %167 : vector<1x8xf32> to vector<16x8xf32>
    %169 = arith.addf %165, %168 : vector<16x8xf32>
    %170 = arith.truncf %155 : vector<16x8xf32> to vector<16x8xbf16>
    %171 = vector.shape_cast %170 : vector<16x8xbf16> to vector<2x8x8xbf16>
    %172 = arith.truncf %162 : vector<16x8xf32> to vector<16x8xbf16>
    %173 = vector.shape_cast %172 : vector<16x8xbf16> to vector<2x8x8xbf16>
    %174 = arith.truncf %169 : vector<16x8xf32> to vector<16x8xbf16>
    %175 = vector.shape_cast %174 : vector<16x8xbf16> to vector<2x8x8xbf16>
    "tpu.trace_start"() <{level = 10 : i32, message = "bqd,bkd->bqk"}> : () -> ()
    %cst_138 = arith.constant dense<0.000000e+00> : vector<2x8x8xf32>
    %176 = tpu.matmul %171, %173, %cst_138 {dimension_numbers = #tpu.dot_dimension_numbers<[2], [2], [1], [1], [0, 0, 0, 1, 1, 1], [0], [0]>} : vector<2x8x8xbf16>, vector<2x8x8xbf16>, vector<2x8x8xf32> -> vector<2x8x8xf32>
    "tpu.trace_stop"() : () -> ()
    %cst_139 = arith.constant dense<0xFF800000> : vector<2x8xf32>
    %177 = vector.multi_reduction <maximumf>, %176, %cst_139 [2] : vector<2x8x8xf32> to vector<2x8xf32>
    %178 = vector.shape_cast %177 : vector<2x8xf32> to vector<2x8x1xf32>
    %179 = vector.broadcast %178 : vector<2x8x1xf32> to vector<2x8x8xf32>
    %180 = arith.subf %176, %179 : vector<2x8x8xf32>
    %181 = math.exp %180 : vector<2x8x8xf32>
    %cst_140 = arith.constant dense<0.000000e+00> : vector<2x8xf32>
    %182 = vector.multi_reduction <add>, %181, %cst_140 [2] : vector<2x8x8xf32> to vector<2x8xf32>
    %183 = vector.shape_cast %182 : vector<2x8xf32> to vector<2x8x1xf32>
    %184 = vector.broadcast %183 : vector<2x8x1xf32> to vector<2x8x8xf32>
    %185 = arith.divf %181, %184 : vector<2x8x8xf32>
    %186 = arith.truncf %185 : vector<2x8x8xf32> to vector<2x8x8xbf16>
    "tpu.trace_start"() <{level = 10 : i32, message = "bqk,bkd->bqd"}> : () -> ()
    %cst_141 = arith.constant dense<0.000000e+00> : vector<2x8x8xf32>
    %187 = tpu.matmul %186, %175, %cst_141 {dimension_numbers = #tpu.dot_dimension_numbers<[2], [1], [1], [2], [0, 0, 0, 1, 1, 2], [0], [0]>} : vector<2x8x8xbf16>, vector<2x8x8xbf16>, vector<2x8x8xf32> -> vector<2x8x8xf32>
    "tpu.trace_stop"() : () -> ()
    %188 = vector.shape_cast %187 : vector<2x8x8xf32> to vector<16x8xf32>
    %189 = arith.truncf %188 : vector<16x8xf32> to vector<16x8xbf16>
    %c0_142 = arith.constant 0 : index
    %c3_143 = arith.constant 3 : index
    %c0_144 = arith.constant 0 : index
    %c0_145 = arith.constant 0 : index
    %190 = vector.load %arg14[%c0_142, %c3_143, %c0_144, %c0_145] : memref<1x4x8x32xbf16, #tpu.memory_space<vmem>>, vector<1x1x8x32xbf16>
    %191 = vector.shape_cast %190 : vector<1x1x8x32xbf16> to vector<8x32xbf16>
    %cst_146 = arith.constant dense<0.000000e+00> : vector<16x32xf32>
    %192 = tpu.matmul %189, %191, %cst_146 {dimension_numbers = #tpu.dot_dimension_numbers<[1], [0], [0], [1], [0, 0, 1, 1], [], []>} : vector<16x8xbf16>, vector<8x32xbf16>, vector<16x32xf32> -> vector<16x32xf32>
    %193 = arith.addf %146, %192 : vector<16x32xf32>
    %c0_147 = arith.constant 0 : index
    %c0_148 = arith.constant 0 : index
    %c0_149 = arith.constant 0 : index
    %194 = vector.load %arg15[%c0_147, %c0_148, %c0_149] : memref<1x1x32xf32, #tpu.memory_space<vmem>>, vector<1x1x32xf32>
    %195 = vector.shape_cast %194 : vector<1x1x32xf32> to vector<1x32xf32>
    %196 = vector.broadcast %195 : vector<1x32xf32> to vector<16x32xf32>
    %197 = arith.addf %193, %196 : vector<16x32xf32>
    %198 = arith.addf %4, %197 : vector<16x32xf32>
    %c0_150 = arith.constant 0 : index
    %c0_151 = arith.constant 0 : index
    %c0_152 = arith.constant 0 : index
    %199 = vector.load %arg16[%c0_150, %c0_151, %c0_152] : memref<1x1x32xf32, #tpu.memory_space<vmem>>, vector<1x1x32xf32>
    %200 = vector.shape_cast %199 : vector<1x1x32xf32> to vector<1x32xf32>
    %c0_153 = arith.constant 0 : index
    %c0_154 = arith.constant 0 : index
    %c0_155 = arith.constant 0 : index
    %201 = vector.load %arg17[%c0_153, %c0_154, %c0_155] : memref<1x1x32xf32, #tpu.memory_space<vmem>>, vector<1x1x32xf32>
    %202 = vector.shape_cast %201 : vector<1x1x32xf32> to vector<1x32xf32>
    %cst_156 = arith.constant dense<0.000000e+00> : vector<16xf32>
    %203 = vector.multi_reduction <add>, %198, %cst_156 [1] : vector<16x32xf32> to vector<16xf32>
    %204 = vector.shape_cast %203 : vector<16xf32> to vector<16x1xf32>
    %cst_157 = arith.constant 3.200000e+01 : f32
    %205 = vector.broadcast %cst_157 : f32 to vector<16x1xf32>
    %206 = arith.divf %204, %205 : vector<16x1xf32>
    %207 = vector.broadcast %206 : vector<16x1xf32> to vector<16x32xf32>
    %208 = arith.subf %198, %207 : vector<16x32xf32>
    %209 = arith.mulf %208, %208 : vector<16x32xf32>
    %cst_158 = arith.constant dense<0.000000e+00> : vector<16xf32>
    %210 = vector.multi_reduction <add>, %209, %cst_158 [1] : vector<16x32xf32> to vector<16xf32>
    %211 = vector.shape_cast %210 : vector<16xf32> to vector<16x1xf32>
    %cst_159 = arith.constant 3.200000e+01 : f32
    %212 = vector.broadcast %cst_159 : f32 to vector<16x1xf32>
    %213 = arith.divf %211, %212 : vector<16x1xf32>
    %214 = vector.broadcast %206 : vector<16x1xf32> to vector<16x32xf32>
    %215 = arith.subf %198, %214 : vector<16x32xf32>
    %cst_160 = arith.constant 9.99999974E-6 : f32
    %216 = vector.broadcast %cst_160 : f32 to vector<16x1xf32>
    %217 = arith.addf %213, %216 : vector<16x1xf32>
    %218 = math.rsqrt %217 : vector<16x1xf32>
    %219 = vector.broadcast %218 : vector<16x1xf32> to vector<16x32xf32>
    %220 = arith.mulf %215, %219 : vector<16x32xf32>
    %221 = vector.broadcast %200 : vector<1x32xf32> to vector<16x32xf32>
    %222 = arith.mulf %220, %221 : vector<16x32xf32>
    %223 = vector.broadcast %202 : vector<1x32xf32> to vector<16x32xf32>
    %224 = arith.addf %222, %223 : vector<16x32xf32>
    %225 = arith.truncf %224 : vector<16x32xf32> to vector<16x32xbf16>
    %c0_161 = arith.constant 0 : index
    %c0_162 = arith.constant 0 : index
    %c0_163 = arith.constant 0 : index
    %226 = vector.load %arg18[%c0_161, %c0_162, %c0_163] : memref<1x32x64xbf16, #tpu.memory_space<vmem>>, vector<1x32x64xbf16>
    %227 = vector.shape_cast %226 : vector<1x32x64xbf16> to vector<32x64xbf16>
    %cst_164 = arith.constant dense<0.000000e+00> : vector<16x64xf32>
    %228 = tpu.matmul %225, %227, %cst_164 {dimension_numbers = #tpu.dot_dimension_numbers<[1], [0], [0], [1], [0, 0, 1, 1], [], []>} : vector<16x32xbf16>, vector<32x64xbf16>, vector<16x64xf32> -> vector<16x64xf32>
    %c0_165 = arith.constant 0 : index
    %c0_166 = arith.constant 0 : index
    %c0_167 = arith.constant 0 : index
    %229 = vector.load %arg19[%c0_165, %c0_166, %c0_167] : memref<1x1x64xf32, #tpu.memory_space<vmem>>, vector<1x1x64xf32>
    %230 = vector.shape_cast %229 : vector<1x1x64xf32> to vector<1x64xf32>
    %231 = vector.broadcast %230 : vector<1x64xf32> to vector<16x64xf32>
    %232 = arith.addf %228, %231 : vector<16x64xf32>
    %cst_168 = arith.constant 5.000000e-01 : f32
    %233 = vector.broadcast %cst_168 : f32 to vector<16x64xf32>
    %234 = arith.mulf %233, %232 : vector<16x64xf32>
    %cst_169 = arith.constant 4.471500e-02 : f32
    %235 = vector.broadcast %cst_169 : f32 to vector<16x64xf32>
    %236 = arith.mulf %235, %232 : vector<16x64xf32>
    %237 = arith.mulf %236, %232 : vector<16x64xf32>
    %238 = arith.mulf %237, %232 : vector<16x64xf32>
    %239 = arith.addf %232, %238 : vector<16x64xf32>
    %cst_170 = arith.constant 0.797884583 : f32
    %240 = vector.broadcast %cst_170 : f32 to vector<16x64xf32>
    %241 = arith.mulf %240, %239 : vector<16x64xf32>
    %242 = math.tanh %241 : vector<16x64xf32>
    %cst_171 = arith.constant 1.000000e+00 : f32
    %243 = vector.broadcast %cst_171 : f32 to vector<16x64xf32>
    %244 = arith.addf %243, %242 : vector<16x64xf32>
    %245 = arith.mulf %234, %244 : vector<16x64xf32>
    %246 = arith.truncf %245 : vector<16x64xf32> to vector<16x64xbf16>
    %c0_172 = arith.constant 0 : index
    %c0_173 = arith.constant 0 : index
    %c0_174 = arith.constant 0 : index
    %247 = vector.load %arg20[%c0_172, %c0_173, %c0_174] : memref<1x64x32xbf16, #tpu.memory_space<vmem>>, vector<1x64x32xbf16>
    %248 = vector.shape_cast %247 : vector<1x64x32xbf16> to vector<64x32xbf16>
    %cst_175 = arith.constant dense<0.000000e+00> : vector<16x32xf32>
    %249 = tpu.matmul %246, %248, %cst_175 {dimension_numbers = #tpu.dot_dimension_numbers<[1], [0], [0], [1], [0, 0, 1, 1], [], []>} : vector<16x64xbf16>, vector<64x32xbf16>, vector<16x32xf32> -> vector<16x32xf32>
    %c0_176 = arith.constant 0 : index
    %c0_177 = arith.constant 0 : index
    %c0_178 = arith.constant 0 : index
    %250 = vector.load %arg21[%c0_176, %c0_177, %c0_178] : memref<1x1x32xf32, #tpu.memory_space<vmem>>, vector<1x1x32xf32>
    %251 = vector.shape_cast %250 : vector<1x1x32xf32> to vector<1x32xf32>
    %252 = vector.broadcast %251 : vector<1x32xf32> to vector<16x32xf32>
    %253 = arith.addf %249, %252 : vector<16x32xf32>
    %254 = arith.addf %224, %253 : vector<16x32xf32>
    %c0_179 = arith.constant 0 : index
    %c0_180 = arith.constant 0 : index
    %c0_181 = arith.constant 0 : index
    %255 = vector.load %arg22[%c0_179, %c0_180, %c0_181] : memref<1x1x32xf32, #tpu.memory_space<vmem>>, vector<1x1x32xf32>
    %256 = vector.shape_cast %255 : vector<1x1x32xf32> to vector<1x32xf32>
    %c0_182 = arith.constant 0 : index
    %c0_183 = arith.constant 0 : index
    %c0_184 = arith.constant 0 : index
    %257 = vector.load %arg23[%c0_182, %c0_183, %c0_184] : memref<1x1x32xf32, #tpu.memory_space<vmem>>, vector<1x1x32xf32>
    %258 = vector.shape_cast %257 : vector<1x1x32xf32> to vector<1x32xf32>
    %cst_185 = arith.constant dense<0.000000e+00> : vector<16xf32>
    %259 = vector.multi_reduction <add>, %254, %cst_185 [1] : vector<16x32xf32> to vector<16xf32>
    %260 = vector.shape_cast %259 : vector<16xf32> to vector<16x1xf32>
    %cst_186 = arith.constant 3.200000e+01 : f32
    %261 = vector.broadcast %cst_186 : f32 to vector<16x1xf32>
    %262 = arith.divf %260, %261 : vector<16x1xf32>
    %263 = vector.broadcast %262 : vector<16x1xf32> to vector<16x32xf32>
    %264 = arith.subf %254, %263 : vector<16x32xf32>
    %265 = arith.mulf %264, %264 : vector<16x32xf32>
    %cst_187 = arith.constant dense<0.000000e+00> : vector<16xf32>
    %266 = vector.multi_reduction <add>, %265, %cst_187 [1] : vector<16x32xf32> to vector<16xf32>
    %267 = vector.shape_cast %266 : vector<16xf32> to vector<16x1xf32>
    %cst_188 = arith.constant 3.200000e+01 : f32
    %268 = vector.broadcast %cst_188 : f32 to vector<16x1xf32>
    %269 = arith.divf %267, %268 : vector<16x1xf32>
    %270 = vector.broadcast %262 : vector<16x1xf32> to vector<16x32xf32>
    %271 = arith.subf %254, %270 : vector<16x32xf32>
    %cst_189 = arith.constant 9.99999974E-6 : f32
    %272 = vector.broadcast %cst_189 : f32 to vector<16x1xf32>
    %273 = arith.addf %269, %272 : vector<16x1xf32>
    %274 = math.rsqrt %273 : vector<16x1xf32>
    %275 = vector.broadcast %274 : vector<16x1xf32> to vector<16x32xf32>
    %276 = arith.mulf %271, %275 : vector<16x32xf32>
    %277 = vector.broadcast %256 : vector<1x32xf32> to vector<16x32xf32>
    %278 = arith.mulf %276, %277 : vector<16x32xf32>
    %279 = vector.broadcast %258 : vector<1x32xf32> to vector<16x32xf32>
    %280 = arith.addf %278, %279 : vector<16x32xf32>
    %281 = arith.truncf %280 : vector<16x32xf32> to vector<16x32xbf16>
    %c0_190 = arith.constant 0 : index
    %c0_191 = arith.constant 0 : index
    %282 = vector.load %arg31[%c0_190, %c0_191] : memref<16x32xbf16, #tpu.memory_space<vmem>>, vector<16x32xbf16>
    tpu.vector_store %arg31[%c0_190, %c0_191], %281 {strides = array<i32>} : memref<16x32xbf16, #tpu.memory_space<vmem>>, vector<16x32xbf16>,
    %c1_i32 = arith.constant 1 : i32
    %283 = arith.cmpi eq, %arg1, %c1_i32 : i32
    %284 = arith.extui %283 : i1 to i32
    %c0_i32_192 = arith.constant 0 : i32
    %285 = arith.cmpi ne, %284, %c0_i32_192 : i32
    scf.if %285 {
      %286 = vector.extract_strided_slice %280 {offsets = [0, 0], sizes = [1, 32], strides = [1, 1]} : vector<16x32xf32> to vector<1x32xf32>
      %287 = vector.extract_strided_slice %280 {offsets = [8, 0], sizes = [1, 32], strides = [1, 1]} : vector<16x32xf32> to vector<1x32xf32>
      %288 = tpu.concatenate %286, %287 in 0 : vector<1x32xf32>, vector<1x32xf32> -> vector<2x32xf32>
      %289 = arith.truncf %288 : vector<2x32xf32> to vector<2x32xbf16>
      %c0_193 = arith.constant 0 : index
      %c0_194 = arith.constant 0 : index
      %290 = vector.load %arg24[%c0_193, %c0_194] : memref<32x16xbf16, #tpu.memory_space<vmem>>, vector<32x16xbf16>
      %cst_195 = arith.constant dense<0.000000e+00> : vector<2x16xf32>
      %291 = tpu.matmul %289, %290, %cst_195 {dimension_numbers = #tpu.dot_dimension_numbers<[1], [0], [0], [1], [0, 0, 1, 1], [], []>} : vector<2x32xbf16>, vector<32x16xbf16>, vector<2x16xf32> -> vector<2x16xf32>
      %c0_196 = arith.constant 0 : index
      %c0_197 = arith.constant 0 : index
      %292 = vector.load %arg25[%c0_196, %c0_197] : memref<1x16xf32, #tpu.memory_space<vmem>>, vector<1x16xf32>
      %293 = vector.broadcast %292 : vector<1x16xf32> to vector<2x16xf32>
      %294 = arith.addf %291, %293 : vector<2x16xf32>
      %cst_198 = arith.constant 5.000000e-01 : f32
      %295 = vector.broadcast %cst_198 : f32 to vector<2x16xf32>
      %296 = arith.mulf %295, %294 : vector<2x16xf32>
      %cst_199 = arith.constant 4.471500e-02 : f32
      %297 = vector.broadcast %cst_199 : f32 to vector<2x16xf32>
      %298 = arith.mulf %297, %294 : vector<2x16xf32>
      %299 = arith.mulf %298, %294 : vector<2x16xf32>
      %300 = arith.mulf %299, %294 : vector<2x16xf32>
      %301 = arith.addf %294, %300 : vector<2x16xf32>
      %cst_200 = arith.constant 0.797884583 : f32
      %302 = vector.broadcast %cst_200 : f32 to vector<2x16xf32>
      %303 = arith.mulf %302, %301 : vector<2x16xf32>
      %304 = math.tanh %303 : vector<2x16xf32>
      %cst_201 = arith.constant 1.000000e+00 : f32
      %305 = vector.broadcast %cst_201 : f32 to vector<2x16xf32>
      %306 = arith.addf %305, %304 : vector<2x16xf32>
      %307 = arith.mulf %296, %306 : vector<2x16xf32>
      %308 = arith.truncf %307 : vector<2x16xf32> to vector<2x16xbf16>
      %c0_202 = arith.constant 0 : index
      %c0_203 = arith.constant 0 : index
      %309 = vector.load %arg26[%c0_202, %c0_203] : memref<16x16xbf16, #tpu.memory_space<vmem>>, vector<16x16xbf16>
      %cst_204 = arith.constant dense<0.000000e+00> : vector<2x16xf32>
      %310 = tpu.matmul %308, %309, %cst_204 {dimension_numbers = #tpu.dot_dimension_numbers<[1], [0], [0], [1], [0, 0, 1, 1], [], []>} : vector<2x16xbf16>, vector<16x16xbf16>, vector<2x16xf32> -> vector<2x16xf32>
      %c0_205 = arith.constant 0 : index
      %c0_206 = arith.constant 0 : index
      %311 = vector.load %arg27[%c0_205, %c0_206] : memref<1x16xf32, #tpu.memory_space<vmem>>, vector<1x16xf32>
      %312 = vector.broadcast %311 : vector<1x16xf32> to vector<2x16xf32>
      %313 = arith.addf %310, %312 : vector<2x16xf32>
      %cst_207 = arith.constant 5.000000e-01 : f32
      %314 = vector.broadcast %cst_207 : f32 to vector<2x16xf32>
      %315 = arith.mulf %314, %313 : vector<2x16xf32>
      %cst_208 = arith.constant 4.471500e-02 : f32
      %316 = vector.broadcast %cst_208 : f32 to vector<2x16xf32>
      %317 = arith.mulf %316, %313 : vector<2x16xf32>
      %318 = arith.mulf %317, %313 : vector<2x16xf32>
      %319 = arith.mulf %318, %313 : vector<2x16xf32>
      %320 = arith.addf %313, %319 : vector<2x16xf32>
      %cst_209 = arith.constant 0.797884583 : f32
      %321 = vector.broadcast %cst_209 : f32 to vector<2x16xf32>
      %322 = arith.mulf %321, %320 : vector<2x16xf32>
      %323 = math.tanh %322 : vector<2x16xf32>
      %cst_210 = arith.constant 1.000000e+00 : f32
      %324 = vector.broadcast %cst_210 : f32 to vector<2x16xf32>
      %325 = arith.addf %324, %323 : vector<2x16xf32>
      %326 = arith.mulf %315, %325 : vector<2x16xf32>
      %327 = arith.truncf %326 : vector<2x16xf32> to vector<2x16xbf16>
      %c0_211 = arith.constant 0 : index
      %c0_212 = arith.constant 0 : index
      %328 = vector.load %arg28[%c0_211, %c0_212] : memref<16x128xbf16, #tpu.memory_space<vmem>>, vector<16x128xbf16>
      %cst_213 = arith.constant dense<0.000000e+00> : vector<2x128xf32>
      %329 = tpu.matmul %327, %328, %cst_213 {dimension_numbers = #tpu.dot_dimension_numbers<[1], [0], [0], [1], [0, 0, 1, 1], [], []>} : vector<2x16xbf16>, vector<16x128xbf16>, vector<2x128xf32> -> vector<2x128xf32>
      %c0_214 = arith.constant 0 : index
      %c0_215 = arith.constant 0 : index
      %330 = vector.load %arg29[%c0_214, %c0_215] : memref<1x128xf32, #tpu.memory_space<vmem>>, vector<1x128xf32>
      %331 = vector.broadcast %330 : vector<1x128xf32> to vector<2x128xf32>
      %332 = arith.addf %329, %331 : vector<2x128xf32>
      %c0_216 = arith.constant 0 : index
      %c0_217 = arith.constant 0 : index
      %333 = vector.load %arg30[%c0_216, %c0_217] : memref<2x128xf32, #tpu.memory_space<vmem>>, vector<2x128xf32>
      tpu.vector_store %arg30[%c0_216, %c0_217], %332 {strides = array<i32>} : memref<2x128xf32, #tpu.memory_space<vmem>>, vector<2x128xf32>,
    } else {
    }
    return
  }
  func.func @transform_0(%arg0: i32, %arg1: i32) -> (i32, i32) {
    %c0_i32 = arith.constant 0 : i32
    %c0_i32_0 = arith.constant 0 : i32
    return %arg0, %c0_i32 : i32, i32
  }
  func.func @transform_1(%arg0: i32, %arg1: i32) -> (i32, i32) {
    %c0_i32 = arith.constant 0 : i32
    %c0_i32_0 = arith.constant 0 : i32
    return %arg0, %c0_i32 : i32, i32
  }
  func.func @transform_2(%arg0: i32, %arg1: i32) -> (i32, i32) {
    %c0_i32 = arith.constant 0 : i32
    %c0_i32_0 = arith.constant 0 : i32
    %c0_i32_1 = arith.constant 0 : i32
    return %c0_i32, %c0_i32_0 : i32, i32
  }
  func.func @transform_3(%arg0: i32, %arg1: i32) -> (i32, i32) {
    %c0_i32 = arith.constant 0 : i32
    %c0_i32_0 = arith.constant 0 : i32
    %c0_i32_1 = arith.constant 0 : i32
    return %c0_i32, %c0_i32_0 : i32, i32
  }
  func.func @transform_4(%arg0: i32, %arg1: i32) -> (i32, i32) {
    %c0_i32 = arith.constant 0 : i32
    %c0_i32_0 = arith.constant 0 : i32
    %c0_i32_1 = arith.constant 0 : i32
    return %c0_i32, %c0_i32_0 : i32, i32
  }
  func.func @transform_5(%arg0: i32, %arg1: i32) -> (i32, i32) {
    %c0_i32 = arith.constant 0 : i32
    %c0_i32_0 = arith.constant 0 : i32
    %c0_i32_1 = arith.constant 0 : i32
    return %c0_i32, %c0_i32_0 : i32, i32
  }
  func.func @transform_6(%arg0: i32, %arg1: i32) -> (i32, i32, i32, i32) {
    %c0_i32 = arith.constant 0 : i32
    %c0_i32_0 = arith.constant 0 : i32
    %c0_i32_1 = arith.constant 0 : i32
    %c0_i32_2 = arith.constant 0 : i32
    return %arg1, %c0_i32, %c0_i32_0, %c0_i32_1 : i32, i32, i32, i32
  }
  func.func @transform_7(%arg0: i32, %arg1: i32) -> (i32, i32, i32, i32) {
    %c0_i32 = arith.constant 0 : i32
    %c0_i32_0 = arith.constant 0 : i32
    %c0_i32_1 = arith.constant 0 : i32
    %c0_i32_2 = arith.constant 0 : i32
    return %arg1, %c0_i32, %c0_i32_0, %c0_i32_1 : i32, i32, i32, i32
  }
  func.func @transform_8(%arg0: i32, %arg1: i32) -> (i32, i32, i32, i32) {
    %c0_i32 = arith.constant 0 : i32
    %c0_i32_0 = arith.constant 0 : i32
    %c0_i32_1 = arith.constant 0 : i32
    %c0_i32_2 = arith.constant 0 : i32
    return %arg1, %c0_i32, %c0_i32_0, %c0_i32_1 : i32, i32, i32, i32
  }
  func.func @transform_9(%arg0: i32, %arg1: i32) -> (i32, i32, i32, i32) {
    %c0_i32 = arith.constant 0 : i32
    %c0_i32_0 = arith.constant 0 : i32
    %c0_i32_1 = arith.constant 0 : i32
    %c0_i32_2 = arith.constant 0 : i32
    return %arg1, %c0_i32, %c0_i32_0, %c0_i32_1 : i32, i32, i32, i32
  }
  func.func @transform_10(%arg0: i32, %arg1: i32) -> (i32, i32, i32, i32) {
    %c0_i32 = arith.constant 0 : i32
    %c0_i32_0 = arith.constant 0 : i32
    %c0_i32_1 = arith.constant 0 : i32
    %c0_i32_2 = arith.constant 0 : i32
    return %arg1, %c0_i32, %c0_i32_0, %c0_i32_1 : i32, i32, i32, i32
  }
  func.func @transform_11(%arg0: i32, %arg1: i32) -> (i32, i32, i32, i32) {
    %c0_i32 = arith.constant 0 : i32
    %c0_i32_0 = arith.constant 0 : i32
    %c0_i32_1 = arith.constant 0 : i32
    %c0_i32_2 = arith.constant 0 : i32
    return %arg1, %c0_i32, %c0_i32_0, %c0_i32_1 : i32, i32, i32, i32
  }
  func.func @transform_12(%arg0: i32, %arg1: i32) -> (i32, i32, i32, i32) {
    %c0_i32 = arith.constant 0 : i32
    %c0_i32_0 = arith.constant 0 : i32
    %c0_i32_1 = arith.constant 0 : i32
    %c0_i32_2 = arith.constant 0 : i32
    return %arg1, %c0_i32, %c0_i32_0, %c0_i32_1 : i32, i32, i32, i32
  }
  func.func @transform_13(%arg0: i32, %arg1: i32) -> (i32, i32, i32) {
    %c0_i32 = arith.constant 0 : i32
    %c0_i32_0 = arith.constant 0 : i32
    %c0_i32_1 = arith.constant 0 : i32
    return %arg1, %c0_i32, %c0_i32_0 : i32, i32, i32
  }
  func.func @transform_14(%arg0: i32, %arg1: i32) -> (i32, i32, i32) {
    %c0_i32 = arith.constant 0 : i32
    %c0_i32_0 = arith.constant 0 : i32
    %c0_i32_1 = arith.constant 0 : i32
    return %arg1, %c0_i32, %c0_i32_0 : i32, i32, i32
  }
  func.func @transform_15(%arg0: i32, %arg1: i32) -> (i32, i32, i32) {
    %c0_i32 = arith.constant 0 : i32
    %c0_i32_0 = arith.constant 0 : i32
    %c0_i32_1 = arith.constant 0 : i32
    return %arg1, %c0_i32, %c0_i32_0 : i32, i32, i32
  }
  func.func @transform_16(%arg0: i32, %arg1: i32) -> (i32, i32, i32) {
    %c0_i32 = arith.constant 0 : i32
    %c0_i32_0 = arith.constant 0 : i32
    %c0_i32_1 = arith.constant 0 : i32
    return %arg1, %c0_i32, %c0_i32_0 : i32, i32, i32
  }
  func.func @transform_17(%arg0: i32, %arg1: i32) -> (i32, i32, i32) {
    %c0_i32 = arith.constant 0 : i32
    %c0_i32_0 = arith.constant 0 : i32
    %c0_i32_1 = arith.constant 0 : i32
    return %arg1, %c0_i32, %c0_i32_0 : i32, i32, i32
  }
  func.func @transform_18(%arg0: i32, %arg1: i32) -> (i32, i32, i32) {
    %c0_i32 = arith.constant 0 : i32
    %c0_i32_0 = arith.constant 0 : i32
    %c0_i32_1 = arith.constant 0 : i32
    return %arg1, %c0_i32, %c0_i32_0 : i32, i32, i32
  }
  func.func @transform_19(%arg0: i32, %arg1: i32) -> (i32, i32, i32) {
    %c0_i32 = arith.constant 0 : i32
    %c0_i32_0 = arith.constant 0 : i32
    %c0_i32_1 = arith.constant 0 : i32
    return %arg1, %c0_i32, %c0_i32_0 : i32, i32, i32
  }
  func.func @transform_20(%arg0: i32, %arg1: i32) -> (i32, i32, i32) {
    %c0_i32 = arith.constant 0 : i32
    %c0_i32_0 = arith.constant 0 : i32
    %c0_i32_1 = arith.constant 0 : i32
    return %arg1, %c0_i32, %c0_i32_0 : i32, i32, i32
  }
  func.func @transform_21(%arg0: i32, %arg1: i32) -> (i32, i32, i32) {
    %c0_i32 = arith.constant 0 : i32
    %c0_i32_0 = arith.constant 0 : i32
    %c0_i32_1 = arith.constant 0 : i32
    return %arg1, %c0_i32, %c0_i32_0 : i32, i32, i32
  }
  func.func @transform_22(%arg0: i32, %arg1: i32) -> (i32, i32) {
    %c0_i32 = arith.constant 0 : i32
    %c0_i32_0 = arith.constant 0 : i32
    %c0_i32_1 = arith.constant 0 : i32
    return %c0_i32, %c0_i32_0 : i32, i32
  }
  func.func @transform_23(%arg0: i32, %arg1: i32) -> (i32, i32) {
    %c0_i32 = arith.constant 0 : i32
    %c0_i32_0 = arith.constant 0 : i32
    %c0_i32_1 = arith.constant 0 : i32
    return %c0_i32, %c0_i32_0 : i32, i32
  }
  func.func @transform_24(%arg0: i32, %arg1: i32) -> (i32, i32) {
    %c0_i32 = arith.constant 0 : i32
    %c0_i32_0 = arith.constant 0 : i32
    %c0_i32_1 = arith.constant 0 : i32
    return %c0_i32, %c0_i32_0 : i32, i32
  }
  func.func @transform_25(%arg0: i32, %arg1: i32) -> (i32, i32) {
    %c0_i32 = arith.constant 0 : i32
    %c0_i32_0 = arith.constant 0 : i32
    %c0_i32_1 = arith.constant 0 : i32
    return %c0_i32, %c0_i32_0 : i32, i32
  }
  func.func @transform_26(%arg0: i32, %arg1: i32) -> (i32, i32) {
    %c0_i32 = arith.constant 0 : i32
    %c0_i32_0 = arith.constant 0 : i32
    %c0_i32_1 = arith.constant 0 : i32
    return %c0_i32, %c0_i32_0 : i32, i32
  }
  func.func @transform_27(%arg0: i32, %arg1: i32) -> (i32, i32) {
    %c0_i32 = arith.constant 0 : i32
    %c0_i32_0 = arith.constant 0 : i32
    %c0_i32_1 = arith.constant 0 : i32
    return %c0_i32, %c0_i32_0 : i32, i32
  }
  func.func @transform_28(%arg0: i32, %arg1: i32) -> (i32, i32) {
    %c0_i32 = arith.constant 0 : i32
    %c0_i32_0 = arith.constant 0 : i32
    return %arg0, %c0_i32 : i32, i32
  }
}

</mosaic_0001>

<llo_original>
// kernel: tpu_custom_call.1
$region0: #{tpu_custom_call.1}
  #allocation0 [shape = 'u32[]', space=smem, size = 0x4, offset = 0x4, fixed_abs, tag = 'smem constant byte address 0x4 - core index']
  #allocation1 [shape = 'u32[144,128]{1,0:T(1,128)}', space=vmem, size = 0x12000, scoped, tag = 'internal scratch']
  #allocation2 [shape = 'bf16[16,32]{1,0:T(8,128)(2,1)}', space=vmem, size = 0x1000, scoped, tag = 'scratch operand']
  %s0 = inlined_call_operand.vmem [shape: f32[2,16], index: 0, kind: input, shape index: {}]
  %s1 = inlined_call_operand.vmem [shape: bf16[16,32], index: 1, kind: input, shape index: {}]
  %s2 = inlined_call_operand.vmem [shape: bf16[16,16], index: 2, kind: input, shape index: {}]
  %s3 = inlined_call_operand.vmem [shape: f32[1,16], index: 3, kind: input, shape index: {}]
  %s4 = inlined_call_operand.vmem [shape: bf16[16,32], index: 4, kind: input, shape index: {}]
  %s5 = inlined_call_operand.vmem [shape: f32[1,32], index: 5, kind: input, shape index: {}]
  %s6 = inlined_call_operand.vmem [shape: bf16[2,4,32,8], index: 6, kind: input, shape index: {}]
  %s7 = inlined_call_operand.vmem [shape: bf16[2,4,32,8], index: 7, kind: input, shape index: {}]
  %s8 = inlined_call_operand.vmem [shape: bf16[2,4,32,8], index: 8, kind: input, shape index: {}]
  %s9 = inlined_call_operand.vmem [shape: f32[2,4,1,8], index: 9, kind: input, shape index: {}]
  %s10 = inlined_call_operand.vmem [shape: f32[2,4,1,8], index: 10, kind: input, shape index: {}]
  %s11 = inlined_call_operand.vmem [shape: f32[2,4,1,8], index: 11, kind: input, shape index: {}]
  %s12 = inlined_call_operand.vmem [shape: bf16[2,4,8,32], index: 12, kind: input, shape index: {}]
  %s13 = inlined_call_operand.vmem [shape: f32[2,1,32], index: 13, kind: input, shape index: {}]
  %s14 = inlined_call_operand.vmem [shape: f32[2,1,32], index: 14, kind: input, shape index: {}]
  %s15 = inlined_call_operand.vmem [shape: f32[2,1,32], index: 15, kind: input, shape index: {}]
  %s16 = inlined_call_operand.vmem [shape: bf16[2,32,64], index: 16, kind: input, shape index: {}]
  %s17 = inlined_call_operand.vmem [shape: f32[2,1,64], index: 17, kind: input, shape index: {}]
  %s18 = inlined_call_operand.vmem [shape: bf16[2,64,32], index: 18, kind: input, shape index: {}]
  %s19 = inlined_call_operand.vmem [shape: f32[2,1,32], index: 19, kind: input, shape index: {}]
  %s20 = inlined_call_operand.vmem [shape: f32[2,1,32], index: 20, kind: input, shape index: {}]
  %s21 = inlined_call_operand.vmem [shape: f32[2,1,32], index: 21, kind: input, shape index: {}]
  %s22 = inlined_call_operand.vmem [shape: bf16[32,16], index: 22, kind: input, shape index: {}]
  %s23 = inlined_call_operand.vmem [shape: f32[1,16], index: 23, kind: input, shape index: {}]
  %s24 = inlined_call_operand.vmem [shape: bf16[16,16], index: 24, kind: input, shape index: {}]
  %s25 = inlined_call_operand.vmem [shape: f32[1,16], index: 25, kind: input, shape index: {}]
  %s26 = inlined_call_operand.vmem [shape: bf16[16,128], index: 26, kind: input, shape index: {}]
  %s27 = inlined_call_operand.vmem [shape: f32[1,128], index: 27, kind: input, shape index: {}]
  %s28 = inlined_call_operand.hbm [shape: f32[2,128], index: 28, kind: output, shape index: {}]
  %s29 = sld [smem:[#allocation0]]
  $region153: #{tpu_custom_call.1} parent=0
    _
  %s31 = ssub.s32 1, %s29
  %s32 = scalar_select 0, %s31, %s29
  $region1: #{tpu_custom_call.1} parent=0
    #allocation3 [shape = 'u8[1024]{0}', space=vmem, size = 0x400, scoped, tag = 'output window, operand 0, single buffered']
    #allocation4 [shape = 's32[2]{0}', space=sflag, size = 0x8, scoped, tag = 'scoped memory for tpu_custom_call.1']
    %33 = vsyncpa [#allocation4], 0
    loop: start=0, step=1, limit=4
    $region2: #{tpu_custom_call.1} parent=1 // loop_pre_header
      _
    $region3: #{tpu_custom_call.1} parent=1 // loop_header
      %s35 = sphi 0, %s39
      %p36 = scmp.ge.s32.totalorder %s35, 4
      %s42 = sphi 0, %s54
      %s43 = sphi 0, %s50
      %s44 = sphi 0, %s42
      %s45 = sphi 0, %s43
      %s46 = sphi 0, %s44
      %s47 = sphi 0, %s45
      %s57 = sphi 0, %s59
      %s60 = sphi 0, %s57
      %s61 = sphi 0, %s60
      %s77 = sphi 0, %s61
      %s83 = sphi 0, %s85
      %s86 = sphi 0, %s83
      %s87 = sphi 0, %s86
      %s103 = sphi 0, %s87
      %s107 = sphi 0, %s107
      %s109 = sphi 0, %s107
      %s110 = sphi 0, %s109
      %s124 = sphi 0, %s110
      %s128 = sphi 0, %s128
      %s130 = sphi 0, %s128
      %s131 = sphi 0, %s130
      %s145 = sphi 0, %s131
      %s149 = sphi 0, %s149
      %s151 = sphi 0, %s149
      %s152 = sphi 0, %s151
      %s166 = sphi 0, %s152
      %s170 = sphi 0, %s170
      %s172 = sphi 0, %s170
      %s173 = sphi 0, %s172
      %s187 = sphi 0, %s173
      %s193 = sphi 0, %s195
      %s196 = sphi 0, %s193
      %s197 = sphi 0, %s196
      %s213 = sphi 0, %s197
      %s219 = sphi 0, %s221
      %s222 = sphi 0, %s219
      %s223 = sphi 0, %s222
      %s239 = sphi 0, %s223
      %s245 = sphi 0, %s247
      %s248 = sphi 0, %s245
      %s249 = sphi 0, %s248
      %s265 = sphi 0, %s249
      %s271 = sphi 0, %s273
      %s274 = sphi 0, %s271
      %s275 = sphi 0, %s274
      %s291 = sphi 0, %s275
      %s297 = sphi 0, %s299
      %s300 = sphi 0, %s297
      %s301 = sphi 0, %s300
      %s317 = sphi 0, %s301
      %s323 = sphi 0, %s325
      %s326 = sphi 0, %s323
      %s327 = sphi 0, %s326
      %s343 = sphi 0, %s327
      %s349 = sphi 0, %s351
      %s352 = sphi 0, %s349
      %s353 = sphi 0, %s352
      %s369 = sphi 0, %s353
      %s375 = sphi 0, %s377
      %s378 = sphi 0, %s375
      %s379 = sphi 0, %s378
      %s395 = sphi 0, %s379
      %s401 = sphi 0, %s403
      %s404 = sphi 0, %s401
      %s405 = sphi 0, %s404
      %s421 = sphi 0, %s405
      %s427 = sphi 0, %s429
      %s430 = sphi 0, %s427
      %s431 = sphi 0, %s430
      %s447 = sphi 0, %s431
      %s453 = sphi 0, %s455
      %s456 = sphi 0, %s453
      %s457 = sphi 0, %s456
      %s473 = sphi 0, %s457
      %s479 = sphi 0, %s481
      %s482 = sphi 0, %s479
      %s483 = sphi 0, %s482
      %s499 = sphi 0, %s483
      %s505 = sphi 0, %s507
      %s508 = sphi 0, %s505
      %s509 = sphi 0, %s508
      %s525 = sphi 0, %s509
      %s531 = sphi 0, %s533
      %s534 = sphi 0, %s531
      %s535 = sphi 0, %s534
      %s551 = sphi 0, %s535
      %s557 = sphi 0, %s559
      %s560 = sphi 0, %s557
      %s561 = sphi 0, %s560
      %s577 = sphi 0, %s561
      %s583 = sphi 0, %s585
      %s586 = sphi 0, %s583
      %s587 = sphi 0, %s586
      %s603 = sphi 0, %s587
      %s607 = sphi 0, %s607
      %s609 = sphi 0, %s607
      %s610 = sphi 0, %s609
      %s624 = sphi 0, %s610
      %s628 = sphi 0, %s628
      %s630 = sphi 0, %s628
      %s631 = sphi 0, %s630
      %s645 = sphi 0, %s631
      %s649 = sphi 0, %s649
      %s651 = sphi 0, %s649
      %s652 = sphi 0, %s651
      %s666 = sphi 0, %s652
      %s670 = sphi 0, %s670
      %s672 = sphi 0, %s670
      %s673 = sphi 0, %s672
      %s687 = sphi 0, %s673
      %s691 = sphi 0, %s691
      %s693 = sphi 0, %s691
      %s694 = sphi 0, %s693
      %s708 = sphi 0, %s694
      %s712 = sphi 0, %s712
      %s714 = sphi 0, %s712
      %s715 = sphi 0, %s714
      %s729 = sphi 0, %s715
      %s735 = sphi 0, %s737
      %s738 = sphi 0, %s735
      %s739 = sphi 0, %s738
      %s755 = sphi 0, %s739
    $region4: #{tpu_custom_call.1} parent=1 // loop_header_branch
      %38 = sbr.rel (%p36) target = $region8
    $region5: #{tpu_custom_call.1} parent=1 // loop_body
      %s40 = ssub.s32 %s35, 1
      %s41 = ssub.s32 %s35, 2
      %s48 = sadd.s32 1, %s43
      %p49 = scmp.ge.s32.totalorder %s48, 2
      %s50 = scalar_select %p49, 0, %s48
      %s51 = sadd.s32 1, %s42
      %s52 = scalar_select %p49, %s51, %s42
      %p53 = scmp.ge.s32.totalorder %s52, 1
      %s54 = scalar_select %p53, 0, %s52
      %s55 = ssub.s32 %s42, %s54
      %p56 = scmp.eq.s32.totalorder %s55, 0
      %s58 = sadd.s32 %s57, 1
      %s59 = scalar_select %p56, %s57, %s58
      %p62 = pneg %p56
      %p63 = scmp.eq.s32.totalorder %s35, 1
      %p64 = por %p62, %p63
      %p65 = scmp.ne.s32.totalorder %s57, %s60
      %p66 = scmp.eq.s32.totalorder %s35, 0
      %p67 = por %p65, %p66
      %p68 = scmp.ne.s32.totalorder %s57, %s60
      %p69 = scmp.eq.s32.totalorder %s40, 1
      %p70 = por %p68, %p69
      %p71 = scmp.ne.s32.totalorder %s60, %s61
      %p72 = scmp.eq.s32.totalorder %s40, 0
      %p73 = por %p71, %p72
      %p74 = scmp.ne.s32.totalorder %s60, %s61
      %p75 = scmp.eq.s32.totalorder %s41, 1
      %p76 = por %p74, %p75
      %p78 = scmp.ne.s32.totalorder %s61, %s77
      %p79 = scmp.eq.s32.totalorder %s41, 0
      %p80 = por %p78, %p79
      %s81 = ssub.s32 %s42, %s54
      %p82 = scmp.eq.s32.totalorder %s81, 0
      %s84 = sadd.s32 %s83, 1
      %s85 = scalar_select %p82, %s83, %s84
      %p88 = pneg %p82
      %p89 = scmp.eq.s32.totalorder %s35, 1
      %p90 = por %p88, %p89
      %p91 = scmp.ne.s32.totalorder %s83, %s86
      %p92 = scmp.eq.s32.totalorder %s35, 0
      %p93 = por %p91, %p92
      %p94 = scmp.ne.s32.totalorder %s83, %s86
      %p95 = scmp.eq.s32.totalorder %s40, 1
      %p96 = por %p94, %p95
      %p97 = scmp.ne.s32.totalorder %s86, %s87
      %p98 = scmp.eq.s32.totalorder %s40, 0
      %p99 = por %p97, %p98
      %p100 = scmp.ne.s32.totalorder %s86, %s87
      %p101 = scmp.eq.s32.totalorder %s41, 1
      %p102 = por %p100, %p101
      %p104 = scmp.ne.s32.totalorder %s87, %s103
      %p105 = scmp.eq.s32.totalorder %s41, 0
      %p106 = por %p104, %p105
      %s108 = sadd.s32 %s107, 1
      %p111 = scmp.eq.s32.totalorder %s35, 1
      %p112 = scmp.ne.s32.totalorder %s107, %s109
      %p113 = scmp.eq.s32.totalorder %s35, 0
      %p114 = por %p112, %p113
      %p115 = scmp.ne.s32.totalorder %s107, %s109
      %p116 = scmp.eq.s32.totalorder %s40, 1
      %p117 = por %p115, %p116
      %p118 = scmp.ne.s32.totalorder %s109, %s110
      %p119 = scmp.eq.s32.totalorder %s40, 0
      %p120 = por %p118, %p119
      %p121 = scmp.ne.s32.totalorder %s109, %s110
      %p122 = scmp.eq.s32.totalorder %s41, 1
      %p123 = por %p121, %p122
      %p125 = scmp.ne.s32.totalorder %s110, %s124
      %p126 = scmp.eq.s32.totalorder %s41, 0
      %p127 = por %p125, %p126
      %s129 = sadd.s32 %s128, 1
      %p132 = scmp.eq.s32.totalorder %s35, 1
      %p133 = scmp.ne.s32.totalorder %s128, %s130
      %p134 = scmp.eq.s32.totalorder %s35, 0
      %p135 = por %p133, %p134
      %p136 = scmp.ne.s32.totalorder %s128, %s130
      %p137 = scmp.eq.s32.totalorder %s40, 1
      %p138 = por %p136, %p137
      %p139 = scmp.ne.s32.totalorder %s130, %s131
      %p140 = scmp.eq.s32.totalorder %s40, 0
      %p141 = por %p139, %p140
      %p142 = scmp.ne.s32.totalorder %s130, %s131
      %p143 = scmp.eq.s32.totalorder %s41, 1
      %p144 = por %p142, %p143
      %p146 = scmp.ne.s32.totalorder %s131, %s145
      %p147 = scmp.eq.s32.totalorder %s41, 0
      %p148 = por %p146, %p147
      %s150 = sadd.s32 %s149, 1
      %p153 = scmp.eq.s32.totalorder %s35, 1
      %p154 = scmp.ne.s32.totalorder %s149, %s151
      %p155 = scmp.eq.s32.totalorder %s35, 0
      %p156 = por %p154, %p155
      %p157 = scmp.ne.s32.totalorder %s149, %s151
      %p158 = scmp.eq.s32.totalorder %s40, 1
      %p159 = por %p157, %p158
      %p160 = scmp.ne.s32.totalorder %s151, %s152
      %p161 = scmp.eq.s32.totalorder %s40, 0
      %p162 = por %p160, %p161
      %p163 = scmp.ne.s32.totalorder %s151, %s152
      %p164 = scmp.eq.s32.totalorder %s41, 1
      %p165 = por %p163, %p164
      %p167 = scmp.ne.s32.totalorder %s152, %s166
      %p168 = scmp.eq.s32.totalorder %s41, 0
      %p169 = por %p167, %p168
      %s171 = sadd.s32 %s170, 1
      %p174 = scmp.eq.s32.totalorder %s35, 1
      %p175 = scmp.ne.s32.totalorder %s170, %s172
      %p176 = scmp.eq.s32.totalorder %s35, 0
      %p177 = por %p175, %p176
      %p178 = scmp.ne.s32.totalorder %s170, %s172
      %p179 = scmp.eq.s32.totalorder %s40, 1
      %p180 = por %p178, %p179
      %p181 = scmp.ne.s32.totalorder %s172, %s173
      %p182 = scmp.eq.s32.totalorder %s40, 0
      %p183 = por %p181, %p182
      %p184 = scmp.ne.s32.totalorder %s172, %s173
      %p185 = scmp.eq.s32.totalorder %s41, 1
      %p186 = por %p184, %p185
      %p188 = scmp.ne.s32.totalorder %s173, %s187
      %p189 = scmp.eq.s32.totalorder %s41, 0
      %p190 = por %p188, %p189
      %s191 = ssub.s32 %s43, %s50
      %p192 = scmp.eq.s32.totalorder %s191, 0
      %s194 = sadd.s32 %s193, 1
      %s195 = scalar_select %p192, %s193, %s194
      %p198 = pneg %p192
      %p199 = scmp.eq.s32.totalorder %s35, 1
      %p200 = por %p198, %p199
      %p201 = scmp.ne.s32.totalorder %s193, %s196
      %p202 = scmp.eq.s32.totalorder %s35, 0
      %p203 = por %p201, %p202
      %p204 = scmp.ne.s32.totalorder %s193, %s196
      %p205 = scmp.eq.s32.totalorder %s40, 1
      %p206 = por %p204, %p205
      %p207 = scmp.ne.s32.totalorder %s196, %s197
      %p208 = scmp.eq.s32.totalorder %s40, 0
      %p209 = por %p207, %p208
      %p210 = scmp.ne.s32.totalorder %s196, %s197
      %p211 = scmp.eq.s32.totalorder %s41, 1
      %p212 = por %p210, %p211
      %p214 = scmp.ne.s32.totalorder %s197, %s213
      %p215 = scmp.eq.s32.totalorder %s41, 0
      %p216 = por %p214, %p215
      %s217 = ssub.s32 %s43, %s50
      %p218 = scmp.eq.s32.totalorder %s217, 0
      %s220 = sadd.s32 %s219, 1
      %s221 = scalar_select %p218, %s219, %s220
      %p224 = pneg %p218
      %p225 = scmp.eq.s32.totalorder %s35, 1
      %p226 = por %p224, %p225
      %p227 = scmp.ne.s32.totalorder %s219, %s222
      %p228 = scmp.eq.s32.totalorder %s35, 0
      %p229 = por %p227, %p228
      %p230 = scmp.ne.s32.totalorder %s219, %s222
      %p231 = scmp.eq.s32.totalorder %s40, 1
      %p232 = por %p230, %p231
      %p233 = scmp.ne.s32.totalorder %s222, %s223
      %p234 = scmp.eq.s32.totalorder %s40, 0
      %p235 = por %p233, %p234
      %p236 = scmp.ne.s32.totalorder %s222, %s223
      %p237 = scmp.eq.s32.totalorder %s41, 1
      %p238 = por %p236, %p237
      %p240 = scmp.ne.s32.totalorder %s223, %s239
      %p241 = scmp.eq.s32.totalorder %s41, 0
      %p242 = por %p240, %p241
      %s243 = ssub.s32 %s43, %s50
      %p244 = scmp.eq.s32.totalorder %s243, 0
      %s246 = sadd.s32 %s245, 1
      %s247 = scalar_select %p244, %s245, %s246
      %p250 = pneg %p244
      %p251 = scmp.eq.s32.totalorder %s35, 1
      %p252 = por %p250, %p251
      %p253 = scmp.ne.s32.totalorder %s245, %s248
      %p254 = scmp.eq.s32.totalorder %s35, 0
      %p255 = por %p253, %p254
      %p256 = scmp.ne.s32.totalorder %s245, %s248
      %p257 = scmp.eq.s32.totalorder %s40, 1
      %p258 = por %p256, %p257
      %p259 = scmp.ne.s32.totalorder %s248, %s249
      %p260 = scmp.eq.s32.totalorder %s40, 0
      %p261 = por %p259, %p260
      %p262 = scmp.ne.s32.totalorder %s248, %s249
      %p263 = scmp.eq.s32.totalorder %s41, 1
      %p264 = por %p262, %p263
      %p266 = scmp.ne.s32.totalorder %s249, %s265
      %p267 = scmp.eq.s32.totalorder %s41, 0
      %p268 = por %p266, %p267
      %s269 = ssub.s32 %s43, %s50
      %p270 = scmp.eq.s32.totalorder %s269, 0
      %s272 = sadd.s32 %s271, 1
      %s273 = scalar_select %p270, %s271, %s272
      %p276 = pneg %p270
      %p277 = scmp.eq.s32.totalorder %s35, 1
      %p278 = por %p276, %p277
      %p279 = scmp.ne.s32.totalorder %s271, %s274
      %p280 = scmp.eq.s32.totalorder %s35, 0
      %p281 = por %p279, %p280
      %p282 = scmp.ne.s32.totalorder %s271, %s274
      %p283 = scmp.eq.s32.totalorder %s40, 1
      %p284 = por %p282, %p283
      %p285 = scmp.ne.s32.totalorder %s274, %s275
      %p286 = scmp.eq.s32.totalorder %s40, 0
      %p287 = por %p285, %p286
      %p288 = scmp.ne.s32.totalorder %s274, %s275
      %p289 = scmp.eq.s32.totalorder %s41, 1
      %p290 = por %p288, %p289
      %p292 = scmp.ne.s32.totalorder %s275, %s291
      %p293 = scmp.eq.s32.totalorder %s41, 0
      %p294 = por %p292, %p293
      %s295 = ssub.s32 %s43, %s50
      %p296 = scmp.eq.s32.totalorder %s295, 0
      %s298 = sadd.s32 %s297, 1
      %s299 = scalar_select %p296, %s297, %s298
      %p302 = pneg %p296
      %p303 = scmp.eq.s32.totalorder %s35, 1
      %p304 = por %p302, %p303
      %p305 = scmp.ne.s32.totalorder %s297, %s300
      %p306 = scmp.eq.s32.totalorder %s35, 0
      %p307 = por %p305, %p306
      %p308 = scmp.ne.s32.totalorder %s297, %s300
      %p309 = scmp.eq.s32.totalorder %s40, 1
      %p310 = por %p308, %p309
      %p311 = scmp.ne.s32.totalorder %s300, %s301
      %p312 = scmp.eq.s32.totalorder %s40, 0
      %p313 = por %p311, %p312
      %p314 = scmp.ne.s32.totalorder %s300, %s301
      %p315 = scmp.eq.s32.totalorder %s41, 1
      %p316 = por %p314, %p315
      %p318 = scmp.ne.s32.totalorder %s301, %s317
      %p319 = scmp.eq.s32.totalorder %s41, 0
      %p320 = por %p318, %p319
      %s321 = ssub.s32 %s43, %s50
      %p322 = scmp.eq.s32.totalorder %s321, 0
      %s324 = sadd.s32 %s323, 1
      %s325 = scalar_select %p322, %s323, %s324
      %p328 = pneg %p322
      %p329 = scmp.eq.s32.totalorder %s35, 1
      %p330 = por %p328, %p329
      %p331 = scmp.ne.s32.totalorder %s323, %s326
      %p332 = scmp.eq.s32.totalorder %s35, 0
      %p333 = por %p331, %p332
      %p334 = scmp.ne.s32.totalorder %s323, %s326
      %p335 = scmp.eq.s32.totalorder %s40, 1
      %p336 = por %p334, %p335
      %p337 = scmp.ne.s32.totalorder %s326, %s327
      %p338 = scmp.eq.s32.totalorder %s40, 0
      %p339 = por %p337, %p338
      %p340 = scmp.ne.s32.totalorder %s326, %s327
      %p341 = scmp.eq.s32.totalorder %s41, 1
      %p342 = por %p340, %p341
      %p344 = scmp.ne.s32.totalorder %s327, %s343
      %p345 = scmp.eq.s32.totalorder %s41, 0
      %p346 = por %p344, %p345
      %s347 = ssub.s32 %s43, %s50
      %p348 = scmp.eq.s32.totalorder %s347, 0
      %s350 = sadd.s32 %s349, 1
      %s351 = scalar_select %p348, %s349, %s350
      %p354 = pneg %p348
      %p355 = scmp.eq.s32.totalorder %s35, 1
      %p356 = por %p354, %p355
      %p357 = scmp.ne.s32.totalorder %s349, %s352
      %p358 = scmp.eq.s32.totalorder %s35, 0
      %p359 = por %p357, %p358
      %p360 = scmp.ne.s32.totalorder %s349, %s352
      %p361 = scmp.eq.s32.totalorder %s40, 1
      %p362 = por %p360, %p361
      %p363 = scmp.ne.s32.totalorder %s352, %s353
      %p364 = scmp.eq.s32.totalorder %s40, 0
      %p365 = por %p363, %p364
      %p366 = scmp.ne.s32.totalorder %s352, %s353
      %p367 = scmp.eq.s32.totalorder %s41, 1
      %p368 = por %p366, %p367
      %p370 = scmp.ne.s32.totalorder %s353, %s369
      %p371 = scmp.eq.s32.totalorder %s41, 0
      %p372 = por %p370, %p371
      %s373 = ssub.s32 %s43, %s50
      %p374 = scmp.eq.s32.totalorder %s373, 0
      %s376 = sadd.s32 %s375, 1
      %s377 = scalar_select %p374, %s375, %s376
      %p380 = pneg %p374
      %p381 = scmp.eq.s32.totalorder %s35, 1
      %p382 = por %p380, %p381
      %p383 = scmp.ne.s32.totalorder %s375, %s378
      %p384 = scmp.eq.s32.totalorder %s35, 0
      %p385 = por %p383, %p384
      %p386 = scmp.ne.s32.totalorder %s375, %s378
      %p387 = scmp.eq.s32.totalorder %s40, 1
      %p388 = por %p386, %p387
      %p389 = scmp.ne.s32.totalorder %s378, %s379
      %p390 = scmp.eq.s32.totalorder %s40, 0
      %p391 = por %p389, %p390
      %p392 = scmp.ne.s32.totalorder %s378, %s379
      %p393 = scmp.eq.s32.totalorder %s41, 1
      %p394 = por %p392, %p393
      %p396 = scmp.ne.s32.totalorder %s379, %s395
      %p397 = scmp.eq.s32.totalorder %s41, 0
      %p398 = por %p396, %p397
      %s399 = ssub.s32 %s43, %s50
      %p400 = scmp.eq.s32.totalorder %s399, 0
      %s402 = sadd.s32 %s401, 1
      %s403 = scalar_select %p400, %s401, %s402
      %p406 = pneg %p400
      %p407 = scmp.eq.s32.totalorder %s35, 1
      %p408 = por %p406, %p407
      %p409 = scmp.ne.s32.totalorder %s401, %s404
      %p410 = scmp.eq.s32.totalorder %s35, 0
      %p411 = por %p409, %p410
      %p412 = scmp.ne.s32.totalorder %s401, %s404
      %p413 = scmp.eq.s32.totalorder %s40, 1
      %p414 = por %p412, %p413
      %p415 = scmp.ne.s32.totalorder %s404, %s405
      %p416 = scmp.eq.s32.totalorder %s40, 0
      %p417 = por %p415, %p416
      %p418 = scmp.ne.s32.totalorder %s404, %s405
      %p419 = scmp.eq.s32.totalorder %s41, 1
      %p420 = por %p418, %p419
      %p422 = scmp.ne.s32.totalorder %s405, %s421
      %p423 = scmp.eq.s32.totalorder %s41, 0
      %p424 = por %p422, %p423
      %s425 = ssub.s32 %s43, %s50
      %p426 = scmp.eq.s32.totalorder %s425, 0
      %s428 = sadd.s32 %s427, 1
      %s429 = scalar_select %p426, %s427, %s428
      %p432 = pneg %p426
      %p433 = scmp.eq.s32.totalorder %s35, 1
      %p434 = por %p432, %p433
      %p435 = scmp.ne.s32.totalorder %s427, %s430
      %p436 = scmp.eq.s32.totalorder %s35, 0
      %p437 = por %p435, %p436
      %p438 = scmp.ne.s32.totalorder %s427, %s430
      %p439 = scmp.eq.s32.totalorder %s40, 1
      %p440 = por %p438, %p439
      %p441 = scmp.ne.s32.totalorder %s430, %s431
      %p442 = scmp.eq.s32.totalorder %s40, 0
      %p443 = por %p441, %p442
      %p444 = scmp.ne.s32.totalorder %s430, %s431
      %p445 = scmp.eq.s32.totalorder %s41, 1
      %p446 = por %p444, %p445
      %p448 = scmp.ne.s32.totalorder %s431, %s447
      %p449 = scmp.eq.s32.totalorder %s41, 0
      %p450 = por %p448, %p449
      %s451 = ssub.s32 %s43, %s50
      %p452 = scmp.eq.s32.totalorder %s451, 0
      %s454 = sadd.s32 %s453, 1
      %s455 = scalar_select %p452, %s453, %s454
      %p458 = pneg %p452
      %p459 = scmp.eq.s32.totalorder %s35, 1
      %p460 = por %p458, %p459
      %p461 = scmp.ne.s32.totalorder %s453, %s456
      %p462 = scmp.eq.s32.totalorder %s35, 0
      %p463 = por %p461, %p462
      %p464 = scmp.ne.s32.totalorder %s453, %s456
      %p465 = scmp.eq.s32.totalorder %s40, 1
      %p466 = por %p464, %p465
      %p467 = scmp.ne.s32.totalorder %s456, %s457
      %p468 = scmp.eq.s32.totalorder %s40, 0
      %p469 = por %p467, %p468
      %p470 = scmp.ne.s32.totalorder %s456, %s457
      %p471 = scmp.eq.s32.totalorder %s41, 1
      %p472 = por %p470, %p471
      %p474 = scmp.ne.s32.totalorder %s457, %s473
      %p475 = scmp.eq.s32.totalorder %s41, 0
      %p476 = por %p474, %p475
      %s477 = ssub.s32 %s43, %s50
      %p478 = scmp.eq.s32.totalorder %s477, 0
      %s480 = sadd.s32 %s479, 1
      %s481 = scalar_select %p478, %s479, %s480
      %p484 = pneg %p478
      %p485 = scmp.eq.s32.totalorder %s35, 1
      %p486 = por %p484, %p485
      %p487 = scmp.ne.s32.totalorder %s479, %s482
      %p488 = scmp.eq.s32.totalorder %s35, 0
      %p489 = por %p487, %p488
      %p490 = scmp.ne.s32.totalorder %s479, %s482
      %p491 = scmp.eq.s32.totalorder %s40, 1
      %p492 = por %p490, %p491
      %p493 = scmp.ne.s32.totalorder %s482, %s483
      %p494 = scmp.eq.s32.totalorder %s40, 0
      %p495 = por %p493, %p494
      %p496 = scmp.ne.s32.totalorder %s482, %s483
      %p497 = scmp.eq.s32.totalorder %s41, 1
      %p498 = por %p496, %p497
      %p500 = scmp.ne.s32.totalorder %s483, %s499
      %p501 = scmp.eq.s32.totalorder %s41, 0
      %p502 = por %p500, %p501
      %s503 = ssub.s32 %s43, %s50
      %p504 = scmp.eq.s32.totalorder %s503, 0
      %s506 = sadd.s32 %s505, 1
      %s507 = scalar_select %p504, %s505, %s506
      %p510 = pneg %p504
      %p511 = scmp.eq.s32.totalorder %s35, 1
      %p512 = por %p510, %p511
      %p513 = scmp.ne.s32.totalorder %s505, %s508
      %p514 = scmp.eq.s32.totalorder %s35, 0
      %p515 = por %p513, %p514
      %p516 = scmp.ne.s32.totalorder %s505, %s508
      %p517 = scmp.eq.s32.totalorder %s40, 1
      %p518 = por %p516, %p517
      %p519 = scmp.ne.s32.totalorder %s508, %s509
      %p520 = scmp.eq.s32.totalorder %s40, 0
      %p521 = por %p519, %p520
      %p522 = scmp.ne.s32.totalorder %s508, %s509
      %p523 = scmp.eq.s32.totalorder %s41, 1
      %p524 = por %p522, %p523
      %p526 = scmp.ne.s32.totalorder %s509, %s525
      %p527 = scmp.eq.s32.totalorder %s41, 0
      %p528 = por %p526, %p527
      %s529 = ssub.s32 %s43, %s50
      %p530 = scmp.eq.s32.totalorder %s529, 0
      %s532 = sadd.s32 %s531, 1
      %s533 = scalar_select %p530, %s531, %s532
      %p536 = pneg %p530
      %p537 = scmp.eq.s32.totalorder %s35, 1
      %p538 = por %p536, %p537
      %p539 = scmp.ne.s32.totalorder %s531, %s534
      %p540 = scmp.eq.s32.totalorder %s35, 0
      %p541 = por %p539, %p540
      %p542 = scmp.ne.s32.totalorder %s531, %s534
      %p543 = scmp.eq.s32.totalorder %s40, 1
      %p544 = por %p542, %p543
      %p545 = scmp.ne.s32.totalorder %s534, %s535
      %p546 = scmp.eq.s32.totalorder %s40, 0
      %p547 = por %p545, %p546
      %p548 = scmp.ne.s32.totalorder %s534, %s535
      %p549 = scmp.eq.s32.totalorder %s41, 1
      %p550 = por %p548, %p549
      %p552 = scmp.ne.s32.totalorder %s535, %s551
      %p553 = scmp.eq.s32.totalorder %s41, 0
      %p554 = por %p552, %p553
      %s555 = ssub.s32 %s43, %s50
      %p556 = scmp.eq.s32.totalorder %s555, 0
      %s558 = sadd.s32 %s557, 1
      %s559 = scalar_select %p556, %s557, %s558
      %p562 = pneg %p556
      %p563 = scmp.eq.s32.totalorder %s35, 1
      %p564 = por %p562, %p563
      %p565 = scmp.ne.s32.totalorder %s557, %s560
      %p566 = scmp.eq.s32.totalorder %s35, 0
      %p567 = por %p565, %p566
      %p568 = scmp.ne.s32.totalorder %s557, %s560
      %p569 = scmp.eq.s32.totalorder %s40, 1
      %p570 = por %p568, %p569
      %p571 = scmp.ne.s32.totalorder %s560, %s561
      %p572 = scmp.eq.s32.totalorder %s40, 0
      %p573 = por %p571, %p572
      %p574 = scmp.ne.s32.totalorder %s560, %s561
      %p575 = scmp.eq.s32.totalorder %s41, 1
      %p576 = por %p574, %p575
      %p578 = scmp.ne.s32.totalorder %s561, %s577
      %p579 = scmp.eq.s32.totalorder %s41, 0
      %p580 = por %p578, %p579
      %s581 = ssub.s32 %s43, %s50
      %p582 = scmp.eq.s32.totalorder %s581, 0
      %s584 = sadd.s32 %s583, 1
      %s585 = scalar_select %p582, %s583, %s584
      %p588 = pneg %p582
      %p589 = scmp.eq.s32.totalorder %s35, 1
      %p590 = por %p588, %p589
      %p591 = scmp.ne.s32.totalorder %s583, %s586
      %p592 = scmp.eq.s32.totalorder %s35, 0
      %p593 = por %p591, %p592
      %p594 = scmp.ne.s32.totalorder %s583, %s586
      %p595 = scmp.eq.s32.totalorder %s40, 1
      %p596 = por %p594, %p595
      %p597 = scmp.ne.s32.totalorder %s586, %s587
      %p598 = scmp.eq.s32.totalorder %s40, 0
      %p599 = por %p597, %p598
      %p600 = scmp.ne.s32.totalorder %s586, %s587
      %p601 = scmp.eq.s32.totalorder %s41, 1
      %p602 = por %p600, %p601
      %p604 = scmp.ne.s32.totalorder %s587, %s603
      %p605 = scmp.eq.s32.totalorder %s41, 0
      %p606 = por %p604, %p605
      %s608 = sadd.s32 %s607, 1
      %p611 = scmp.eq.s32.totalorder %s35, 1
      %p612 = scmp.ne.s32.totalorder %s607, %s609
      %p613 = scmp.eq.s32.totalorder %s35, 0
      %p614 = por %p612, %p613
      %p615 = scmp.ne.s32.totalorder %s607, %s609
      %p616 = scmp.eq.s32.totalorder %s40, 1
      %p617 = por %p615, %p616
      %p618 = scmp.ne.s32.totalorder %s609, %s610
      %p619 = scmp.eq.s32.totalorder %s40, 0
      %p620 = por %p618, %p619
      %p621 = scmp.ne.s32.totalorder %s609, %s610
      %p622 = scmp.eq.s32.totalorder %s41, 1
      %p623 = por %p621, %p622
      %p625 = scmp.ne.s32.totalorder %s610, %s624
      %p626 = scmp.eq.s32.totalorder %s41, 0
      %p627 = por %p625, %p626
      %s629 = sadd.s32 %s628, 1
      %p632 = scmp.eq.s32.totalorder %s35, 1
      %p633 = scmp.ne.s32.totalorder %s628, %s630
      %p634 = scmp.eq.s32.totalorder %s35, 0
      %p635 = por %p633, %p634
      %p636 = scmp.ne.s32.totalorder %s628, %s630
      %p637 = scmp.eq.s32.totalorder %s40, 1
      %p638 = por %p636, %p637
      %p639 = scmp.ne.s32.totalorder %s630, %s631
      %p640 = scmp.eq.s32.totalorder %s40, 0
      %p641 = por %p639, %p640
      %p642 = scmp.ne.s32.totalorder %s630, %s631
      %p643 = scmp.eq.s32.totalorder %s41, 1
      %p644 = por %p642, %p643
      %p646 = scmp.ne.s32.totalorder %s631, %s645
      %p647 = scmp.eq.s32.totalorder %s41, 0
      %p648 = por %p646, %p647
      %s650 = sadd.s32 %s649, 1
      %p653 = scmp.eq.s32.totalorder %s35, 1
      %p654 = scmp.ne.s32.totalorder %s649, %s651
      %p655 = scmp.eq.s32.totalorder %s35, 0
      %p656 = por %p654, %p655
      %p657 = scmp.ne.s32.totalorder %s649, %s651
      %p658 = scmp.eq.s32.totalorder %s40, 1
      %p659 = por %p657, %p658
      %p660 = scmp.ne.s32.totalorder %s651, %s652
      %p661 = scmp.eq.s32.totalorder %s40, 0
      %p662 = por %p660, %p661
      %p663 = scmp.ne.s32.totalorder %s651, %s652
      %p664 = scmp.eq.s32.totalorder %s41, 1
      %p665 = por %p663, %p664
      %p667 = scmp.ne.s32.totalorder %s652, %s666
      %p668 = scmp.eq.s32.totalorder %s41, 0
      %p669 = por %p667, %p668
      %s671 = sadd.s32 %s670, 1
      %p674 = scmp.eq.s32.totalorder %s35, 1
      %p675 = scmp.ne.s32.totalorder %s670, %s672
      %p676 = scmp.eq.s32.totalorder %s35, 0
      %p677 = por %p675, %p676
      %p678 = scmp.ne.s32.totalorder %s670, %s672
      %p679 = scmp.eq.s32.totalorder %s40, 1
      %p680 = por %p678, %p679
      %p681 = scmp.ne.s32.totalorder %s672, %s673
      %p682 = scmp.eq.s32.totalorder %s40, 0
      %p683 = por %p681, %p682
      %p684 = scmp.ne.s32.totalorder %s672, %s673
      %p685 = scmp.eq.s32.totalorder %s41, 1
      %p686 = por %p684, %p685
      %p688 = scmp.ne.s32.totalorder %s673, %s687
      %p689 = scmp.eq.s32.totalorder %s41, 0
      %p690 = por %p688, %p689
      %s692 = sadd.s32 %s691, 1
      %p695 = scmp.eq.s32.totalorder %s35, 1
      %p696 = scmp.ne.s32.totalorder %s691, %s693
      %p697 = scmp.eq.s32.totalorder %s35, 0
      %p698 = por %p696, %p697
      %p699 = scmp.ne.s32.totalorder %s691, %s693
      %p700 = scmp.eq.s32.totalorder %s40, 1
      %p701 = por %p699, %p700
      %p702 = scmp.ne.s32.totalorder %s693, %s694
      %p703 = scmp.eq.s32.totalorder %s40, 0
      %p704 = por %p702, %p703
      %p705 = scmp.ne.s32.totalorder %s693, %s694
      %p706 = scmp.eq.s32.totalorder %s41, 1
      %p707 = por %p705, %p706
      %p709 = scmp.ne.s32.totalorder %s694, %s708
      %p710 = scmp.eq.s32.totalorder %s41, 0
      %p711 = por %p709, %p710
      %s713 = sadd.s32 %s712, 1
      %p716 = scmp.eq.s32.totalorder %s35, 1
      %p717 = scmp.ne.s32.totalorder %s712, %s714
      %p718 = scmp.eq.s32.totalorder %s35, 0
      %p719 = por %p717, %p718
      %p720 = scmp.ne.s32.totalorder %s712, %s714
      %p721 = scmp.eq.s32.totalorder %s40, 1
      %p722 = por %p720, %p721
      %p723 = scmp.ne.s32.totalorder %s714, %s715
      %p724 = scmp.eq.s32.totalorder %s40, 0
      %p725 = por %p723, %p724
      %p726 = scmp.ne.s32.totalorder %s714, %s715
      %p727 = scmp.eq.s32.totalorder %s41, 1
      %p728 = por %p726, %p727
      %p730 = scmp.ne.s32.totalorder %s715, %s729
      %p731 = scmp.eq.s32.totalorder %s41, 0
      %p732 = por %p730, %p731
      %s733 = ssub.s32 %s42, %s54
      %p734 = scmp.eq.s32.totalorder %s733, 0
      %s736 = sadd.s32 %s735, 1
      %s737 = scalar_select %p734, %s735, %s736
      %p740 = pneg %p734
      %p741 = scmp.eq.s32.totalorder %s35, 1
      %p742 = por %p740, %p741
      %p743 = scmp.ne.s32.totalorder %s735, %s738
      %p744 = scmp.eq.s32.totalorder %s35, 0
      %p745 = por %p743, %p744
      %p746 = scmp.ne.s32.totalorder %s735, %s738
      %p747 = scmp.eq.s32.totalorder %s40, 1
      %p748 = por %p746, %p747
      %p749 = scmp.ne.s32.totalorder %s738, %s739
      %p750 = scmp.eq.s32.totalorder %s40, 0
      %p751 = por %p749, %p750
      %p752 = scmp.ne.s32.totalorder %s738, %s739
      %p753 = scmp.eq.s32.totalorder %s41, 1
      %p754 = por %p752, %p753
      %p756 = scmp.ne.s32.totalorder %s739, %s755
      %p757 = scmp.eq.s32.totalorder %s41, 0
      %p758 = por %p756, %p757
      %p759 = scmp.le.s32.totalorder 1, %s35
      %p760 = scmp.lt.s32.totalorder %s35, 3
      %p761 = pnand %p759, %p760
      %p762 = pneg %p761
      // Predicated region
      $region9: #{tpu_custom_call.1} parent=5 // pred_check
        _
      $region10: #{tpu_custom_call.1} parent=5 // pred_check_branch
        %764 = sbr.rel (%p761) target = $region12
      $region11: #{tpu_custom_call.1} parent=5 // pred_region
        %s765 = ssub.s32 %s35, 1
        // Predicated region
        $region13: #{tpu_custom_call.1} parent=11 // pred_check
          %p766 = pneg %p73
        $region14: #{tpu_custom_call.1} parent=11 // pred_check_branch
          %768 = sbr.rel (%p766) target = $region16
        $region15: #{tpu_custom_call.1} parent=11 // pred_region
          %p769 = scmp.lt.s32.totalorder %s44, 0
          %s770 = scalar_select %p769, %s44, 0
          %s771 = smul.addr %s770, 2
          %s772 = scalar_lea.vmem %s0, %s771
        $region16: #{tpu_custom_call.1} parent=11 // pred_fallthru
          _
        // Predicated region
        $region17: #{tpu_custom_call.1} parent=11 // pred_check
          %p773 = pneg %p99
        $region18: #{tpu_custom_call.1} parent=11 // pred_check_branch
          %775 = sbr.rel (%p773) target = $region20
        $region19: #{tpu_custom_call.1} parent=11 // pred_region
          %s776 = smul.u32 2, %s44
          %p777 = scmp.lt.s32.totalorder %s776, 1
          %s778 = scalar_select %p777, %s776, 1
          %s779 = smul.addr %s778, 4
          %s780 = scalar_lea.vmem %s1, %s779
          %s781 = smul.u32 2, %s44
        $region20: #{tpu_custom_call.1} parent=11 // pred_fallthru
          _
        // Predicated region
        $region21: #{tpu_custom_call.1} parent=11 // pred_check
          %p782 = pneg %p120
        $region22: #{tpu_custom_call.1} parent=11 // pred_check_branch
          %784 = sbr.rel (%p782) target = $region24
        $region23: #{tpu_custom_call.1} parent=11 // pred_region
          _
        $region24: #{tpu_custom_call.1} parent=11 // pred_fallthru
          _
        // Predicated region
        $region25: #{tpu_custom_call.1} parent=11 // pred_check
          %p785 = pneg %p141
        $region26: #{tpu_custom_call.1} parent=11 // pred_check_branch
          %787 = sbr.rel (%p785) target = $region28
        $region27: #{tpu_custom_call.1} parent=11 // pred_region
          _
        $region28: #{tpu_custom_call.1} parent=11 // pred_fallthru
          _
        // Predicated region
        $region29: #{tpu_custom_call.1} parent=11 // pred_check
          %p788 = pneg %p162
        $region30: #{tpu_custom_call.1} parent=11 // pred_check_branch
          %790 = sbr.rel (%p788) target = $region32
        $region31: #{tpu_custom_call.1} parent=11 // pred_region
          _
        $region32: #{tpu_custom_call.1} parent=11 // pred_fallthru
          _
        // Predicated region
        $region33: #{tpu_custom_call.1} parent=11 // pred_check
          %p791 = pneg %p183
        $region34: #{tpu_custom_call.1} parent=11 // pred_check_branch
          %793 = sbr.rel (%p791) target = $region36
        $region35: #{tpu_custom_call.1} parent=11 // pred_region
          _
        $region36: #{tpu_custom_call.1} parent=11 // pred_fallthru
          _
        // Predicated region
        $region37: #{tpu_custom_call.1} parent=11 // pred_check
          %p794 = pneg %p620
        $region38: #{tpu_custom_call.1} parent=11 // pred_check_branch
          %796 = sbr.rel (%p794) target = $region40
        $region39: #{tpu_custom_call.1} parent=11 // pred_region
          _
        $region40: #{tpu_custom_call.1} parent=11 // pred_fallthru
          _
        // Predicated region
        $region41: #{tpu_custom_call.1} parent=11 // pred_check
          %p797 = pneg %p641
        $region42: #{tpu_custom_call.1} parent=11 // pred_check_branch
          %799 = sbr.rel (%p797) target = $region44
        $region43: #{tpu_custom_call.1} parent=11 // pred_region
          _
        $region44: #{tpu_custom_call.1} parent=11 // pred_fallthru
          _
        // Predicated region
        $region45: #{tpu_custom_call.1} parent=11 // pred_check
          %p800 = pneg %p662
        $region46: #{tpu_custom_call.1} parent=11 // pred_check_branch
          %802 = sbr.rel (%p800) target = $region48
        $region47: #{tpu_custom_call.1} parent=11 // pred_region
          _
        $region48: #{tpu_custom_call.1} parent=11 // pred_fallthru
          _
        // Predicated region
        $region49: #{tpu_custom_call.1} parent=11 // pred_check
          %p803 = pneg %p683
        $region50: #{tpu_custom_call.1} parent=11 // pred_check_branch
          %805 = sbr.rel (%p803) target = $region52
        $region51: #{tpu_custom_call.1} parent=11 // pred_region
          _
        $region52: #{tpu_custom_call.1} parent=11 // pred_fallthru
          _
        // Predicated region
        $region53: #{tpu_custom_call.1} parent=11 // pred_check
          %p806 = pneg %p704
        $region54: #{tpu_custom_call.1} parent=11 // pred_check_branch
          %808 = sbr.rel (%p806) target = $region56
        $region55: #{tpu_custom_call.1} parent=11 // pred_region
          _
        $region56: #{tpu_custom_call.1} parent=11 // pred_fallthru
          _
        // Predicated region
        $region57: #{tpu_custom_call.1} parent=11 // pred_check
          %p809 = pneg %p725
        $region58: #{tpu_custom_call.1} parent=11 // pred_check_branch
          %811 = sbr.rel (%p809) target = $region60
        $region59: #{tpu_custom_call.1} parent=11 // pred_region
          _
        $region60: #{tpu_custom_call.1} parent=11 // pred_fallthru
          _
      $region12: #{tpu_custom_call.1} parent=5 // pred_fallthru
        _
      %p812 = scmp.lt.s32.totalorder %s35, 2
      // Predicated region
      $region61: #{tpu_custom_call.1} parent=5 // pred_check
        %p813 = pneg %p812
      $region62: #{tpu_custom_call.1} parent=5 // pred_check_branch
        %815 = sbr.rel (%p813) target = $region64
      $region63: #{tpu_custom_call.1} parent=5 // pred_region
        // Predicated region
        $region65: #{tpu_custom_call.1} parent=63 // pred_check
          %p816 = pneg %p203
        $region66: #{tpu_custom_call.1} parent=63 // pred_check_branch
          %818 = sbr.rel (%p816) target = $region68
        $region67: #{tpu_custom_call.1} parent=63 // pred_region
          %p819 = scmp.lt.s32.totalorder %s43, 1
          %s820 = scalar_select %p819, %s43, 1
          %s821 = smul.addr %s820, 16
          %s822 = smul.addr %s821, 4
          %s823 = scalar_lea.vmem %s6, %s822
        $region68: #{tpu_custom_call.1} parent=63 // pred_fallthru
          _
        // Predicated region
        $region69: #{tpu_custom_call.1} parent=63 // pred_check
          %p824 = pneg %p229
        $region70: #{tpu_custom_call.1} parent=63 // pred_check_branch
          %826 = sbr.rel (%p824) target = $region72
        $region71: #{tpu_custom_call.1} parent=63 // pred_region
          %p827 = scmp.lt.s32.totalorder %s43, 1
          %s828 = scalar_select %p827, %s43, 1
          %s829 = smul.addr %s828, 16
          %s830 = smul.addr %s829, 4
          %s831 = scalar_lea.vmem %s7, %s830
        $region72: #{tpu_custom_call.1} parent=63 // pred_fallthru
          _
        // Predicated region
        $region73: #{tpu_custom_call.1} parent=63 // pred_check
          %p832 = pneg %p255
        $region74: #{tpu_custom_call.1} parent=63 // pred_check_branch
          %834 = sbr.rel (%p832) target = $region76
        $region75: #{tpu_custom_call.1} parent=63 // pred_region
          %p835 = scmp.lt.s32.totalorder %s43, 1
          %s836 = scalar_select %p835, %s43, 1
          %s837 = smul.addr %s836, 16
          %s838 = smul.addr %s837, 4
          %s839 = scalar_lea.vmem %s8, %s838
        $region76: #{tpu_custom_call.1} parent=63 // pred_fallthru
          _
        // Predicated region
        $region77: #{tpu_custom_call.1} parent=63 // pred_check
          %p840 = pneg %p281
        $region78: #{tpu_custom_call.1} parent=63 // pred_check_branch
          %842 = sbr.rel (%p840) target = $region80
        $region79: #{tpu_custom_call.1} parent=63 // pred_region
          %p843 = scmp.lt.s32.totalorder %s43, 1
          %s844 = scalar_select %p843, %s43, 1
          %s845 = smul.addr %s844, 4
          %s846 = scalar_lea.vmem %s9, %s845
        $region80: #{tpu_custom_call.1} parent=63 // pred_fallthru
          _
        // Predicated region
        $region81: #{tpu_custom_call.1} parent=63 // pred_check
          %p847 = pneg %p307
        $region82: #{tpu_custom_call.1} parent=63 // pred_check_branch
          %849 = sbr.rel (%p847) target = $region84
        $region83: #{tpu_custom_call.1} parent=63 // pred_region
          %p850 = scmp.lt.s32.totalorder %s43, 1
          %s851 = scalar_select %p850, %s43, 1
          %s852 = smul.addr %s851, 4
          %s853 = scalar_lea.vmem %s10, %s852
        $region84: #{tpu_custom_call.1} parent=63 // pred_fallthru
          _
        // Predicated region
        $region85: #{tpu_custom_call.1} parent=63 // pred_check
          %p854 = pneg %p333
        $region86: #{tpu_custom_call.1} parent=63 // pred_check_branch
          %856 = sbr.rel (%p854) target = $region88
        $region87: #{tpu_custom_call.1} parent=63 // pred_region
          %p857 = scmp.lt.s32.totalorder %s43, 1
          %s858 = scalar_select %p857, %s43, 1
          %s859 = smul.addr %s858, 4
          %s860 = scalar_lea.vmem %s11, %s859
        $region88: #{tpu_custom_call.1} parent=63 // pred_fallthru
          _
        // Predicated region
        $region89: #{tpu_custom_call.1} parent=63 // pred_check
          %p861 = pneg %p359
        $region90: #{tpu_custom_call.1} parent=63 // pred_check_branch
          %863 = sbr.rel (%p861) target = $region92
        $region91: #{tpu_custom_call.1} parent=63 // pred_region
          %p864 = scmp.lt.s32.totalorder %s43, 1
          %s865 = scalar_select %p864, %s43, 1
          %s866 = smul.addr %s865, 4
          %s867 = smul.addr %s866, 4
          %s868 = scalar_lea.vmem %s12, %s867
        $region92: #{tpu_custom_call.1} parent=63 // pred_fallthru
          _
        // Predicated region
        $region93: #{tpu_custom_call.1} parent=63 // pred_check
          %p869 = pneg %p385
        $region94: #{tpu_custom_call.1} parent=63 // pred_check_branch
          %871 = sbr.rel (%p869) target = $region96
        $region95: #{tpu_custom_call.1} parent=63 // pred_region
          %p872 = scmp.lt.s32.totalorder %s43, 1
          %s873 = scalar_select %p872, %s43, 1
          %s874 = scalar_lea.vmem %s13, %s873
        $region96: #{tpu_custom_call.1} parent=63 // pred_fallthru
          _
        // Predicated region
        $region97: #{tpu_custom_call.1} parent=63 // pred_check
          %p875 = pneg %p411
        $region98: #{tpu_custom_call.1} parent=63 // pred_check_branch
          %877 = sbr.rel (%p875) target = $region100
        $region99: #{tpu_custom_call.1} parent=63 // pred_region
          %p878 = scmp.lt.s32.totalorder %s43, 1
          %s879 = scalar_select %p878, %s43, 1
          %s880 = scalar_lea.vmem %s14, %s879
        $region100: #{tpu_custom_call.1} parent=63 // pred_fallthru
          _
        // Predicated region
        $region101: #{tpu_custom_call.1} parent=63 // pred_check
          %p881 = pneg %p437
        $region102: #{tpu_custom_call.1} parent=63 // pred_check_branch
          %883 = sbr.rel (%p881) target = $region104
        $region103: #{tpu_custom_call.1} parent=63 // pred_region
          %p884 = scmp.lt.s32.totalorder %s43, 1
          %s885 = scalar_select %p884, %s43, 1
          %s886 = scalar_lea.vmem %s15, %s885
        $region104: #{tpu_custom_call.1} parent=63 // pred_fallthru
          _
        // Predicated region
        $region105: #{tpu_custom_call.1} parent=63 // pred_check
          %p887 = pneg %p463
        $region106: #{tpu_custom_call.1} parent=63 // pred_check_branch
          %889 = sbr.rel (%p887) target = $region108
        $region107: #{tpu_custom_call.1} parent=63 // pred_region
          %p890 = scmp.lt.s32.totalorder %s43, 1
          %s891 = scalar_select %p890, %s43, 1
          %s892 = smul.addr %s891, 4
          %s893 = smul.addr %s892, 4
          %s894 = scalar_lea.vmem %s16, %s893
        $region108: #{tpu_custom_call.1} parent=63 // pred_fallthru
          _
        // Predicated region
        $region109: #{tpu_custom_call.1} parent=63 // pred_check
          %p895 = pneg %p489
        $region110: #{tpu_custom_call.1} parent=63 // pred_check_branch
          %897 = sbr.rel (%p895) target = $region112
        $region111: #{tpu_custom_call.1} parent=63 // pred_region
          %p898 = scmp.lt.s32.totalorder %s43, 1
          %s899 = scalar_select %p898, %s43, 1
          %s900 = scalar_lea.vmem %s17, %s899
        $region112: #{tpu_custom_call.1} parent=63 // pred_fallthru
          _
        // Predicated region
        $region113: #{tpu_custom_call.1} parent=63 // pred_check
          %p901 = pneg %p515
        $region114: #{tpu_custom_call.1} parent=63 // pred_check_branch
          %903 = sbr.rel (%p901) target = $region116
        $region115: #{tpu_custom_call.1} parent=63 // pred_region
          %p904 = scmp.lt.s32.totalorder %s43, 1
          %s905 = scalar_select %p904, %s43, 1
          %s906 = smul.addr %s905, 8
          %s907 = smul.addr %s906, 4
          %s908 = scalar_lea.vmem %s18, %s907
        $region116: #{tpu_custom_call.1} parent=63 // pred_fallthru
          _
        // Predicated region
        $region117: #{tpu_custom_call.1} parent=63 // pred_check
          %p909 = pneg %p541
        $region118: #{tpu_custom_call.1} parent=63 // pred_check_branch
          %911 = sbr.rel (%p909) target = $region120
        $region119: #{tpu_custom_call.1} parent=63 // pred_region
          %p912 = scmp.lt.s32.totalorder %s43, 1
          %s913 = scalar_select %p912, %s43, 1
          %s914 = scalar_lea.vmem %s19, %s913
        $region120: #{tpu_custom_call.1} parent=63 // pred_fallthru
          _
        // Predicated region
        $region121: #{tpu_custom_call.1} parent=63 // pred_check
          %p915 = pneg %p567
        $region122: #{tpu_custom_call.1} parent=63 // pred_check_branch
          %917 = sbr.rel (%p915) target = $region124
        $region123: #{tpu_custom_call.1} parent=63 // pred_region
          %p918 = scmp.lt.s32.totalorder %s43, 1
          %s919 = scalar_select %p918, %s43, 1
          %s920 = scalar_lea.vmem %s20, %s919
        $region124: #{tpu_custom_call.1} parent=63 // pred_fallthru
          _
        // Predicated region
        $region125: #{tpu_custom_call.1} parent=63 // pred_check
          %p921 = pneg %p593
        $region126: #{tpu_custom_call.1} parent=63 // pred_check_branch
          %923 = sbr.rel (%p921) target = $region128
        $region127: #{tpu_custom_call.1} parent=63 // pred_region
          %p924 = scmp.lt.s32.totalorder %s43, 1
          %s925 = scalar_select %p924, %s43, 1
          %s926 = scalar_lea.vmem %s21, %s925
        $region128: #{tpu_custom_call.1} parent=63 // pred_fallthru
          _
      $region64: #{tpu_custom_call.1} parent=5 // pred_fallthru
        _
      %p927 = scmp.le.s32.totalorder 1, %s35
      %p928 = scmp.lt.s32.totalorder %s35, 3
      %p929 = pnand %p927, %p928
      %p930 = pneg %p929
      // Predicated region
      $region129: #{tpu_custom_call.1} parent=5 // pred_check
        _
      $region130: #{tpu_custom_call.1} parent=5 // pred_check_branch
        %932 = sbr.rel (%p929) target = $region132
      $region131: #{tpu_custom_call.1} parent=5 // pred_region
        %s933 = ssub.s32 %s35, 1
        %p934 = scmp.lt.s32.totalorder %s44, 0
        %s935 = scalar_select %p934, %s44, 0
        %s936 = smul.addr %s935, 2
        %s937 = scalar_lea.vmem %s0, %s936
        %p938 = pneg %p73
        %p939 = pneg %p70
        %s940 = smul.u32 2, %s44
        %p941 = scmp.lt.s32.totalorder %s940, 1
        %s942 = scalar_select %p941, %s940, 1
        %s943 = smul.addr %s942, 4
        %s944 = scalar_lea.vmem %s1, %s943
        %p945 = pneg %p99
        %p946 = pneg %p96
        %p947 = pneg %p120
        %p948 = pneg %p117
        %p949 = pneg %p141
        %p950 = pneg %p138
        %p951 = pneg %p162
        %p952 = pneg %p159
        %p953 = pneg %p183
        %p954 = pneg %p180
        %p955 = scmp.lt.s32.totalorder %s45, 1
        %s956 = scalar_select %p955, %s45, 1
        %s957 = smul.addr %s956, 16
        %s958 = smul.addr %s957, 4
        %s959 = scalar_lea.vmem %s6, %s958
        %p960 = pneg %p209
        %p961 = pneg %p206
        %p962 = scmp.lt.s32.totalorder %s45, 1
        %s963 = scalar_select %p962, %s45, 1
        %s964 = smul.addr %s963, 16
        %s965 = smul.addr %s964, 4
        %s966 = scalar_lea.vmem %s7, %s965
        %p967 = pneg %p235
        %p968 = pneg %p232
        %p969 = scmp.lt.s32.totalorder %s45, 1
        %s970 = scalar_select %p969, %s45, 1
        %s971 = smul.addr %s970, 16
        %s972 = smul.addr %s971, 4
        %s973 = scalar_lea.vmem %s8, %s972
        %p974 = pneg %p261
        %p975 = pneg %p258
        %p976 = scmp.lt.s32.totalorder %s45, 1
        %s977 = scalar_select %p976, %s45, 1
        %s978 = smul.addr %s977, 4
        %s979 = scalar_lea.vmem %s9, %s978
        %p980 = pneg %p287
        %p981 = pneg %p284
        %p982 = scmp.lt.s32.totalorder %s45, 1
        %s983 = scalar_select %p982, %s45, 1
        %s984 = smul.addr %s983, 4
        %s985 = scalar_lea.vmem %s10, %s984
        %p986 = pneg %p313
        %p987 = pneg %p310
        %p988 = scmp.lt.s32.totalorder %s45, 1
        %s989 = scalar_select %p988, %s45, 1
        %s990 = smul.addr %s989, 4
        %s991 = scalar_lea.vmem %s11, %s990
        %p992 = pneg %p339
        %p993 = pneg %p336
        %p994 = scmp.lt.s32.totalorder %s45, 1
        %s995 = scalar_select %p994, %s45, 1
        %s996 = smul.addr %s995, 4
        %s997 = smul.addr %s996, 4
        %s998 = scalar_lea.vmem %s12, %s997
        %p999 = pneg %p365
        %p1000 = pneg %p362
        %p1001 = scmp.lt.s32.totalorder %s45, 1
        %s1002 = scalar_select %p1001, %s45, 1
        %s1003 = scalar_lea.vmem %s13, %s1002
        %p1004 = pneg %p391
        %p1005 = pneg %p388
        %p1006 = scmp.lt.s32.totalorder %s45, 1
        %s1007 = scalar_select %p1006, %s45, 1
        %s1008 = scalar_lea.vmem %s14, %s1007
        %p1009 = pneg %p417
        %p1010 = pneg %p414
        %p1011 = scmp.lt.s32.totalorder %s45, 1
        %s1012 = scalar_select %p1011, %s45, 1
        %s1013 = scalar_lea.vmem %s15, %s1012
        %p1014 = pneg %p443
        %p1015 = pneg %p440
        %p1016 = scmp.lt.s32.totalorder %s45, 1
        %s1017 = scalar_select %p1016, %s45, 1
        %s1018 = smul.addr %s1017, 4
        %s1019 = smul.addr %s1018, 4
        %s1020 = scalar_lea.vmem %s16, %s1019
        %p1021 = pneg %p469
        %p1022 = pneg %p466
        %p1023 = scmp.lt.s32.totalorder %s45, 1
        %s1024 = scalar_select %p1023, %s45, 1
        %s1025 = scalar_lea.vmem %s17, %s1024
        %p1026 = pneg %p495
        %p1027 = pneg %p492
        %p1028 = scmp.lt.s32.totalorder %s45, 1
        %s1029 = scalar_select %p1028, %s45, 1
        %s1030 = smul.addr %s1029, 8
        %s1031 = smul.addr %s1030, 4
        %s1032 = scalar_lea.vmem %s18, %s1031
        %p1033 = pneg %p521
        %p1034 = pneg %p518
        %p1035 = scmp.lt.s32.totalorder %s45, 1
        %s1036 = scalar_select %p1035, %s45, 1
        %s1037 = scalar_lea.vmem %s19, %s1036
        %p1038 = pneg %p547
        %p1039 = pneg %p544
        %p1040 = scmp.lt.s32.totalorder %s45, 1
        %s1041 = scalar_select %p1040, %s45, 1
        %s1042 = scalar_lea.vmem %s20, %s1041
        %p1043 = pneg %p573
        %p1044 = pneg %p570
        %p1045 = scmp.lt.s32.totalorder %s45, 1
        %s1046 = scalar_select %p1045, %s45, 1
        %s1047 = scalar_lea.vmem %s21, %s1046
        %p1048 = pneg %p599
        %p1049 = pneg %p596
        %p1050 = pneg %p620
        %p1051 = pneg %p617
        %p1052 = pneg %p641
        %p1053 = pneg %p638
        %p1054 = pneg %p662
        %p1055 = pneg %p659
        %p1056 = pneg %p683
        %p1057 = pneg %p680
        %p1058 = pneg %p704
        %p1059 = pneg %p701
        %p1060 = pneg %p725
        %p1061 = pneg %p722
        %p1062 = pneg %p751
        %p1063 = pneg %p748
        %p1064 = scmp.lt.s32.totalorder %s44, 0
        %s1065 = scalar_select %p1064, %s44, 0
        %s1066 = smul.addr %s1065, 2
        %s1067 = scalar_lea.vmem %s0, %s1066
        %s1068 = smul.u32 2, %s44
        %p1069 = scmp.lt.s32.totalorder %s1068, 1
        %s1070 = scalar_select %p1069, %s1068, 1
        %s1071 = smul.addr %s1070, 4
        %s1072 = scalar_lea.vmem %s1, %s1071
        %s1073 = smul.u32 2, %s44
        %p1074 = scmp.lt.s32.totalorder %s45, 1
        %s1075 = scalar_select %p1074, %s45, 1
        %s1076 = smul.addr %s1075, 16
        %s1077 = smul.addr %s1076, 4
        %s1078 = scalar_lea.vmem %s6, %s1077
        %p1079 = scmp.lt.s32.totalorder %s45, 1
        %s1080 = scalar_select %p1079, %s45, 1
        %s1081 = smul.addr %s1080, 16
        %s1082 = smul.addr %s1081, 4
        %s1083 = scalar_lea.vmem %s7, %s1082
        %p1084 = scmp.lt.s32.totalorder %s45, 1
        %s1085 = scalar_select %p1084, %s45, 1
        %s1086 = smul.addr %s1085, 16
        %s1087 = smul.addr %s1086, 4
        %s1088 = scalar_lea.vmem %s8, %s1087
        %p1089 = scmp.lt.s32.totalorder %s45, 1
        %s1090 = scalar_select %p1089, %s45, 1
        %s1091 = smul.addr %s1090, 4
        %s1092 = scalar_lea.vmem %s9, %s1091
        %p1093 = scmp.lt.s32.totalorder %s45, 1
        %s1094 = scalar_select %p1093, %s45, 1
        %s1095 = smul.addr %s1094, 4
        %s1096 = scalar_lea.vmem %s10, %s1095
        %p1097 = scmp.lt.s32.totalorder %s45, 1
        %s1098 = scalar_select %p1097, %s45, 1
        %s1099 = smul.addr %s1098, 4
        %s1100 = scalar_lea.vmem %s11, %s1099
        %p1101 = scmp.lt.s32.totalorder %s45, 1
        %s1102 = scalar_select %p1101, %s45, 1
        %s1103 = smul.addr %s1102, 4
        %s1104 = smul.addr %s1103, 4
        %s1105 = scalar_lea.vmem %s12, %s1104
        %p1106 = scmp.lt.s32.totalorder %s45, 1
        %s1107 = scalar_select %p1106, %s45, 1
        %s1108 = scalar_lea.vmem %s13, %s1107
        %p1109 = scmp.lt.s32.totalorder %s45, 1
        %s1110 = scalar_select %p1109, %s45, 1
        %s1111 = scalar_lea.vmem %s14, %s1110
        %p1112 = scmp.lt.s32.totalorder %s45, 1
        %s1113 = scalar_select %p1112, %s45, 1
        %s1114 = scalar_lea.vmem %s15, %s1113
        %p1115 = scmp.lt.s32.totalorder %s45, 1
        %s1116 = scalar_select %p1115, %s45, 1
        %s1117 = smul.addr %s1116, 4
        %s1118 = smul.addr %s1117, 4
        %s1119 = scalar_lea.vmem %s16, %s1118
        %p1120 = scmp.lt.s32.totalorder %s45, 1
        %s1121 = scalar_select %p1120, %s45, 1
        %s1122 = scalar_lea.vmem %s17, %s1121
        %p1123 = scmp.lt.s32.totalorder %s45, 1
        %s1124 = scalar_select %p1123, %s45, 1
        %s1125 = smul.addr %s1124, 8
        %s1126 = smul.addr %s1125, 4
        %s1127 = scalar_lea.vmem %s18, %s1126
        %p1128 = scmp.lt.s32.totalorder %s45, 1
        %s1129 = scalar_select %p1128, %s45, 1
        %s1130 = scalar_lea.vmem %s19, %s1129
        %p1131 = scmp.lt.s32.totalorder %s45, 1
        %s1132 = scalar_select %p1131, %s45, 1
        %s1133 = scalar_lea.vmem %s20, %s1132
        %p1134 = scmp.lt.s32.totalorder %s45, 1
        %s1135 = scalar_select %p1134, %s45, 1
        %s1136 = scalar_lea.vmem %s21, %s1135
        %p1138 = scmp.eq.s32.totalorder %s45, 0
        // Predicated region
        $region133: #{tpu_custom_call.1} parent=131 // pred_check
          %p1139 = pneg %p1138
        $region134: #{tpu_custom_call.1} parent=131 // pred_check_branch
          %1141 = sbr.rel (%p1139) target = $region136
        $region135: #{tpu_custom_call.1} parent=131 // pred_region
          %v1142 = vld [vmem:[%s1072] sm:$0xf]
          %v1143 = vld [vmem:[%s1072 + $0x4] sm:$0xf]
          %vm1144 = vcmask 257024
          %1145 = vst.msk [vmem:[#allocation2] sm:$0xf] %vm1144, %v1142
          %1146 = vst.msk [vmem:[#allocation2 + $0x4] sm:$0xf] %vm1144, %v1143
          %v1147 = vld [vmem:[%s1067] sm:$0x3]
          %v1148 = vpack.c.bf16 %v1147, %v1147
          %v1149 = vld [vmem:[%s2] sm:$0xf]
          %v1150 = vld [vmem:[%s2 + $0x4] sm:$0xf]
          %v1151 = vld [vmem:[%s3] sm:$0x1]
          %v1153 = vlaneseq
          %v1154 = vshrl.u32 %v1153, 7
          %v1155 = vsub.s32 0, %v1154
          %v1156 = vrot.slane %v1151, %v1155
          %v1160 = vunpack.c.l.b16 %v1149
          %v1161 = vunpack.c.l.b16 %v1150
          %v1162 = vpack.c.b16 %v1161, %v1160
          %vm1164 = vcmask 130048
          %v1166 = vsel %vm1164, %v1148, 0
          %1168 = vmatprep.subr.bf16.mxu0 0
          %1169 = vmatpush1.bf16.msra.mxu0 0
          %1170 = vmatprep.subr.bf16.mxu0 0
          %1171 = vmatpush1.bf16.msra.mxu0 0
          %1172 = vmatprep.subr.bf16.mxu0 0
          %1173 = vmatpush1.bf16.msra.mxu0 0
          %1174 = vmatprep.subr.bf16.mxu0 0
          %1175 = vmatpush1.bf16.msra.mxu0 0
          %1176 = vmatprep.subr.bf16.mxu0 0
          %1177 = vmatpush1.bf16.msra.mxu0 0
          %1178 = vmatprep.subr.bf16.mxu0 0
          %1179 = vmatpush1.bf16.msra.mxu0 0
          %1180 = vmatprep.subr.bf16.mxu0 0
          %1181 = vmatpush1.bf16.msra.mxu0 0
          %1182 = vmatprep.subr.bf16.mxu0 0
          %1183 = vmatpush1.bf16.msra.mxu0 %v1162
          %1184 = vmatprep.subr.bf16.mxu0 0
          %1185 = vmatpush2.bf16.msra.mxu0 0
          %1186 = vmatprep.subr.bf16.mxu0 0
          %1187 = vmatpush2.bf16.msra.mxu0 0
          %1188 = vmatprep.subr.bf16.mxu0 0
          %1189 = vmatpush2.bf16.msra.mxu0 0
          %1190 = vmatprep.subr.bf16.mxu0 0
          %1191 = vmatpush2.bf16.msra.mxu0 0
          %1192 = vmatprep.subr.bf16.mxu0 0
          %1193 = vmatpush2.bf16.msra.mxu0 0
          %1194 = vmatprep.subr.bf16.mxu0 0
          %1195 = vmatpush2.bf16.msra.mxu0 0
          %1196 = vmatprep.subr.bf16.mxu0 0
          %1197 = vmatpush2.bf16.msra.mxu0 0
          %1198 = vmatprep.subr.bf16.mxu0 0
          %1199 = vmatpush2.bf16.msra.mxu0 0
          %1200 = vmatprep.mubr.bf16.mxu0 0
          %1201 = vmatmul.mubr.bf16.gmra.mxu0 %v1166
          %v1202 = vpop.f32.mrf.mxu0
          %v1203 = vadd.f32 %v1156, %v1202
          %v1204 = vpop.f32.mrf.mxu0
          %v1205 = vpop.f32.mrf.mxu0
          %v1206 = vpop.f32.mrf.mxu0
          %1207 = vdwg.mxu0
          %v1208 = vmul.f32 %v1203, 0.5
          %v1209 = vmul.f32 %v1203, 0.044715
          %v1210 = vmul.f32 %v1209, %v1203
          %v1211 = vmul.f32 %v1210, %v1203
          %v1212 = vadd.f32 %v1203, %v1211
          %v1213 = vmul.f32 %v1212, 0.7978846
          %v1214 = vtanh.pop %v1213
          %v1215 = vadd.f32 %v1214, 1.0
          %v1216 = vmul.f32 %v1208, %v1215
          %v1217 = vpack.c.bf16 %v1216, %v1216
          %v1218 = vld [vmem:[%s4] sm:$0xf]
          %v1219 = vld [vmem:[%s4 + $0x4] sm:$0xf]
          %v1220 = vld [vmem:[%s5] sm:$0x1]
          %v1222 = vlaneseq
          %v1223 = vshrl.u32 %v1222, 7
          %v1224 = vsub.s32 0, %v1223
          %v1225 = vrot.slane %v1220, %v1224
          %v1229 = vunpack.c.l.b16 %v1218
          %v1230 = vunpack.c.l.b16 %v1219
          %v1231 = vpack.c.b16 %v1230, %v1229
          %v1234 = vsel %vm1164, %v1217, 0
          %1236 = vmatprep.subr.bf16.mxu0 0
          %1237 = vmatpush1.bf16.msra.mxu0 0
          %1238 = vmatprep.subr.bf16.mxu0 0
          %1239 = vmatpush1.bf16.msra.mxu0 0
          %1240 = vmatprep.subr.bf16.mxu0 0
          %1241 = vmatpush1.bf16.msra.mxu0 0
          %1242 = vmatprep.subr.bf16.mxu0 0
          %1243 = vmatpush1.bf16.msra.mxu0 0
          %1244 = vmatprep.subr.bf16.mxu0 0
          %1245 = vmatpush1.bf16.msra.mxu0 0
          %1246 = vmatprep.subr.bf16.mxu0 0
          %1247 = vmatpush1.bf16.msra.mxu0 0
          %1248 = vmatprep.subr.bf16.mxu0 0
          %1249 = vmatpush1.bf16.msra.mxu0 0
          %1250 = vmatprep.subr.bf16.mxu0 0
          %1251 = vmatpush1.bf16.msra.mxu0 %v1231
          %1252 = vmatprep.subr.bf16.mxu0 0
          %1253 = vmatpush2.bf16.msra.mxu0 0
          %1254 = vmatprep.subr.bf16.mxu0 0
          %1255 = vmatpush2.bf16.msra.mxu0 0
          %1256 = vmatprep.subr.bf16.mxu0 0
          %1257 = vmatpush2.bf16.msra.mxu0 0
          %1258 = vmatprep.subr.bf16.mxu0 0
          %1259 = vmatpush2.bf16.msra.mxu0 0
          %1260 = vmatprep.subr.bf16.mxu0 0
          %1261 = vmatpush2.bf16.msra.mxu0 0
          %1262 = vmatprep.subr.bf16.mxu0 0
          %1263 = vmatpush2.bf16.msra.mxu0 0
          %1264 = vmatprep.subr.bf16.mxu0 0
          %1265 = vmatpush2.bf16.msra.mxu0 0
          %1266 = vmatprep.subr.bf16.mxu0 0
          %1267 = vmatpush2.bf16.msra.mxu0 0
          %1268 = vmatprep.mubr.bf16.mxu0 0
          %1269 = vmatmul.mubr.bf16.gmra.mxu0 %v1234
          %v1270 = vpop.f32.mrf.mxu0
          %v1271 = vadd.f32 %v1225, %v1270
          %v1272 = vpop.f32.mrf.mxu0
          %v1273 = vpop.f32.mrf.mxu0
          %v1274 = vpop.f32.mrf.mxu0
          %1275 = vdwg.mxu0
          %v1276 = vmul.f32 %v1271, 0.5
          %v1277 = vmul.f32 %v1271, 0.044715
          %v1278 = vmul.f32 %v1277, %v1271
          %v1279 = vmul.f32 %v1278, %v1271
          %v1280 = vadd.f32 %v1271, %v1279
          %v1281 = vmul.f32 %v1280, 0.7978846
          %v1282 = vtanh.pop %v1281
          %v1283 = vadd.f32 %v1282, 1.0
          %v1284 = vmul.f32 %v1276, %v1283
          %v1285 = vpack.c.bf16 %v1284, %v1284
          %vm1286 = vcmask 253952
          %vm1287 = vsmask.f32 256
          %vm1288 = vmand %vm1286, %vm1287
          %v1289 = vld [vmem:[#allocation2] sm:$0x1]
          %v1290 = vsel %vm1288, %v1285, %v1289
          %1291 = vst [vmem:[#allocation2] sm:$0x1] %v1290
          %v1293 = vunpack.c.l.b16 %v1285
          %v1294 = vpack.c.b16 %v1293, %v1293
          %v1296 = vshrl.u32 %v1294, 16
          %v1298 = vrot.slane %v1296, 4
          %v1299 = vrot.slane %v1298, 4
          %v1301 = vld [vmem:[#allocation2 + $0x4] sm:$0x1]
          %v1302 = vsel %vm1288, %v1299, %v1301
          %1303 = vst [vmem:[#allocation2 + $0x4] sm:$0x1] %v1302
        $region136: #{tpu_custom_call.1} parent=131 // pred_fallthru
          _
        %v1304 = vld [vmem:[#allocation2] sm:$0xf]
        %v1305 = vld [vmem:[#allocation2 + $0x4] sm:$0xf]
        %v1306 = vunpack.c.l.bf16 %v1304
        %v1307 = vunpack.c.l.bf16 %v1305
        %v1308 = vld [vmem:[%s1078] sm:$0xf]
        %v1309 = vld [vmem:[%s1078 + $0x4] sm:$0xf]
        %v1310 = vld [vmem:[%s1078 + $0x8] sm:$0xf]
        %v1311 = vld [vmem:[%s1078 + $0xc] sm:$0xf]
        %v1312 = vld [vmem:[%s1092] sm:$0x1]
        %v1314 = vlaneseq
        %v1315 = vshrl.u32 %v1314, 7
        %v1316 = vsub.s32 0, %v1315
        %v1317 = vrot.slane %v1312, %v1316
        %v1321 = vunpack.c.l.b16 %v1304
        %v1322 = vunpack.c.l.b16 %v1305
        %v1323 = vpack.c.b16 %v1322, %v1321
        %v1328 = vunpack.c.l.b16 %v1308
        %v1329 = vunpack.c.l.b16 %v1309
        %v1330 = vunpack.c.l.b16 %v1310
        %v1331 = vunpack.c.l.b16 %v1311
        %v1332 = vpack.c.b16 %v1329, %v1328
        %v1333 = vpack.c.b16 %v1331, %v1330
        %vm1336 = vcmask 261120
        %v1338 = vsel %vm1336, %v1323, 0
        %1340 = vmatprep.subr.bf16.mxu0 0
        %1341 = vmatpush1.bf16.msra.mxu0 0
        %1342 = vmatprep.subr.bf16.mxu0 0
        %1343 = vmatpush1.bf16.msra.mxu0 0
        %1344 = vmatprep.subr.bf16.mxu0 0
        %1345 = vmatpush1.bf16.msra.mxu0 0
        %1346 = vmatprep.subr.bf16.mxu0 0
        %1347 = vmatpush1.bf16.msra.mxu0 0
        %1348 = vmatprep.subr.bf16.mxu0 0
        %1349 = vmatpush1.bf16.msra.mxu0 0
        %1350 = vmatprep.subr.bf16.mxu0 0
        %1351 = vmatpush1.bf16.msra.mxu0 0
        %1352 = vmatprep.subr.bf16.mxu0 0
        %1353 = vmatpush1.bf16.msra.mxu0 %v1333
        %1354 = vmatprep.subr.bf16.mxu0 0
        %1355 = vmatpush1.bf16.msra.mxu0 %v1332
        %1356 = vmatprep.subr.bf16.mxu0 0
        %1357 = vmatpush2.bf16.msra.mxu0 0
        %1358 = vmatprep.subr.bf16.mxu0 0
        %1359 = vmatpush2.bf16.msra.mxu0 0
        %1360 = vmatprep.subr.bf16.mxu0 0
        %1361 = vmatpush2.bf16.msra.mxu0 0
        %1362 = vmatprep.subr.bf16.mxu0 0
        %1363 = vmatpush2.bf16.msra.mxu0 0
        %1364 = vmatprep.subr.bf16.mxu0 0
        %1365 = vmatpush2.bf16.msra.mxu0 0
        %1366 = vmatprep.subr.bf16.mxu0 0
        %1367 = vmatpush2.bf16.msra.mxu0 0
        %1368 = vmatprep.subr.bf16.mxu0 0
        %1369 = vmatpush2.bf16.msra.mxu0 0
        %1370 = vmatprep.subr.bf16.mxu0 0
        %1371 = vmatpush2.bf16.msra.mxu0 0
        %1372 = vmatprep.mubr.bf16.mxu0 0
        %1373 = vmatmul.mubr.bf16.gmra.mxu0 %v1338
        %v1374 = vpop.f32.mrf.mxu0
        %v1375 = vadd.f32 %v1317, %v1374
        %v1376 = vpop.f32.mrf.mxu0
        %v1377 = vpop.f32.mrf.mxu0
        %v1378 = vadd.f32 %v1317, %v1377
        %v1379 = vpop.f32.mrf.mxu0
        %1380 = vdwg.mxu0
        %v1381 = vmul.f32 %v1375, 0.35355338
        %v1382 = vmul.f32 %v1378, 0.35355338
        %v1383 = vld [vmem:[%s1083] sm:$0xf]
        %v1384 = vld [vmem:[%s1083 + $0x4] sm:$0xf]
        %v1385 = vld [vmem:[%s1083 + $0x8] sm:$0xf]
        %v1386 = vld [vmem:[%s1083 + $0xc] sm:$0xf]
        %v1387 = vld [vmem:[%s1096] sm:$0x1]
        %v1389 = vlaneseq
        %v1390 = vshrl.u32 %v1389, 7
        %v1391 = vsub.s32 0, %v1390
        %v1392 = vrot.slane %v1387, %v1391
        %v1398 = vunpack.c.l.b16 %v1383
        %v1399 = vunpack.c.l.b16 %v1384
        %v1400 = vunpack.c.l.b16 %v1385
        %v1401 = vunpack.c.l.b16 %v1386
        %v1402 = vpack.c.b16 %v1399, %v1398
        %v1403 = vpack.c.b16 %v1401, %v1400
        %1406 = vmatprep.subr.bf16.mxu0 0
        %1407 = vmatpush1.bf16.msra.mxu0 0
        %1408 = vmatprep.subr.bf16.mxu0 0
        %1409 = vmatpush1.bf16.msra.mxu0 0
        %1410 = vmatprep.subr.bf16.mxu0 0
        %1411 = vmatpush1.bf16.msra.mxu0 0
        %1412 = vmatprep.subr.bf16.mxu0 0
        %1413 = vmatpush1.bf16.msra.mxu0 0
        %1414 = vmatprep.subr.bf16.mxu0 0
        %1415 = vmatpush1.bf16.msra.mxu0 0
        %1416 = vmatprep.subr.bf16.mxu0 0
        %1417 = vmatpush1.bf16.msra.mxu0 0
        %1418 = vmatprep.subr.bf16.mxu0 0
        %1419 = vmatpush1.bf16.msra.mxu0 %v1403
        %1420 = vmatprep.subr.bf16.mxu0 0
        %1421 = vmatpush1.bf16.msra.mxu0 %v1402
        %1422 = vmatprep.subr.bf16.mxu0 0
        %1423 = vmatpush2.bf16.msra.mxu0 0
        %1424 = vmatprep.subr.bf16.mxu0 0
        %1425 = vmatpush2.bf16.msra.mxu0 0
        %1426 = vmatprep.subr.bf16.mxu0 0
        %1427 = vmatpush2.bf16.msra.mxu0 0
        %1428 = vmatprep.subr.bf16.mxu0 0
        %1429 = vmatpush2.bf16.msra.mxu0 0
        %1430 = vmatprep.subr.bf16.mxu0 0
        %1431 = vmatpush2.bf16.msra.mxu0 0
        %1432 = vmatprep.subr.bf16.mxu0 0
        %1433 = vmatpush2.bf16.msra.mxu0 0
        %1434 = vmatprep.subr.bf16.mxu0 0
        %1435 = vmatpush2.bf16.msra.mxu0 0
        %1436 = vmatprep.subr.bf16.mxu0 0
        %1437 = vmatpush2.bf16.msra.mxu0 0
        %1438 = vmatprep.mubr.bf16.mxu0 0
        %1439 = vmatmul.mubr.bf16.gmra.mxu0 %v1338
        %v1440 = vpop.f32.mrf.mxu0
        %v1441 = vadd.f32 %v1392, %v1440
        %v1442 = vpop.f32.mrf.mxu0
        %v1443 = vpop.f32.mrf.mxu0
        %v1444 = vadd.f32 %v1392, %v1443
        %v1445 = vpop.f32.mrf.mxu0
        %1446 = vdwg.mxu0
        %v1447 = vld [vmem:[%s1088] sm:$0xf]
        %v1448 = vld [vmem:[%s1088 + $0x4] sm:$0xf]
        %v1449 = vld [vmem:[%s1088 + $0x8] sm:$0xf]
        %v1450 = vld [vmem:[%s1088 + $0xc] sm:$0xf]
        %v1451 = vld [vmem:[%s1100] sm:$0x1]
        %v1453 = vlaneseq
        %v1454 = vshrl.u32 %v1453, 7
        %v1455 = vsub.s32 0, %v1454
        %v1456 = vrot.slane %v1451, %v1455
        %v1462 = vunpack.c.l.b16 %v1447
        %v1463 = vunpack.c.l.b16 %v1448
        %v1464 = vunpack.c.l.b16 %v1449
        %v1465 = vunpack.c.l.b16 %v1450
        %v1466 = vpack.c.b16 %v1463, %v1462
        %v1467 = vpack.c.b16 %v1465, %v1464
        %1470 = vmatprep.subr.bf16.mxu0 0
        %1471 = vmatpush1.bf16.msra.mxu0 0
        %1472 = vmatprep.subr.bf16.mxu0 0
        %1473 = vmatpush1.bf16.msra.mxu0 0
        %1474 = vmatprep.subr.bf16.mxu0 0
        %1475 = vmatpush1.bf16.msra.mxu0 0
        %1476 = vmatprep.subr.bf16.mxu0 0
        %1477 = vmatpush1.bf16.msra.mxu0 0
        %1478 = vmatprep.subr.bf16.mxu0 0
        %1479 = vmatpush1.bf16.msra.mxu0 0
        %1480 = vmatprep.subr.bf16.mxu0 0
        %1481 = vmatpush1.bf16.msra.mxu0 0
        %1482 = vmatprep.subr.bf16.mxu0 0
        %1483 = vmatpush1.bf16.msra.mxu0 %v1467
        %1484 = vmatprep.subr.bf16.mxu0 0
        %1485 = vmatpush1.bf16.msra.mxu0 %v1466
        %1486 = vmatprep.subr.bf16.mxu0 0
        %1487 = vmatpush2.bf16.msra.mxu0 0
        %1488 = vmatprep.subr.bf16.mxu0 0
        %1489 = vmatpush2.bf16.msra.mxu0 0
        %1490 = vmatprep.subr.bf16.mxu0 0
        %1491 = vmatpush2.bf16.msra.mxu0 0
        %1492 = vmatprep.subr.bf16.mxu0 0
        %1493 = vmatpush2.bf16.msra.mxu0 0
        %1494 = vmatprep.subr.bf16.mxu0 0
        %1495 = vmatpush2.bf16.msra.mxu0 0
        %1496 = vmatprep.subr.bf16.mxu0 0
        %1497 = vmatpush2.bf16.msra.mxu0 0
        %1498 = vmatprep.subr.bf16.mxu0 0
        %1499 = vmatpush2.bf16.msra.mxu0 0
        %1500 = vmatprep.subr.bf16.mxu0 0
        %1501 = vmatpush2.bf16.msra.mxu0 0
        %1502 = vmatprep.mubr.bf16.mxu0 0
        %1503 = vmatmul.mubr.bf16.gmra.mxu0 %v1338
        %v1504 = vpop.f32.mrf.mxu0
        %v1505 = vadd.f32 %v1456, %v1504
        %v1506 = vpop.f32.mrf.mxu0
        %v1507 = vpop.f32.mrf.mxu0
        %v1508 = vadd.f32 %v1456, %v1507
        %v1509 = vpop.f32.mrf.mxu0
        %1510 = vdwg.mxu0
        %v1511 = vpack.c.bf16 %v1382, %v1381
        %v1513 = vunpack.c.l.b16 %v1511
        %v1514 = vunpack.c.h.b16 %v1511
        %v1515 = vpack.c.b16 %v1513, %v1513
        %v1516 = vpack.c.b16 %v1514, %v1514
        %v1517 = vpack.c.bf16 %v1444, %v1441
        %v1519 = vunpack.c.l.b16 %v1517
        %v1520 = vunpack.c.h.b16 %v1517
        %v1521 = vpack.c.b16 %v1519, %v1519
        %v1522 = vpack.c.b16 %v1520, %v1520
        %v1523 = vpack.c.bf16 %v1508, %v1505
        %v1525 = vunpack.c.l.b16 %v1523
        %v1526 = vunpack.c.h.b16 %v1523
        %v1527 = vpack.c.b16 %v1525, %v1525
        %v1528 = vpack.c.b16 %v1526, %v1526
        %vm1529 = vcmask 64512
        %v1531 = vsel %vm1529, %v1515, 0
        %v1534 = vsel %vm1529, %v1521, 0
        %1536 = vmatprep.subr.bf16.mxu0 0
        %1537 = vmatpush1.bf16.xpose.msra.mxu0 0
        %1538 = vmatprep.subr.bf16.mxu0 0
        %1539 = vmatpush1.bf16.xpose.msra.mxu0 0
        %1540 = vmatprep.subr.bf16.mxu0 0
        %1541 = vmatpush1.bf16.xpose.msra.mxu0 0
        %1542 = vmatprep.subr.bf16.mxu0 0
        %1543 = vmatpush1.bf16.xpose.msra.mxu0 0
        %1544 = vmatprep.subr.bf16.mxu0 0
        %1545 = vmatpush1.bf16.xpose.msra.mxu0 0
        %1546 = vmatprep.subr.bf16.mxu0 0
        %1547 = vmatpush1.bf16.xpose.msra.mxu0 0
        %1548 = vmatprep.subr.bf16.mxu0 0
        %1549 = vmatpush1.bf16.xpose.msra.mxu0 0
        %1550 = vmatprep.subr.bf16.mxu0 0
        %1551 = vmatpush1.bf16.xpose.msra.mxu0 %v1534
        %1552 = vmatprep.subr.bf16.mxu0 0
        %1553 = vmatpush2.bf16.xpose.msra.mxu0 0
        %1554 = vmatprep.subr.bf16.mxu0 0
        %1555 = vmatpush2.bf16.xpose.msra.mxu0 0
        %1556 = vmatprep.subr.bf16.mxu0 0
        %1557 = vmatpush2.bf16.xpose.msra.mxu0 0
        %1558 = vmatprep.subr.bf16.mxu0 0
        %1559 = vmatpush2.bf16.xpose.msra.mxu0 0
        %1560 = vmatprep.subr.bf16.mxu0 0
        %1561 = vmatpush2.bf16.xpose.msra.mxu0 0
        %1562 = vmatprep.subr.bf16.mxu0 0
        %1563 = vmatpush2.bf16.xpose.msra.mxu0 0
        %1564 = vmatprep.subr.bf16.mxu0 0
        %1565 = vmatpush2.bf16.xpose.msra.mxu0 0
        %1566 = vmatprep.subr.bf16.mxu0 0
        %1567 = vmatpush2.bf16.xpose.msra.mxu0 0
        %1568 = vmatprep.mubr.bf16.mxu0 0
        %1569 = vmatmul.mubr.bf16.gmra.mxu0 %v1531
        %v1570 = vpop.f32.mrf.mxu0
        %v1571 = vadd.f32 0.0, %v1570
        %v1572 = vpop.f32.mrf.mxu0
        %v1573 = vpop.f32.mrf.mxu0
        %v1574 = vpop.f32.mrf.mxu0
        %1575 = vdwg.mxu0
        %v1577 = vsel %vm1529, %v1516, 0
        %v1580 = vsel %vm1529, %v1522, 0
        %1582 = vmatprep.subr.bf16.mxu0 0
        %1583 = vmatpush1.bf16.xpose.msra.mxu0 0
        %1584 = vmatprep.subr.bf16.mxu0 0
        %1585 = vmatpush1.bf16.xpose.msra.mxu0 0
        %1586 = vmatprep.subr.bf16.mxu0 0
        %1587 = vmatpush1.bf16.xpose.msra.mxu0 0
        %1588 = vmatprep.subr.bf16.mxu0 0
        %1589 = vmatpush1.bf16.xpose.msra.mxu0 0
        %1590 = vmatprep.subr.bf16.mxu0 0
        %1591 = vmatpush1.bf16.xpose.msra.mxu0 0
        %1592 = vmatprep.subr.bf16.mxu0 0
        %1593 = vmatpush1.bf16.xpose.msra.mxu0 0
        %1594 = vmatprep.subr.bf16.mxu0 0
        %1595 = vmatpush1.bf16.xpose.msra.mxu0 0
        %1596 = vmatprep.subr.bf16.mxu0 0
        %1597 = vmatpush1.bf16.xpose.msra.mxu0 %v1580
        %1598 = vmatprep.subr.bf16.mxu0 0
        %1599 = vmatpush2.bf16.xpose.msra.mxu0 0
        %1600 = vmatprep.subr.bf16.mxu0 0
        %1601 = vmatpush2.bf16.xpose.msra.mxu0 0
        %1602 = vmatprep.subr.bf16.mxu0 0
        %1603 = vmatpush2.bf16.xpose.msra.mxu0 0
        %1604 = vmatprep.subr.bf16.mxu0 0
        %1605 = vmatpush2.bf16.xpose.msra.mxu0 0
        %1606 = vmatprep.subr.bf16.mxu0 0
        %1607 = vmatpush2.bf16.xpose.msra.mxu0 0
        %1608 = vmatprep.subr.bf16.mxu0 0
        %1609 = vmatpush2.bf16.xpose.msra.mxu0 0
        %1610 = vmatprep.subr.bf16.mxu0 0
        %1611 = vmatpush2.bf16.xpose.msra.mxu0 0
        %1612 = vmatprep.subr.bf16.mxu0 0
        %1613 = vmatpush2.bf16.xpose.msra.mxu0 0
        %1614 = vmatprep.mubr.bf16.mxu0 0
        %1615 = vmatmul.mubr.bf16.gmra.mxu0 %v1577
        %v1616 = vpop.f32.mrf.mxu0
        %v1617 = vadd.f32 0.0, %v1616
        %v1618 = vpop.f32.mrf.mxu0
        %v1619 = vpop.f32.mrf.mxu0
        %v1620 = vpop.f32.mrf.mxu0
        %1621 = vdwg.mxu0
        %v1622 = vsel %vm1529, %v1571, -inf
        %1623 = vmax.xlane.f32.xlu0 %v1622
        %v1624 = vpop.xlane.xlu0 %1623
        %v1625 = vsel %vm1529, %v1617, -inf
        %1626 = vmax.xlane.f32.xlu0 %v1625
        %v1627 = vpop.xlane.xlu0 %1626
        %v1628 = vsub.f32 %v1571, %v1624
        %v1629 = vsub.f32 %v1617, %v1627
        %v1630 = vmul.f32 %v1628, 1.442695
        %v1631 = vpow.pop %v1630
        %v1632 = vmul.f32 %v1629, 1.442695
        %v1633 = vpow.pop %v1632
        %v1634 = vsel %vm1529, %v1631, 0.0
        %1635 = vadd.xlane.f32.xlu0 %v1634
        %v1636 = vpop.xlane.xlu0 %1635
        %v1637 = vsel %vm1529, %v1633, 0.0
        %1638 = vadd.xlane.f32.xlu0 %v1637
        %v1639 = vpop.xlane.xlu0 %1638
        %v1640 = vrcp.pop %v1636
        %v1641 = vmul.f32 %v1631, %v1640
        %v1642 = vrcp.pop %v1639
        %v1643 = vmul.f32 %v1633, %v1642
        %v1644 = vpack.c.bf16 %v1641, %v1641
        %v1645 = vpack.c.bf16 %v1643, %v1643
        %v1647 = vsel %vm1529, %v1644, 0
        %vm1649 = vcmask 1043456
        %v1651 = vsel %vm1649, %v1527, 0
        %1653 = vmatprep.subr.bf16.mxu0 0
        %1654 = vmatpush1.bf16.msra.mxu0 0
        %1655 = vmatprep.subr.bf16.mxu0 0
        %1656 = vmatpush1.bf16.msra.mxu0 0
        %1657 = vmatprep.subr.bf16.mxu0 0
        %1658 = vmatpush1.bf16.msra.mxu0 0
        %1659 = vmatprep.subr.bf16.mxu0 0
        %1660 = vmatpush1.bf16.msra.mxu0 0
        %1661 = vmatprep.subr.bf16.mxu0 0
        %1662 = vmatpush1.bf16.msra.mxu0 0
        %1663 = vmatprep.subr.bf16.mxu0 0
        %1664 = vmatpush1.bf16.msra.mxu0 0
        %1665 = vmatprep.subr.bf16.mxu0 0
        %1666 = vmatpush1.bf16.msra.mxu0 0
        %1667 = vmatprep.subr.bf16.mxu0 0
        %1668 = vmatpush1.bf16.msra.mxu0 %v1651
        %1669 = vmatprep.subr.bf16.mxu0 0
        %1670 = vmatpush2.bf16.msra.mxu0 0
        %1671 = vmatprep.subr.bf16.mxu0 0
        %1672 = vmatpush2.bf16.msra.mxu0 0
        %1673 = vmatprep.subr.bf16.mxu0 0
        %1674 = vmatpush2.bf16.msra.mxu0 0
        %1675 = vmatprep.subr.bf16.mxu0 0
        %1676 = vmatpush2.bf16.msra.mxu0 0
        %1677 = vmatprep.subr.bf16.mxu0 0
        %1678 = vmatpush2.bf16.msra.mxu0 0
        %1679 = vmatprep.subr.bf16.mxu0 0
        %1680 = vmatpush2.bf16.msra.mxu0 0
        %1681 = vmatprep.subr.bf16.mxu0 0
        %1682 = vmatpush2.bf16.msra.mxu0 0
        %1683 = vmatprep.subr.bf16.mxu0 0
        %1684 = vmatpush2.bf16.msra.mxu0 0
        %1685 = vmatprep.mubr.bf16.mxu0 0
        %1686 = vmatmul.mubr.bf16.gmra.mxu0 %v1647
        %v1687 = vpop.f32.mrf.mxu0
        %v1688 = vadd.f32 0.0, %v1687
        %v1689 = vpop.f32.mrf.mxu0
        %v1690 = vpop.f32.mrf.mxu0
        %v1691 = vpop.f32.mrf.mxu0
        %1692 = vdwg.mxu0
        %v1694 = vsel %vm1529, %v1645, 0
        %v1697 = vsel %vm1649, %v1528, 0
        %1699 = vmatprep.subr.bf16.mxu0 0
        %1700 = vmatpush1.bf16.msra.mxu0 0
        %1701 = vmatprep.subr.bf16.mxu0 0
        %1702 = vmatpush1.bf16.msra.mxu0 0
        %1703 = vmatprep.subr.bf16.mxu0 0
        %1704 = vmatpush1.bf16.msra.mxu0 0
        %1705 = vmatprep.subr.bf16.mxu0 0
        %1706 = vmatpush1.bf16.msra.mxu0 0
        %1707 = vmatprep.subr.bf16.mxu0 0
        %1708 = vmatpush1.bf16.msra.mxu0 0
        %1709 = vmatprep.subr.bf16.mxu0 0
        %1710 = vmatpush1.bf16.msra.mxu0 0
        %1711 = vmatprep.subr.bf16.mxu0 0
        %1712 = vmatpush1.bf16.msra.mxu0 0
        %1713 = vmatprep.subr.bf16.mxu0 0
        %1714 = vmatpush1.bf16.msra.mxu0 %v1697
        %1715 = vmatprep.subr.bf16.mxu0 0
        %1716 = vmatpush2.bf16.msra.mxu0 0
        %1717 = vmatprep.subr.bf16.mxu0 0
        %1718 = vmatpush2.bf16.msra.mxu0 0
        %1719 = vmatprep.subr.bf16.mxu0 0
        %1720 = vmatpush2.bf16.msra.mxu0 0
        %1721 = vmatprep.subr.bf16.mxu0 0
        %1722 = vmatpush2.bf16.msra.mxu0 0
        %1723 = vmatprep.subr.bf16.mxu0 0
        %1724 = vmatpush2.bf16.msra.mxu0 0
        %1725 = vmatprep.subr.bf16.mxu0 0
        %1726 = vmatpush2.bf16.msra.mxu0 0
        %1727 = vmatprep.subr.bf16.mxu0 0
        %1728 = vmatpush2.bf16.msra.mxu0 0
        %1729 = vmatprep.subr.bf16.mxu0 0
        %1730 = vmatpush2.bf16.msra.mxu0 0
        %1731 = vmatprep.mubr.bf16.mxu0 0
        %1732 = vmatmul.mubr.bf16.gmra.mxu0 %v1694
        %v1733 = vpop.f32.mrf.mxu0
        %v1734 = vadd.f32 0.0, %v1733
        %v1735 = vpop.f32.mrf.mxu0
        %v1736 = vpop.f32.mrf.mxu0
        %v1737 = vpop.f32.mrf.mxu0
        %1738 = vdwg.mxu0
        %v1739 = vpack.c.bf16 %v1734, %v1688
        %v1740 = vld [vmem:[%s1105] sm:$0xf]
        %s1741 = scalar_lea.vmem %s1078, 16
        %v1742 = vld [vmem:[%s1741] sm:$0xf]
        %v1743 = vld [vmem:[%s1741 + $0x4] sm:$0xf]
        %v1744 = vld [vmem:[%s1741 + $0x8] sm:$0xf]
        %v1745 = vld [vmem:[%s1741 + $0xc] sm:$0xf]
        %s1746 = scalar_lea.vmem %s1092, 1
        %v1747 = vld [vmem:[%s1746] sm:$0x1]
        %v1749 = vlaneseq
        %v1750 = vshrl.u32 %v1749, 7
        %v1751 = vsub.s32 0, %v1750
        %v1752 = vrot.slane %v1747, %v1751
        %v1758 = vunpack.c.l.b16 %v1742
        %v1759 = vunpack.c.l.b16 %v1743
        %v1760 = vunpack.c.l.b16 %v1744
        %v1761 = vunpack.c.l.b16 %v1745
        %v1762 = vpack.c.b16 %v1759, %v1758
        %v1763 = vpack.c.b16 %v1761, %v1760
        %1766 = vmatprep.subr.bf16.mxu0 0
        %1767 = vmatpush1.bf16.msra.mxu0 0
        %1768 = vmatprep.subr.bf16.mxu0 0
        %1769 = vmatpush1.bf16.msra.mxu0 0
        %1770 = vmatprep.subr.bf16.mxu0 0
        %1771 = vmatpush1.bf16.msra.mxu0 0
        %1772 = vmatprep.subr.bf16.mxu0 0
        %1773 = vmatpush1.bf16.msra.mxu0 0
        %1774 = vmatprep.subr.bf16.mxu0 0
        %1775 = vmatpush1.bf16.msra.mxu0 0
        %1776 = vmatprep.subr.bf16.mxu0 0
        %1777 = vmatpush1.bf16.msra.mxu0 0
        %1778 = vmatprep.subr.bf16.mxu0 0
        %1779 = vmatpush1.bf16.msra.mxu0 %v1763
        %1780 = vmatprep.subr.bf16.mxu0 0
        %1781 = vmatpush1.bf16.msra.mxu0 %v1762
        %1782 = vmatprep.subr.bf16.mxu0 0
        %1783 = vmatpush2.bf16.msra.mxu0 0
        %1784 = vmatprep.subr.bf16.mxu0 0
        %1785 = vmatpush2.bf16.msra.mxu0 0
        %1786 = vmatprep.subr.bf16.mxu0 0
        %1787 = vmatpush2.bf16.msra.mxu0 0
        %1788 = vmatprep.subr.bf16.mxu0 0
        %1789 = vmatpush2.bf16.msra.mxu0 0
        %1790 = vmatprep.subr.bf16.mxu0 0
        %1791 = vmatpush2.bf16.msra.mxu0 0
        %1792 = vmatprep.subr.bf16.mxu0 0
        %1793 = vmatpush2.bf16.msra.mxu0 0
        %1794 = vmatprep.subr.bf16.mxu0 0
        %1795 = vmatpush2.bf16.msra.mxu0 0
        %1796 = vmatprep.subr.bf16.mxu0 0
        %1797 = vmatpush2.bf16.msra.mxu0 0
        %1798 = vmatprep.mubr.bf16.mxu0 0
        %1799 = vmatmul.mubr.bf16.gmra.mxu0 %v1338
        %v1800 = vpop.f32.mrf.mxu0
        %v1801 = vadd.f32 %v1752, %v1800
        %v1802 = vpop.f32.mrf.mxu0
        %v1803 = vpop.f32.mrf.mxu0
        %v1804 = vadd.f32 %v1752, %v1803
        %v1805 = vpop.f32.mrf.mxu0
        %1806 = vdwg.mxu0
        %v1807 = vmul.f32 %v1801, 0.35355338
        %v1808 = vmul.f32 %v1804, 0.35355338
        %s1809 = scalar_lea.vmem %s1083, 16
        %v1810 = vld [vmem:[%s1809] sm:$0xf]
        %v1811 = vld [vmem:[%s1809 + $0x4] sm:$0xf]
        %v1812 = vld [vmem:[%s1809 + $0x8] sm:$0xf]
        %v1813 = vld [vmem:[%s1809 + $0xc] sm:$0xf]
        %s1814 = scalar_lea.vmem %s1096, 1
        %v1815 = vld [vmem:[%s1814] sm:$0x1]
        %v1817 = vlaneseq
        %v1818 = vshrl.u32 %v1817, 7
        %v1819 = vsub.s32 0, %v1818
        %v1820 = vrot.slane %v1815, %v1819
        %v1826 = vunpack.c.l.b16 %v1810
        %v1827 = vunpack.c.l.b16 %v1811
        %v1828 = vunpack.c.l.b16 %v1812
        %v1829 = vunpack.c.l.b16 %v1813
        %v1830 = vpack.c.b16 %v1827, %v1826
        %v1831 = vpack.c.b16 %v1829, %v1828
        %1834 = vmatprep.subr.bf16.mxu0 0
        %1835 = vmatpush1.bf16.msra.mxu0 0
        %1836 = vmatprep.subr.bf16.mxu0 0
        %1837 = vmatpush1.bf16.msra.mxu0 0
        %1838 = vmatprep.subr.bf16.mxu0 0
        %1839 = vmatpush1.bf16.msra.mxu0 0
        %1840 = vmatprep.subr.bf16.mxu0 0
        %1841 = vmatpush1.bf16.msra.mxu0 0
        %1842 = vmatprep.subr.bf16.mxu0 0
        %1843 = vmatpush1.bf16.msra.mxu0 0
        %1844 = vmatprep.subr.bf16.mxu0 0
        %1845 = vmatpush1.bf16.msra.mxu0 0
        %1846 = vmatprep.subr.bf16.mxu0 0
        %1847 = vmatpush1.bf16.msra.mxu0 %v1831
        %1848 = vmatprep.subr.bf16.mxu0 0
        %1849 = vmatpush1.bf16.msra.mxu0 %v1830
        %1850 = vmatprep.subr.bf16.mxu0 0
        %1851 = vmatpush2.bf16.msra.mxu0 0
        %1852 = vmatprep.subr.bf16.mxu0 0
        %1853 = vmatpush2.bf16.msra.mxu0 0
        %1854 = vmatprep.subr.bf16.mxu0 0
        %1855 = vmatpush2.bf16.msra.mxu0 0
        %1856 = vmatprep.subr.bf16.mxu0 0
        %1857 = vmatpush2.bf16.msra.mxu0 0
        %1858 = vmatprep.subr.bf16.mxu0 0
        %1859 = vmatpush2.bf16.msra.mxu0 0
        %1860 = vmatprep.subr.bf16.mxu0 0
        %1861 = vmatpush2.bf16.msra.mxu0 0
        %1862 = vmatprep.subr.bf16.mxu0 0
        %1863 = vmatpush2.bf16.msra.mxu0 0
        %1864 = vmatprep.subr.bf16.mxu0 0
        %1865 = vmatpush2.bf16.msra.mxu0 0
        %1866 = vmatprep.mubr.bf16.mxu0 0
        %1867 = vmatmul.mubr.bf16.gmra.mxu0 %v1338
        %v1868 = vpop.f32.mrf.mxu0
        %v1869 = vadd.f32 %v1820, %v1868
        %v1870 = vpop.f32.mrf.mxu0
        %v1871 = vpop.f32.mrf.mxu0
        %v1872 = vadd.f32 %v1820, %v1871
        %v1873 = vpop.f32.mrf.mxu0
        %1874 = vdwg.mxu0
        %s1875 = scalar_lea.vmem %s1088, 16
        %v1876 = vld [vmem:[%s1875] sm:$0xf]
        %v1877 = vld [vmem:[%s1875 + $0x4] sm:$0xf]
        %v1878 = vld [vmem:[%s1875 + $0x8] sm:$0xf]
        %v1879 = vld [vmem:[%s1875 + $0xc] sm:$0xf]
        %s1880 = scalar_lea.vmem %s1100, 1
        %v1881 = vld [vmem:[%s1880] sm:$0x1]
        %v1883 = vlaneseq
        %v1884 = vshrl.u32 %v1883, 7
        %v1885 = vsub.s32 0, %v1884
        %v1886 = vrot.slane %v1881, %v1885
        %v1892 = vunpack.c.l.b16 %v1876
        %v1893 = vunpack.c.l.b16 %v1877
        %v1894 = vunpack.c.l.b16 %v1878
        %v1895 = vunpack.c.l.b16 %v1879
        %v1896 = vpack.c.b16 %v1893, %v1892
        %v1897 = vpack.c.b16 %v1895, %v1894
        %1900 = vmatprep.subr.bf16.mxu0 0
        %1901 = vmatpush1.bf16.msra.mxu0 0
        %1902 = vmatprep.subr.bf16.mxu0 0
        %1903 = vmatpush1.bf16.msra.mxu0 0
        %1904 = vmatprep.subr.bf16.mxu0 0
        %1905 = vmatpush1.bf16.msra.mxu0 0
        %1906 = vmatprep.subr.bf16.mxu0 0
        %1907 = vmatpush1.bf16.msra.mxu0 0
        %1908 = vmatprep.subr.bf16.mxu0 0
        %1909 = vmatpush1.bf16.msra.mxu0 0
        %1910 = vmatprep.subr.bf16.mxu0 0
        %1911 = vmatpush1.bf16.msra.mxu0 0
        %1912 = vmatprep.subr.bf16.mxu0 0
        %1913 = vmatpush1.bf16.msra.mxu0 %v1897
        %1914 = vmatprep.subr.bf16.mxu0 0
        %1915 = vmatpush1.bf16.msra.mxu0 %v1896
        %1916 = vmatprep.subr.bf16.mxu0 0
        %1917 = vmatpush2.bf16.msra.mxu0 0
        %1918 = vmatprep.subr.bf16.mxu0 0
        %1919 = vmatpush2.bf16.msra.mxu0 0
        %1920 = vmatprep.subr.bf16.mxu0 0
        %1921 = vmatpush2.bf16.msra.mxu0 0
        %1922 = vmatprep.subr.bf16.mxu0 0
        %1923 = vmatpush2.bf16.msra.mxu0 0
        %1924 = vmatprep.subr.bf16.mxu0 0
        %1925 = vmatpush2.bf16.msra.mxu0 0
        %1926 = vmatprep.subr.bf16.mxu0 0
        %1927 = vmatpush2.bf16.msra.mxu0 0
        %1928 = vmatprep.subr.bf16.mxu0 0
        %1929 = vmatpush2.bf16.msra.mxu0 0
        %1930 = vmatprep.subr.bf16.mxu0 0
        %1931 = vmatpush2.bf16.msra.mxu0 0
        %1932 = vmatprep.mubr.bf16.mxu0 0
        %1933 = vmatmul.mubr.bf16.gmra.mxu0 %v1338
        %v1934 = vpop.f32.mrf.mxu0
        %v1935 = vadd.f32 %v1886, %v1934
        %v1936 = vpop.f32.mrf.mxu0
        %v1937 = vpop.f32.mrf.mxu0
        %v1938 = vadd.f32 %v1886, %v1937
        %v1939 = vpop.f32.mrf.mxu0
        %1940 = vdwg.mxu0
        %v1941 = vpack.c.bf16 %v1808, %v1807
        %v1943 = vunpack.c.l.b16 %v1941
        %v1944 = vunpack.c.h.b16 %v1941
        %v1945 = vpack.c.b16 %v1943, %v1943
        %v1946 = vpack.c.b16 %v1944, %v1944
        %v1947 = vpack.c.bf16 %v1872, %v1869
        %v1949 = vunpack.c.l.b16 %v1947
        %v1950 = vunpack.c.h.b16 %v1947
        %v1951 = vpack.c.b16 %v1949, %v1949
        %v1952 = vpack.c.b16 %v1950, %v1950
        %v1953 = vpack.c.bf16 %v1938, %v1935
        %v1955 = vunpack.c.l.b16 %v1953
        %v1956 = vunpack.c.h.b16 %v1953
        %v1957 = vpack.c.b16 %v1955, %v1955
        %v1958 = vpack.c.b16 %v1956, %v1956
        %v1960 = vsel %vm1529, %v1945, 0
        %v1963 = vsel %vm1529, %v1951, 0
        %1965 = vmatprep.subr.bf16.mxu0 0
        %1966 = vmatpush1.bf16.xpose.msra.mxu0 0
        %1967 = vmatprep.subr.bf16.mxu0 0
        %1968 = vmatpush1.bf16.xpose.msra.mxu0 0
        %1969 = vmatprep.subr.bf16.mxu0 0
        %1970 = vmatpush1.bf16.xpose.msra.mxu0 0
        %1971 = vmatprep.subr.bf16.mxu0 0
        %1972 = vmatpush1.bf16.xpose.msra.mxu0 0
        %1973 = vmatprep.subr.bf16.mxu0 0
        %1974 = vmatpush1.bf16.xpose.msra.mxu0 0
        %1975 = vmatprep.subr.bf16.mxu0 0
        %1976 = vmatpush1.bf16.xpose.msra.mxu0 0
        %1977 = vmatprep.subr.bf16.mxu0 0
        %1978 = vmatpush1.bf16.xpose.msra.mxu0 0
        %1979 = vmatprep.subr.bf16.mxu0 0
        %1980 = vmatpush1.bf16.xpose.msra.mxu0 %v1963
        %1981 = vmatprep.subr.bf16.mxu0 0
        %1982 = vmatpush2.bf16.xpose.msra.mxu0 0
        %1983 = vmatprep.subr.bf16.mxu0 0
        %1984 = vmatpush2.bf16.xpose.msra.mxu0 0
        %1985 = vmatprep.subr.bf16.mxu0 0
        %1986 = vmatpush2.bf16.xpose.msra.mxu0 0
        %1987 = vmatprep.subr.bf16.mxu0 0
        %1988 = vmatpush2.bf16.xpose.msra.mxu0 0
        %1989 = vmatprep.subr.bf16.mxu0 0
        %1990 = vmatpush2.bf16.xpose.msra.mxu0 0
        %1991 = vmatprep.subr.bf16.mxu0 0
        %1992 = vmatpush2.bf16.xpose.msra.mxu0 0
        %1993 = vmatprep.subr.bf16.mxu0 0
        %1994 = vmatpush2.bf16.xpose.msra.mxu0 0
        %1995 = vmatprep.subr.bf16.mxu0 0
        %1996 = vmatpush2.bf16.xpose.msra.mxu0 0
        %1997 = vmatprep.mubr.bf16.mxu0 0
        %1998 = vmatmul.mubr.bf16.gmra.mxu0 %v1960
        %v1999 = vpop.f32.mrf.mxu0
        %v2000 = vadd.f32 0.0, %v1999
        %v2001 = vpop.f32.mrf.mxu0
        %v2002 = vpop.f32.mrf.mxu0
        %v2003 = vpop.f32.mrf.mxu0
        %2004 = vdwg.mxu0
        %v2006 = vsel %vm1529, %v1946, 0
        %v2009 = vsel %vm1529, %v1952, 0
        %2011 = vmatprep.subr.bf16.mxu0 0
        %2012 = vmatpush1.bf16.xpose.msra.mxu0 0
        %2013 = vmatprep.subr.bf16.mxu0 0
        %2014 = vmatpush1.bf16.xpose.msra.mxu0 0
        %2015 = vmatprep.subr.bf16.mxu0 0
        %2016 = vmatpush1.bf16.xpose.msra.mxu0 0
        %2017 = vmatprep.subr.bf16.mxu0 0
        %2018 = vmatpush1.bf16.xpose.msra.mxu0 0
        %2019 = vmatprep.subr.bf16.mxu0 0
        %2020 = vmatpush1.bf16.xpose.msra.mxu0 0
        %2021 = vmatprep.subr.bf16.mxu0 0
        %2022 = vmatpush1.bf16.xpose.msra.mxu0 0
        %2023 = vmatprep.subr.bf16.mxu0 0
        %2024 = vmatpush1.bf16.xpose.msra.mxu0 0
        %2025 = vmatprep.subr.bf16.mxu0 0
        %2026 = vmatpush1.bf16.xpose.msra.mxu0 %v2009
        %2027 = vmatprep.subr.bf16.mxu0 0
        %2028 = vmatpush2.bf16.xpose.msra.mxu0 0
        %2029 = vmatprep.subr.bf16.mxu0 0
        %2030 = vmatpush2.bf16.xpose.msra.mxu0 0
        %2031 = vmatprep.subr.bf16.mxu0 0
        %2032 = vmatpush2.bf16.xpose.msra.mxu0 0
        %2033 = vmatprep.subr.bf16.mxu0 0
        %2034 = vmatpush2.bf16.xpose.msra.mxu0 0
        %2035 = vmatprep.subr.bf16.mxu0 0
        %2036 = vmatpush2.bf16.xpose.msra.mxu0 0
        %2037 = vmatprep.subr.bf16.mxu0 0
        %2038 = vmatpush2.bf16.xpose.msra.mxu0 0
        %2039 = vmatprep.subr.bf16.mxu0 0
        %2040 = vmatpush2.bf16.xpose.msra.mxu0 0
        %2041 = vmatprep.subr.bf16.mxu0 0
        %2042 = vmatpush2.bf16.xpose.msra.mxu0 0
        %2043 = vmatprep.mubr.bf16.mxu0 0
        %2044 = vmatmul.mubr.bf16.gmra.mxu0 %v2006
        %v2045 = vpop.f32.mrf.mxu0
        %v2046 = vadd.f32 0.0, %v2045
        %v2047 = vpop.f32.mrf.mxu0
        %v2048 = vpop.f32.mrf.mxu0
        %v2049 = vpop.f32.mrf.mxu0
        %2050 = vdwg.mxu0
        %v2051 = vsel %vm1529, %v2000, -inf
        %2052 = vmax.xlane.f32.xlu0 %v2051
        %v2053 = vpop.xlane.xlu0 %2052
        %v2054 = vsel %vm1529, %v2046, -inf
        %2055 = vmax.xlane.f32.xlu0 %v2054
        %v2056 = vpop.xlane.xlu0 %2055
        %v2057 = vsub.f32 %v2000, %v2053
        %v2058 = vsub.f32 %v2046, %v2056
        %v2059 = vmul.f32 %v2057, 1.442695
        %v2060 = vpow.pop %v2059
        %v2061 = vmul.f32 %v2058, 1.442695
        %v2062 = vpow.pop %v2061
        %v2063 = vsel %vm1529, %v2060, 0.0
        %2064 = vadd.xlane.f32.xlu0 %v2063
        %v2065 = vpop.xlane.xlu0 %2064
        %v2066 = vsel %vm1529, %v2062, 0.0
        %2067 = vadd.xlane.f32.xlu0 %v2066
        %v2068 = vpop.xlane.xlu0 %2067
        %v2069 = vrcp.pop %v2065
        %v2070 = vmul.f32 %v2060, %v2069
        %v2071 = vrcp.pop %v2068
        %v2072 = vmul.f32 %v2062, %v2071
        %v2073 = vpack.c.bf16 %v2070, %v2070
        %v2074 = vpack.c.bf16 %v2072, %v2072
        %v2076 = vsel %vm1529, %v2073, 0
        %v2079 = vsel %vm1649, %v1957, 0
        %2081 = vmatprep.subr.bf16.mxu0 0
        %2082 = vmatpush1.bf16.msra.mxu0 0
        %2083 = vmatprep.subr.bf16.mxu0 0
        %2084 = vmatpush1.bf16.msra.mxu0 0
        %2085 = vmatprep.subr.bf16.mxu0 0
        %2086 = vmatpush1.bf16.msra.mxu0 0
        %2087 = vmatprep.subr.bf16.mxu0 0
        %2088 = vmatpush1.bf16.msra.mxu0 0
        %2089 = vmatprep.subr.bf16.mxu0 0
        %2090 = vmatpush1.bf16.msra.mxu0 0
        %2091 = vmatprep.subr.bf16.mxu0 0
        %2092 = vmatpush1.bf16.msra.mxu0 0
        %2093 = vmatprep.subr.bf16.mxu0 0
        %2094 = vmatpush1.bf16.msra.mxu0 0
        %2095 = vmatprep.subr.bf16.mxu0 0
        %2096 = vmatpush1.bf16.msra.mxu0 %v2079
        %2097 = vmatprep.subr.bf16.mxu0 0
        %2098 = vmatpush2.bf16.msra.mxu0 0
        %2099 = vmatprep.subr.bf16.mxu0 0
        %2100 = vmatpush2.bf16.msra.mxu0 0
        %2101 = vmatprep.subr.bf16.mxu0 0
        %2102 = vmatpush2.bf16.msra.mxu0 0
        %2103 = vmatprep.subr.bf16.mxu0 0
        %2104 = vmatpush2.bf16.msra.mxu0 0
        %2105 = vmatprep.subr.bf16.mxu0 0
        %2106 = vmatpush2.bf16.msra.mxu0 0
        %2107 = vmatprep.subr.bf16.mxu0 0
        %2108 = vmatpush2.bf16.msra.mxu0 0
        %2109 = vmatprep.subr.bf16.mxu0 0
        %2110 = vmatpush2.bf16.msra.mxu0 0
        %2111 = vmatprep.subr.bf16.mxu0 0
        %2112 = vmatpush2.bf16.msra.mxu0 0
        %2113 = vmatprep.mubr.bf16.mxu0 0
        %2114 = vmatmul.mubr.bf16.gmra.mxu0 %v2076
        %v2115 = vpop.f32.mrf.mxu0
        %v2116 = vadd.f32 0.0, %v2115
        %v2117 = vpop.f32.mrf.mxu0
        %v2118 = vpop.f32.mrf.mxu0
        %v2119 = vpop.f32.mrf.mxu0
        %2120 = vdwg.mxu0
        %v2122 = vsel %vm1529, %v2074, 0
        %v2125 = vsel %vm1649, %v1958, 0
        %2127 = vmatprep.subr.bf16.mxu0 0
        %2128 = vmatpush1.bf16.msra.mxu0 0
        %2129 = vmatprep.subr.bf16.mxu0 0
        %2130 = vmatpush1.bf16.msra.mxu0 0
        %2131 = vmatprep.subr.bf16.mxu0 0
        %2132 = vmatpush1.bf16.msra.mxu0 0
        %2133 = vmatprep.subr.bf16.mxu0 0
        %2134 = vmatpush1.bf16.msra.mxu0 0
        %2135 = vmatprep.subr.bf16.mxu0 0
        %2136 = vmatpush1.bf16.msra.mxu0 0
        %2137 = vmatprep.subr.bf16.mxu0 0
        %2138 = vmatpush1.bf16.msra.mxu0 0
        %2139 = vmatprep.subr.bf16.mxu0 0
        %2140 = vmatpush1.bf16.msra.mxu0 0
        %2141 = vmatprep.subr.bf16.mxu0 0
        %2142 = vmatpush1.bf16.msra.mxu0 %v2125
        %2143 = vmatprep.subr.bf16.mxu0 0
        %2144 = vmatpush2.bf16.msra.mxu0 0
        %2145 = vmatprep.subr.bf16.mxu0 0
        %2146 = vmatpush2.bf16.msra.mxu0 0
        %2147 = vmatprep.subr.bf16.mxu0 0
        %2148 = vmatpush2.bf16.msra.mxu0 0
        %2149 = vmatprep.subr.bf16.mxu0 0
        %2150 = vmatpush2.bf16.msra.mxu0 0
        %2151 = vmatprep.subr.bf16.mxu0 0
        %2152 = vmatpush2.bf16.msra.mxu0 0
        %2153 = vmatprep.subr.bf16.mxu0 0
        %2154 = vmatpush2.bf16.msra.mxu0 0
        %2155 = vmatprep.subr.bf16.mxu0 0
        %2156 = vmatpush2.bf16.msra.mxu0 0
        %2157 = vmatprep.subr.bf16.mxu0 0
        %2158 = vmatpush2.bf16.msra.mxu0 0
        %2159 = vmatprep.mubr.bf16.mxu0 0
        %2160 = vmatmul.mubr.bf16.gmra.mxu0 %v2122
        %v2161 = vpop.f32.mrf.mxu0
        %v2162 = vadd.f32 0.0, %v2161
        %v2163 = vpop.f32.mrf.mxu0
        %v2164 = vpop.f32.mrf.mxu0
        %v2165 = vpop.f32.mrf.mxu0
        %2166 = vdwg.mxu0
        %v2167 = vpack.c.bf16 %v2162, %v2116
        %s2168 = scalar_lea.vmem %s1105, 4
        %v2169 = vld [vmem:[%s2168] sm:$0xf]
        %v2171 = vsel %vm1529, %v2167, 0
        %v2174 = vsel %vm1649, %v2169, 0
        %2176 = vmatprep.subr.bf16.mxu0 0
        %2177 = vmatpush1.bf16.msra.mxu0 0
        %2178 = vmatprep.subr.bf16.mxu0 0
        %2179 = vmatpush1.bf16.msra.mxu0 0
        %2180 = vmatprep.subr.bf16.mxu0 0
        %2181 = vmatpush1.bf16.msra.mxu0 0
        %2182 = vmatprep.subr.bf16.mxu0 0
        %2183 = vmatpush1.bf16.msra.mxu0 0
        %2184 = vmatprep.subr.bf16.mxu0 0
        %2185 = vmatpush1.bf16.msra.mxu0 0
        %2186 = vmatprep.subr.bf16.mxu0 0
        %2187 = vmatpush1.bf16.msra.mxu0 0
        %2188 = vmatprep.subr.bf16.mxu0 0
        %2189 = vmatpush1.bf16.msra.mxu0 0
        %2190 = vmatprep.subr.bf16.mxu0 0
        %2191 = vmatpush1.bf16.msra.mxu0 %v2174
        %2192 = vmatprep.subr.bf16.mxu0 0
        %2193 = vmatpush2.bf16.msra.mxu0 0
        %2194 = vmatprep.subr.bf16.mxu0 0
        %2195 = vmatpush2.bf16.msra.mxu0 0
        %2196 = vmatprep.subr.bf16.mxu0 0
        %2197 = vmatpush2.bf16.msra.mxu0 0
        %2198 = vmatprep.subr.bf16.mxu0 0
        %2199 = vmatpush2.bf16.msra.mxu0 0
        %2200 = vmatprep.subr.bf16.mxu0 0
        %2201 = vmatpush2.bf16.msra.mxu0 0
        %2202 = vmatprep.subr.bf16.mxu0 0
        %2203 = vmatpush2.bf16.msra.mxu0 0
        %2204 = vmatprep.subr.bf16.mxu0 0
        %2205 = vmatpush2.bf16.msra.mxu0 0
        %2206 = vmatprep.subr.bf16.mxu0 0
        %2207 = vmatpush2.bf16.msra.mxu0 0
        %2208 = vmatprep.mubr.bf16.mxu0 0
        %2209 = vmatmul.mubr.bf16.gmra.mxu0 %v2171
        %v2210 = vpop.f32.mrf.mxu0
        %v2211 = vadd.f32 0.0, %v2210
        %v2212 = vpop.f32.mrf.mxu0
        %v2213 = vpop.f32.mrf.mxu0
        %v2214 = vadd.f32 0.0, %v2213
        %v2215 = vpop.f32.mrf.mxu0
        %2216 = vdwg.mxu0
        %v2218 = vsel %vm1529, %v1739, 0
        %v2221 = vsel %vm1649, %v1740, 0
        %2223 = vmatprep.subr.bf16.mxu0 0
        %2224 = vmatpush1.bf16.msra.mxu0 0
        %2225 = vmatprep.subr.bf16.mxu0 0
        %2226 = vmatpush1.bf16.msra.mxu0 0
        %2227 = vmatprep.subr.bf16.mxu0 0
        %2228 = vmatpush1.bf16.msra.mxu0 0
        %2229 = vmatprep.subr.bf16.mxu0 0
        %2230 = vmatpush1.bf16.msra.mxu0 0
        %2231 = vmatprep.subr.bf16.mxu0 0
        %2232 = vmatpush1.bf16.msra.mxu0 0
        %2233 = vmatprep.subr.bf16.mxu0 0
        %2234 = vmatpush1.bf16.msra.mxu0 0
        %2235 = vmatprep.subr.bf16.mxu0 0
        %2236 = vmatpush1.bf16.msra.mxu0 0
        %2237 = vmatprep.subr.bf16.mxu0 0
        %2238 = vmatpush1.bf16.msra.mxu0 %v2221
        %2239 = vmatprep.subr.bf16.mxu0 0
        %2240 = vmatpush2.bf16.msra.mxu0 0
        %2241 = vmatprep.subr.bf16.mxu0 0
        %2242 = vmatpush2.bf16.msra.mxu0 0
        %2243 = vmatprep.subr.bf16.mxu0 0
        %2244 = vmatpush2.bf16.msra.mxu0 0
        %2245 = vmatprep.subr.bf16.mxu0 0
        %2246 = vmatpush2.bf16.msra.mxu0 0
        %2247 = vmatprep.subr.bf16.mxu0 0
        %2248 = vmatpush2.bf16.msra.mxu0 0
        %2249 = vmatprep.subr.bf16.mxu0 0
        %2250 = vmatpush2.bf16.msra.mxu0 0
        %2251 = vmatprep.subr.bf16.mxu0 0
        %2252 = vmatpush2.bf16.msra.mxu0 0
        %2253 = vmatprep.subr.bf16.mxu0 0
        %2254 = vmatpush2.bf16.msra.mxu0 0
        %2255 = vmatprep.mubr.bf16.mxu0 0
        %2256 = vmatmul.mubr.bf16.gmra.mxu0 %v2218
        %v2257 = vpop.f32.mrf.mxu0
        %v2258 = vadd.f32 %v2211, %v2257
        %v2259 = vpop.f32.mrf.mxu0
        %v2260 = vpop.f32.mrf.mxu0
        %v2261 = vadd.f32 %v2214, %v2260
        %v2262 = vpop.f32.mrf.mxu0
        %2263 = vdwg.mxu0
        %s2264 = scalar_lea.vmem %s1078, 32
        %v2265 = vld [vmem:[%s2264] sm:$0xf]
        %v2266 = vld [vmem:[%s2264 + $0x4] sm:$0xf]
        %v2267 = vld [vmem:[%s2264 + $0x8] sm:$0xf]
        %v2268 = vld [vmem:[%s2264 + $0xc] sm:$0xf]
        %s2269 = scalar_lea.vmem %s1092, 2
        %v2270 = vld [vmem:[%s2269] sm:$0x1]
        %v2272 = vlaneseq
        %v2273 = vshrl.u32 %v2272, 7
        %v2274 = vsub.s32 0, %v2273
        %v2275 = vrot.slane %v2270, %v2274
        %v2281 = vunpack.c.l.b16 %v2265
        %v2282 = vunpack.c.l.b16 %v2266
        %v2283 = vunpack.c.l.b16 %v2267
        %v2284 = vunpack.c.l.b16 %v2268
        %v2285 = vpack.c.b16 %v2282, %v2281
        %v2286 = vpack.c.b16 %v2284, %v2283
        %2289 = vmatprep.subr.bf16.mxu0 0
        %2290 = vmatpush1.bf16.msra.mxu0 0
        %2291 = vmatprep.subr.bf16.mxu0 0
        %2292 = vmatpush1.bf16.msra.mxu0 0
        %2293 = vmatprep.subr.bf16.mxu0 0
        %2294 = vmatpush1.bf16.msra.mxu0 0
        %2295 = vmatprep.subr.bf16.mxu0 0
        %2296 = vmatpush1.bf16.msra.mxu0 0
        %2297 = vmatprep.subr.bf16.mxu0 0
        %2298 = vmatpush1.bf16.msra.mxu0 0
        %2299 = vmatprep.subr.bf16.mxu0 0
        %2300 = vmatpush1.bf16.msra.mxu0 0
        %2301 = vmatprep.subr.bf16.mxu0 0
        %2302 = vmatpush1.bf16.msra.mxu0 %v2286
        %2303 = vmatprep.subr.bf16.mxu0 0
        %2304 = vmatpush1.bf16.msra.mxu0 %v2285
        %2305 = vmatprep.subr.bf16.mxu0 0
        %2306 = vmatpush2.bf16.msra.mxu0 0
        %2307 = vmatprep.subr.bf16.mxu0 0
        %2308 = vmatpush2.bf16.msra.mxu0 0
        %2309 = vmatprep.subr.bf16.mxu0 0
        %2310 = vmatpush2.bf16.msra.mxu0 0
        %2311 = vmatprep.subr.bf16.mxu0 0
        %2312 = vmatpush2.bf16.msra.mxu0 0
        %2313 = vmatprep.subr.bf16.mxu0 0
        %2314 = vmatpush2.bf16.msra.mxu0 0
        %2315 = vmatprep.subr.bf16.mxu0 0
        %2316 = vmatpush2.bf16.msra.mxu0 0
        %2317 = vmatprep.subr.bf16.mxu0 0
        %2318 = vmatpush2.bf16.msra.mxu0 0
        %2319 = vmatprep.subr.bf16.mxu0 0
        %2320 = vmatpush2.bf16.msra.mxu0 0
        %2321 = vmatprep.mubr.bf16.mxu0 0
        %2322 = vmatmul.mubr.bf16.gmra.mxu0 %v1338
        %v2323 = vpop.f32.mrf.mxu0
        %v2324 = vadd.f32 %v2275, %v2323
        %v2325 = vpop.f32.mrf.mxu0
        %v2326 = vpop.f32.mrf.mxu0
        %v2327 = vadd.f32 %v2275, %v2326
        %v2328 = vpop.f32.mrf.mxu0
        %2329 = vdwg.mxu0
        %v2330 = vmul.f32 %v2324, 0.35355338
        %v2331 = vmul.f32 %v2327, 0.35355338
        %s2332 = scalar_lea.vmem %s1083, 32
        %v2333 = vld [vmem:[%s2332] sm:$0xf]
        %v2334 = vld [vmem:[%s2332 + $0x4] sm:$0xf]
        %v2335 = vld [vmem:[%s2332 + $0x8] sm:$0xf]
        %v2336 = vld [vmem:[%s2332 + $0xc] sm:$0xf]
        %s2337 = scalar_lea.vmem %s1096, 2
        %v2338 = vld [vmem:[%s2337] sm:$0x1]
        %v2340 = vlaneseq
        %v2341 = vshrl.u32 %v2340, 7
        %v2342 = vsub.s32 0, %v2341
        %v2343 = vrot.slane %v2338, %v2342
        %v2349 = vunpack.c.l.b16 %v2333
        %v2350 = vunpack.c.l.b16 %v2334
        %v2351 = vunpack.c.l.b16 %v2335
        %v2352 = vunpack.c.l.b16 %v2336
        %v2353 = vpack.c.b16 %v2350, %v2349
        %v2354 = vpack.c.b16 %v2352, %v2351
        %2357 = vmatprep.subr.bf16.mxu0 0
        %2358 = vmatpush1.bf16.msra.mxu0 0
        %2359 = vmatprep.subr.bf16.mxu0 0
        %2360 = vmatpush1.bf16.msra.mxu0 0
        %2361 = vmatprep.subr.bf16.mxu0 0
        %2362 = vmatpush1.bf16.msra.mxu0 0
        %2363 = vmatprep.subr.bf16.mxu0 0
        %2364 = vmatpush1.bf16.msra.mxu0 0
        %2365 = vmatprep.subr.bf16.mxu0 0
        %2366 = vmatpush1.bf16.msra.mxu0 0
        %2367 = vmatprep.subr.bf16.mxu0 0
        %2368 = vmatpush1.bf16.msra.mxu0 0
        %2369 = vmatprep.subr.bf16.mxu0 0
        %2370 = vmatpush1.bf16.msra.mxu0 %v2354
        %2371 = vmatprep.subr.bf16.mxu0 0
        %2372 = vmatpush1.bf16.msra.mxu0 %v2353
        %2373 = vmatprep.subr.bf16.mxu0 0
        %2374 = vmatpush2.bf16.msra.mxu0 0
        %2375 = vmatprep.subr.bf16.mxu0 0
        %2376 = vmatpush2.bf16.msra.mxu0 0
        %2377 = vmatprep.subr.bf16.mxu0 0
        %2378 = vmatpush2.bf16.msra.mxu0 0
        %2379 = vmatprep.subr.bf16.mxu0 0
        %2380 = vmatpush2.bf16.msra.mxu0 0
        %2381 = vmatprep.subr.bf16.mxu0 0
        %2382 = vmatpush2.bf16.msra.mxu0 0
        %2383 = vmatprep.subr.bf16.mxu0 0
        %2384 = vmatpush2.bf16.msra.mxu0 0
        %2385 = vmatprep.subr.bf16.mxu0 0
        %2386 = vmatpush2.bf16.msra.mxu0 0
        %2387 = vmatprep.subr.bf16.mxu0 0
        %2388 = vmatpush2.bf16.msra.mxu0 0
        %2389 = vmatprep.mubr.bf16.mxu0 0
        %2390 = vmatmul.mubr.bf16.gmra.mxu0 %v1338
        %v2391 = vpop.f32.mrf.mxu0
        %v2392 = vadd.f32 %v2343, %v2391
        %v2393 = vpop.f32.mrf.mxu0
        %v2394 = vpop.f32.mrf.mxu0
        %v2395 = vadd.f32 %v2343, %v2394
        %v2396 = vpop.f32.mrf.mxu0
        %2397 = vdwg.mxu0
        %s2398 = scalar_lea.vmem %s1088, 32
        %v2399 = vld [vmem:[%s2398] sm:$0xf]
        %v2400 = vld [vmem:[%s2398 + $0x4] sm:$0xf]
        %v2401 = vld [vmem:[%s2398 + $0x8] sm:$0xf]
        %v2402 = vld [vmem:[%s2398 + $0xc] sm:$0xf]
        %s2403 = scalar_lea.vmem %s1100, 2
        %v2404 = vld [vmem:[%s2403] sm:$0x1]
        %v2406 = vlaneseq
        %v2407 = vshrl.u32 %v2406, 7
        %v2408 = vsub.s32 0, %v2407
        %v2409 = vrot.slane %v2404, %v2408
        %v2415 = vunpack.c.l.b16 %v2399
        %v2416 = vunpack.c.l.b16 %v2400
        %v2417 = vunpack.c.l.b16 %v2401
        %v2418 = vunpack.c.l.b16 %v2402
        %v2419 = vpack.c.b16 %v2416, %v2415
        %v2420 = vpack.c.b16 %v2418, %v2417
        %2423 = vmatprep.subr.bf16.mxu0 0
        %2424 = vmatpush1.bf16.msra.mxu0 0
        %2425 = vmatprep.subr.bf16.mxu0 0
        %2426 = vmatpush1.bf16.msra.mxu0 0
        %2427 = vmatprep.subr.bf16.mxu0 0
        %2428 = vmatpush1.bf16.msra.mxu0 0
        %2429 = vmatprep.subr.bf16.mxu0 0
        %2430 = vmatpush1.bf16.msra.mxu0 0
        %2431 = vmatprep.subr.bf16.mxu0 0
        %2432 = vmatpush1.bf16.msra.mxu0 0
        %2433 = vmatprep.subr.bf16.mxu0 0
        %2434 = vmatpush1.bf16.msra.mxu0 0
        %2435 = vmatprep.subr.bf16.mxu0 0
        %2436 = vmatpush1.bf16.msra.mxu0 %v2420
        %2437 = vmatprep.subr.bf16.mxu0 0
        %2438 = vmatpush1.bf16.msra.mxu0 %v2419
        %2439 = vmatprep.subr.bf16.mxu0 0
        %2440 = vmatpush2.bf16.msra.mxu0 0
        %2441 = vmatprep.subr.bf16.mxu0 0
        %2442 = vmatpush2.bf16.msra.mxu0 0
        %2443 = vmatprep.subr.bf16.mxu0 0
        %2444 = vmatpush2.bf16.msra.mxu0 0
        %2445 = vmatprep.subr.bf16.mxu0 0
        %2446 = vmatpush2.bf16.msra.mxu0 0
        %2447 = vmatprep.subr.bf16.mxu0 0
        %2448 = vmatpush2.bf16.msra.mxu0 0
        %2449 = vmatprep.subr.bf16.mxu0 0
        %2450 = vmatpush2.bf16.msra.mxu0 0
        %2451 = vmatprep.subr.bf16.mxu0 0
        %2452 = vmatpush2.bf16.msra.mxu0 0
        %2453 = vmatprep.subr.bf16.mxu0 0
        %2454 = vmatpush2.bf16.msra.mxu0 0
        %2455 = vmatprep.mubr.bf16.mxu0 0
        %2456 = vmatmul.mubr.bf16.gmra.mxu0 %v1338
        %v2457 = vpop.f32.mrf.mxu0
        %v2458 = vadd.f32 %v2409, %v2457
        %v2459 = vpop.f32.mrf.mxu0
        %v2460 = vpop.f32.mrf.mxu0
        %v2461 = vadd.f32 %v2409, %v2460
        %v2462 = vpop.f32.mrf.mxu0
        %2463 = vdwg.mxu0
        %v2464 = vpack.c.bf16 %v2331, %v2330
        %v2466 = vunpack.c.l.b16 %v2464
        %v2467 = vunpack.c.h.b16 %v2464
        %v2468 = vpack.c.b16 %v2466, %v2466
        %v2469 = vpack.c.b16 %v2467, %v2467
        %v2470 = vpack.c.bf16 %v2395, %v2392
        %v2472 = vunpack.c.l.b16 %v2470
        %v2473 = vunpack.c.h.b16 %v2470
        %v2474 = vpack.c.b16 %v2472, %v2472
        %v2475 = vpack.c.b16 %v2473, %v2473
        %v2476 = vpack.c.bf16 %v2461, %v2458
        %v2478 = vunpack.c.l.b16 %v2476
        %v2479 = vunpack.c.h.b16 %v2476
        %v2480 = vpack.c.b16 %v2478, %v2478
        %v2481 = vpack.c.b16 %v2479, %v2479
        %v2483 = vsel %vm1529, %v2468, 0
        %v2486 = vsel %vm1529, %v2474, 0
        %2488 = vmatprep.subr.bf16.mxu0 0
        %2489 = vmatpush1.bf16.xpose.msra.mxu0 0
        %2490 = vmatprep.subr.bf16.mxu0 0
        %2491 = vmatpush1.bf16.xpose.msra.mxu0 0
        %2492 = vmatprep.subr.bf16.mxu0 0
        %2493 = vmatpush1.bf16.xpose.msra.mxu0 0
        %2494 = vmatprep.subr.bf16.mxu0 0
        %2495 = vmatpush1.bf16.xpose.msra.mxu0 0
        %2496 = vmatprep.subr.bf16.mxu0 0
        %2497 = vmatpush1.bf16.xpose.msra.mxu0 0
        %2498 = vmatprep.subr.bf16.mxu0 0
        %2499 = vmatpush1.bf16.xpose.msra.mxu0 0
        %2500 = vmatprep.subr.bf16.mxu0 0
        %2501 = vmatpush1.bf16.xpose.msra.mxu0 0
        %2502 = vmatprep.subr.bf16.mxu0 0
        %2503 = vmatpush1.bf16.xpose.msra.mxu0 %v2486
        %2504 = vmatprep.subr.bf16.mxu0 0
        %2505 = vmatpush2.bf16.xpose.msra.mxu0 0
        %2506 = vmatprep.subr.bf16.mxu0 0
        %2507 = vmatpush2.bf16.xpose.msra.mxu0 0
        %2508 = vmatprep.subr.bf16.mxu0 0
        %2509 = vmatpush2.bf16.xpose.msra.mxu0 0
        %2510 = vmatprep.subr.bf16.mxu0 0
        %2511 = vmatpush2.bf16.xpose.msra.mxu0 0
        %2512 = vmatprep.subr.bf16.mxu0 0
        %2513 = vmatpush2.bf16.xpose.msra.mxu0 0
        %2514 = vmatprep.subr.bf16.mxu0 0
        %2515 = vmatpush2.bf16.xpose.msra.mxu0 0
        %2516 = vmatprep.subr.bf16.mxu0 0
        %2517 = vmatpush2.bf16.xpose.msra.mxu0 0
        %2518 = vmatprep.subr.bf16.mxu0 0
        %2519 = vmatpush2.bf16.xpose.msra.mxu0 0
        %2520 = vmatprep.mubr.bf16.mxu0 0
        %2521 = vmatmul.mubr.bf16.gmra.mxu0 %v2483
        %v2522 = vpop.f32.mrf.mxu0
        %v2523 = vadd.f32 0.0, %v2522
        %v2524 = vpop.f32.mrf.mxu0
        %v2525 = vpop.f32.mrf.mxu0
        %v2526 = vpop.f32.mrf.mxu0
        %2527 = vdwg.mxu0
        %v2529 = vsel %vm1529, %v2469, 0
        %v2532 = vsel %vm1529, %v2475, 0
        %2534 = vmatprep.subr.bf16.mxu0 0
        %2535 = vmatpush1.bf16.xpose.msra.mxu0 0
        %2536 = vmatprep.subr.bf16.mxu0 0
        %2537 = vmatpush1.bf16.xpose.msra.mxu0 0
        %2538 = vmatprep.subr.bf16.mxu0 0
        %2539 = vmatpush1.bf16.xpose.msra.mxu0 0
        %2540 = vmatprep.subr.bf16.mxu0 0
        %2541 = vmatpush1.bf16.xpose.msra.mxu0 0
        %2542 = vmatprep.subr.bf16.mxu0 0
        %2543 = vmatpush1.bf16.xpose.msra.mxu0 0
        %2544 = vmatprep.subr.bf16.mxu0 0
        %2545 = vmatpush1.bf16.xpose.msra.mxu0 0
        %2546 = vmatprep.subr.bf16.mxu0 0
        %2547 = vmatpush1.bf16.xpose.msra.mxu0 0
        %2548 = vmatprep.subr.bf16.mxu0 0
        %2549 = vmatpush1.bf16.xpose.msra.mxu0 %v2532
        %2550 = vmatprep.subr.bf16.mxu0 0
        %2551 = vmatpush2.bf16.xpose.msra.mxu0 0
        %2552 = vmatprep.subr.bf16.mxu0 0
        %2553 = vmatpush2.bf16.xpose.msra.mxu0 0
        %2554 = vmatprep.subr.bf16.mxu0 0
        %2555 = vmatpush2.bf16.xpose.msra.mxu0 0
        %2556 = vmatprep.subr.bf16.mxu0 0
        %2557 = vmatpush2.bf16.xpose.msra.mxu0 0
        %2558 = vmatprep.subr.bf16.mxu0 0
        %2559 = vmatpush2.bf16.xpose.msra.mxu0 0
        %2560 = vmatprep.subr.bf16.mxu0 0
        %2561 = vmatpush2.bf16.xpose.msra.mxu0 0
        %2562 = vmatprep.subr.bf16.mxu0 0
        %2563 = vmatpush2.bf16.xpose.msra.mxu0 0
        %2564 = vmatprep.subr.bf16.mxu0 0
        %2565 = vmatpush2.bf16.xpose.msra.mxu0 0
        %2566 = vmatprep.mubr.bf16.mxu0 0
        %2567 = vmatmul.mubr.bf16.gmra.mxu0 %v2529
        %v2568 = vpop.f32.mrf.mxu0
        %v2569 = vadd.f32 0.0, %v2568
        %v2570 = vpop.f32.mrf.mxu0
        %v2571 = vpop.f32.mrf.mxu0
        %v2572 = vpop.f32.mrf.mxu0
        %2573 = vdwg.mxu0
        %v2574 = vsel %vm1529, %v2523, -inf
        %2575 = vmax.xlane.f32.xlu0 %v2574
        %v2576 = vpop.xlane.xlu0 %2575
        %v2577 = vsel %vm1529, %v2569, -inf
        %2578 = vmax.xlane.f32.xlu0 %v2577
        %v2579 = vpop.xlane.xlu0 %2578
        %v2580 = vsub.f32 %v2523, %v2576
        %v2581 = vsub.f32 %v2569, %v2579
        %v2582 = vmul.f32 %v2580, 1.442695
        %v2583 = vpow.pop %v2582
        %v2584 = vmul.f32 %v2581, 1.442695
        %v2585 = vpow.pop %v2584
        %v2586 = vsel %vm1529, %v2583, 0.0
        %2587 = vadd.xlane.f32.xlu0 %v2586
        %v2588 = vpop.xlane.xlu0 %2587
        %v2589 = vsel %vm1529, %v2585, 0.0
        %2590 = vadd.xlane.f32.xlu0 %v2589
        %v2591 = vpop.xlane.xlu0 %2590
        %v2592 = vrcp.pop %v2588
        %v2593 = vmul.f32 %v2583, %v2592
        %v2594 = vrcp.pop %v2591
        %v2595 = vmul.f32 %v2585, %v2594
        %v2596 = vpack.c.bf16 %v2593, %v2593
        %v2597 = vpack.c.bf16 %v2595, %v2595
        %v2599 = vsel %vm1529, %v2596, 0
        %v2602 = vsel %vm1649, %v2480, 0
        %2604 = vmatprep.subr.bf16.mxu0 0
        %2605 = vmatpush1.bf16.msra.mxu0 0
        %2606 = vmatprep.subr.bf16.mxu0 0
        %2607 = vmatpush1.bf16.msra.mxu0 0
        %2608 = vmatprep.subr.bf16.mxu0 0
        %2609 = vmatpush1.bf16.msra.mxu0 0
        %2610 = vmatprep.subr.bf16.mxu0 0
        %2611 = vmatpush1.bf16.msra.mxu0 0
        %2612 = vmatprep.subr.bf16.mxu0 0
        %2613 = vmatpush1.bf16.msra.mxu0 0
        %2614 = vmatprep.subr.bf16.mxu0 0
        %2615 = vmatpush1.bf16.msra.mxu0 0
        %2616 = vmatprep.subr.bf16.mxu0 0
        %2617 = vmatpush1.bf16.msra.mxu0 0
        %2618 = vmatprep.subr.bf16.mxu0 0
        %2619 = vmatpush1.bf16.msra.mxu0 %v2602
        %2620 = vmatprep.subr.bf16.mxu0 0
        %2621 = vmatpush2.bf16.msra.mxu0 0
        %2622 = vmatprep.subr.bf16.mxu0 0
        %2623 = vmatpush2.bf16.msra.mxu0 0
        %2624 = vmatprep.subr.bf16.mxu0 0
        %2625 = vmatpush2.bf16.msra.mxu0 0
        %2626 = vmatprep.subr.bf16.mxu0 0
        %2627 = vmatpush2.bf16.msra.mxu0 0
        %2628 = vmatprep.subr.bf16.mxu0 0
        %2629 = vmatpush2.bf16.msra.mxu0 0
        %2630 = vmatprep.subr.bf16.mxu0 0
        %2631 = vmatpush2.bf16.msra.mxu0 0
        %2632 = vmatprep.subr.bf16.mxu0 0
        %2633 = vmatpush2.bf16.msra.mxu0 0
        %2634 = vmatprep.subr.bf16.mxu0 0
        %2635 = vmatpush2.bf16.msra.mxu0 0
        %2636 = vmatprep.mubr.bf16.mxu0 0
        %2637 = vmatmul.mubr.bf16.gmra.mxu0 %v2599
        %v2638 = vpop.f32.mrf.mxu0
        %v2639 = vadd.f32 0.0, %v2638
        %v2640 = vpop.f32.mrf.mxu0
        %v2641 = vpop.f32.mrf.mxu0
        %v2642 = vpop.f32.mrf.mxu0
        %2643 = vdwg.mxu0
        %v2645 = vsel %vm1529, %v2597, 0
        %v2648 = vsel %vm1649, %v2481, 0
        %2650 = vmatprep.subr.bf16.mxu0 0
        %2651 = vmatpush1.bf16.msra.mxu0 0
        %2652 = vmatprep.subr.bf16.mxu0 0
        %2653 = vmatpush1.bf16.msra.mxu0 0
        %2654 = vmatprep.subr.bf16.mxu0 0
        %2655 = vmatpush1.bf16.msra.mxu0 0
        %2656 = vmatprep.subr.bf16.mxu0 0
        %2657 = vmatpush1.bf16.msra.mxu0 0
        %2658 = vmatprep.subr.bf16.mxu0 0
        %2659 = vmatpush1.bf16.msra.mxu0 0
        %2660 = vmatprep.subr.bf16.mxu0 0
        %2661 = vmatpush1.bf16.msra.mxu0 0
        %2662 = vmatprep.subr.bf16.mxu0 0
        %2663 = vmatpush1.bf16.msra.mxu0 0
        %2664 = vmatprep.subr.bf16.mxu0 0
        %2665 = vmatpush1.bf16.msra.mxu0 %v2648
        %2666 = vmatprep.subr.bf16.mxu0 0
        %2667 = vmatpush2.bf16.msra.mxu0 0
        %2668 = vmatprep.subr.bf16.mxu0 0
        %2669 = vmatpush2.bf16.msra.mxu0 0
        %2670 = vmatprep.subr.bf16.mxu0 0
        %2671 = vmatpush2.bf16.msra.mxu0 0
        %2672 = vmatprep.subr.bf16.mxu0 0
        %2673 = vmatpush2.bf16.msra.mxu0 0
        %2674 = vmatprep.subr.bf16.mxu0 0
        %2675 = vmatpush2.bf16.msra.mxu0 0
        %2676 = vmatprep.subr.bf16.mxu0 0
        %2677 = vmatpush2.bf16.msra.mxu0 0
        %2678 = vmatprep.subr.bf16.mxu0 0
        %2679 = vmatpush2.bf16.msra.mxu0 0
        %2680 = vmatprep.subr.bf16.mxu0 0
        %2681 = vmatpush2.bf16.msra.mxu0 0
        %2682 = vmatprep.mubr.bf16.mxu0 0
        %2683 = vmatmul.mubr.bf16.gmra.mxu0 %v2645
        %v2684 = vpop.f32.mrf.mxu0
        %v2685 = vadd.f32 0.0, %v2684
        %v2686 = vpop.f32.mrf.mxu0
        %v2687 = vpop.f32.mrf.mxu0
        %v2688 = vpop.f32.mrf.mxu0
        %2689 = vdwg.mxu0
        %v2690 = vpack.c.bf16 %v2685, %v2639
        %s2691 = scalar_lea.vmem %s1105, 8
        %v2692 = vld [vmem:[%s2691] sm:$0xf]
        %v2694 = vsel %vm1529, %v2690, 0
        %v2697 = vsel %vm1649, %v2692, 0
        %2699 = vmatprep.subr.bf16.mxu0 0
        %2700 = vmatpush1.bf16.msra.mxu0 0
        %2701 = vmatprep.subr.bf16.mxu0 0
        %2702 = vmatpush1.bf16.msra.mxu0 0
        %2703 = vmatprep.subr.bf16.mxu0 0
        %2704 = vmatpush1.bf16.msra.mxu0 0
        %2705 = vmatprep.subr.bf16.mxu0 0
        %2706 = vmatpush1.bf16.msra.mxu0 0
        %2707 = vmatprep.subr.bf16.mxu0 0
        %2708 = vmatpush1.bf16.msra.mxu0 0
        %2709 = vmatprep.subr.bf16.mxu0 0
        %2710 = vmatpush1.bf16.msra.mxu0 0
        %2711 = vmatprep.subr.bf16.mxu0 0
        %2712 = vmatpush1.bf16.msra.mxu0 0
        %2713 = vmatprep.subr.bf16.mxu0 0
        %2714 = vmatpush1.bf16.msra.mxu0 %v2697
        %2715 = vmatprep.subr.bf16.mxu0 0
        %2716 = vmatpush2.bf16.msra.mxu0 0
        %2717 = vmatprep.subr.bf16.mxu0 0
        %2718 = vmatpush2.bf16.msra.mxu0 0
        %2719 = vmatprep.subr.bf16.mxu0 0
        %2720 = vmatpush2.bf16.msra.mxu0 0
        %2721 = vmatprep.subr.bf16.mxu0 0
        %2722 = vmatpush2.bf16.msra.mxu0 0
        %2723 = vmatprep.subr.bf16.mxu0 0
        %2724 = vmatpush2.bf16.msra.mxu0 0
        %2725 = vmatprep.subr.bf16.mxu0 0
        %2726 = vmatpush2.bf16.msra.mxu0 0
        %2727 = vmatprep.subr.bf16.mxu0 0
        %2728 = vmatpush2.bf16.msra.mxu0 0
        %2729 = vmatprep.subr.bf16.mxu0 0
        %2730 = vmatpush2.bf16.msra.mxu0 0
        %2731 = vmatprep.mubr.bf16.mxu0 0
        %2732 = vmatmul.mubr.bf16.gmra.mxu0 %v2694
        %v2733 = vpop.f32.mrf.mxu0
        %v2734 = vadd.f32 0.0, %v2733
        %v2735 = vpop.f32.mrf.mxu0
        %v2736 = vpop.f32.mrf.mxu0
        %v2737 = vadd.f32 0.0, %v2736
        %v2738 = vpop.f32.mrf.mxu0
        %2739 = vdwg.mxu0
        %v2740 = vadd.f32 %v2258, %v2734
        %v2741 = vadd.f32 %v2261, %v2737
        %s2742 = scalar_lea.vmem %s1078, 48
        %v2743 = vld [vmem:[%s2742] sm:$0xf]
        %v2744 = vld [vmem:[%s2742 + $0x4] sm:$0xf]
        %v2745 = vld [vmem:[%s2742 + $0x8] sm:$0xf]
        %v2746 = vld [vmem:[%s2742 + $0xc] sm:$0xf]
        %s2747 = scalar_lea.vmem %s1092, 3
        %v2748 = vld [vmem:[%s2747] sm:$0x1]
        %v2750 = vlaneseq
        %v2751 = vshrl.u32 %v2750, 7
        %v2752 = vsub.s32 0, %v2751
        %v2753 = vrot.slane %v2748, %v2752
        %v2759 = vunpack.c.l.b16 %v2743
        %v2760 = vunpack.c.l.b16 %v2744
        %v2761 = vunpack.c.l.b16 %v2745
        %v2762 = vunpack.c.l.b16 %v2746
        %v2763 = vpack.c.b16 %v2760, %v2759
        %v2764 = vpack.c.b16 %v2762, %v2761
        %2767 = vmatprep.subr.bf16.mxu0 0
        %2768 = vmatpush1.bf16.msra.mxu0 0
        %2769 = vmatprep.subr.bf16.mxu0 0
        %2770 = vmatpush1.bf16.msra.mxu0 0
        %2771 = vmatprep.subr.bf16.mxu0 0
        %2772 = vmatpush1.bf16.msra.mxu0 0
        %2773 = vmatprep.subr.bf16.mxu0 0
        %2774 = vmatpush1.bf16.msra.mxu0 0
        %2775 = vmatprep.subr.bf16.mxu0 0
        %2776 = vmatpush1.bf16.msra.mxu0 0
        %2777 = vmatprep.subr.bf16.mxu0 0
        %2778 = vmatpush1.bf16.msra.mxu0 0
        %2779 = vmatprep.subr.bf16.mxu0 0
        %2780 = vmatpush1.bf16.msra.mxu0 %v2764
        %2781 = vmatprep.subr.bf16.mxu0 0
        %2782 = vmatpush1.bf16.msra.mxu0 %v2763
        %2783 = vmatprep.subr.bf16.mxu0 0
        %2784 = vmatpush2.bf16.msra.mxu0 0
        %2785 = vmatprep.subr.bf16.mxu0 0
        %2786 = vmatpush2.bf16.msra.mxu0 0
        %2787 = vmatprep.subr.bf16.mxu0 0
        %2788 = vmatpush2.bf16.msra.mxu0 0
        %2789 = vmatprep.subr.bf16.mxu0 0
        %2790 = vmatpush2.bf16.msra.mxu0 0
        %2791 = vmatprep.subr.bf16.mxu0 0
        %2792 = vmatpush2.bf16.msra.mxu0 0
        %2793 = vmatprep.subr.bf16.mxu0 0
        %2794 = vmatpush2.bf16.msra.mxu0 0
        %2795 = vmatprep.subr.bf16.mxu0 0
        %2796 = vmatpush2.bf16.msra.mxu0 0
        %2797 = vmatprep.subr.bf16.mxu0 0
        %2798 = vmatpush2.bf16.msra.mxu0 0
        %2799 = vmatprep.mubr.bf16.mxu0 0
        %2800 = vmatmul.mubr.bf16.gmra.mxu0 %v1338
        %v2801 = vpop.f32.mrf.mxu0
        %v2802 = vadd.f32 %v2753, %v2801
        %v2803 = vpop.f32.mrf.mxu0
        %v2804 = vpop.f32.mrf.mxu0
        %v2805 = vadd.f32 %v2753, %v2804
        %v2806 = vpop.f32.mrf.mxu0
        %2807 = vdwg.mxu0
        %v2808 = vmul.f32 %v2802, 0.35355338
        %v2809 = vmul.f32 %v2805, 0.35355338
        %s2810 = scalar_lea.vmem %s1083, 48
        %v2811 = vld [vmem:[%s2810] sm:$0xf]
        %v2812 = vld [vmem:[%s2810 + $0x4] sm:$0xf]
        %v2813 = vld [vmem:[%s2810 + $0x8] sm:$0xf]
        %v2814 = vld [vmem:[%s2810 + $0xc] sm:$0xf]
        %s2815 = scalar_lea.vmem %s1096, 3
        %v2816 = vld [vmem:[%s2815] sm:$0x1]
        %v2818 = vlaneseq
        %v2819 = vshrl.u32 %v2818, 7
        %v2820 = vsub.s32 0, %v2819
        %v2821 = vrot.slane %v2816, %v2820
        %v2827 = vunpack.c.l.b16 %v2811
        %v2828 = vunpack.c.l.b16 %v2812
        %v2829 = vunpack.c.l.b16 %v2813
        %v2830 = vunpack.c.l.b16 %v2814
        %v2831 = vpack.c.b16 %v2828, %v2827
        %v2832 = vpack.c.b16 %v2830, %v2829
        %2835 = vmatprep.subr.bf16.mxu0 0
        %2836 = vmatpush1.bf16.msra.mxu0 0
        %2837 = vmatprep.subr.bf16.mxu0 0
        %2838 = vmatpush1.bf16.msra.mxu0 0
        %2839 = vmatprep.subr.bf16.mxu0 0
        %2840 = vmatpush1.bf16.msra.mxu0 0
        %2841 = vmatprep.subr.bf16.mxu0 0
        %2842 = vmatpush1.bf16.msra.mxu0 0
        %2843 = vmatprep.subr.bf16.mxu0 0
        %2844 = vmatpush1.bf16.msra.mxu0 0
        %2845 = vmatprep.subr.bf16.mxu0 0
        %2846 = vmatpush1.bf16.msra.mxu0 0
        %2847 = vmatprep.subr.bf16.mxu0 0
        %2848 = vmatpush1.bf16.msra.mxu0 %v2832
        %2849 = vmatprep.subr.bf16.mxu0 0
        %2850 = vmatpush1.bf16.msra.mxu0 %v2831
        %2851 = vmatprep.subr.bf16.mxu0 0
        %2852 = vmatpush2.bf16.msra.mxu0 0
        %2853 = vmatprep.subr.bf16.mxu0 0
        %2854 = vmatpush2.bf16.msra.mxu0 0
        %2855 = vmatprep.subr.bf16.mxu0 0
        %2856 = vmatpush2.bf16.msra.mxu0 0
        %2857 = vmatprep.subr.bf16.mxu0 0
        %2858 = vmatpush2.bf16.msra.mxu0 0
        %2859 = vmatprep.subr.bf16.mxu0 0
        %2860 = vmatpush2.bf16.msra.mxu0 0
        %2861 = vmatprep.subr.bf16.mxu0 0
        %2862 = vmatpush2.bf16.msra.mxu0 0
        %2863 = vmatprep.subr.bf16.mxu0 0
        %2864 = vmatpush2.bf16.msra.mxu0 0
        %2865 = vmatprep.subr.bf16.mxu0 0
        %2866 = vmatpush2.bf16.msra.mxu0 0
        %2867 = vmatprep.mubr.bf16.mxu0 0
        %2868 = vmatmul.mubr.bf16.gmra.mxu0 %v1338
        %v2869 = vpop.f32.mrf.mxu0
        %v2870 = vadd.f32 %v2821, %v2869
        %v2871 = vpop.f32.mrf.mxu0
        %v2872 = vpop.f32.mrf.mxu0
        %v2873 = vadd.f32 %v2821, %v2872
        %v2874 = vpop.f32.mrf.mxu0
        %2875 = vdwg.mxu0
        %s2876 = scalar_lea.vmem %s1088, 48
        %v2877 = vld [vmem:[%s2876] sm:$0xf]
        %v2878 = vld [vmem:[%s2876 + $0x4] sm:$0xf]
        %v2879 = vld [vmem:[%s2876 + $0x8] sm:$0xf]
        %v2880 = vld [vmem:[%s2876 + $0xc] sm:$0xf]
        %s2881 = scalar_lea.vmem %s1100, 3
        %v2882 = vld [vmem:[%s2881] sm:$0x1]
        %v2884 = vlaneseq
        %v2885 = vshrl.u32 %v2884, 7
        %v2886 = vsub.s32 0, %v2885
        %v2887 = vrot.slane %v2882, %v2886
        %v2893 = vunpack.c.l.b16 %v2877
        %v2894 = vunpack.c.l.b16 %v2878
        %v2895 = vunpack.c.l.b16 %v2879
        %v2896 = vunpack.c.l.b16 %v2880
        %v2897 = vpack.c.b16 %v2894, %v2893
        %v2898 = vpack.c.b16 %v2896, %v2895
        %2901 = vmatprep.subr.bf16.mxu0 0
        %2902 = vmatpush1.bf16.msra.mxu0 0
        %2903 = vmatprep.subr.bf16.mxu0 0
        %2904 = vmatpush1.bf16.msra.mxu0 0
        %2905 = vmatprep.subr.bf16.mxu0 0
        %2906 = vmatpush1.bf16.msra.mxu0 0
        %2907 = vmatprep.subr.bf16.mxu0 0
        %2908 = vmatpush1.bf16.msra.mxu0 0
        %2909 = vmatprep.subr.bf16.mxu0 0
        %2910 = vmatpush1.bf16.msra.mxu0 0
        %2911 = vmatprep.subr.bf16.mxu0 0
        %2912 = vmatpush1.bf16.msra.mxu0 0
        %2913 = vmatprep.subr.bf16.mxu0 0
        %2914 = vmatpush1.bf16.msra.mxu0 %v2898
        %2915 = vmatprep.subr.bf16.mxu0 0
        %2916 = vmatpush1.bf16.msra.mxu0 %v2897
        %2917 = vmatprep.subr.bf16.mxu0 0
        %2918 = vmatpush2.bf16.msra.mxu0 0
        %2919 = vmatprep.subr.bf16.mxu0 0
        %2920 = vmatpush2.bf16.msra.mxu0 0
        %2921 = vmatprep.subr.bf16.mxu0 0
        %2922 = vmatpush2.bf16.msra.mxu0 0
        %2923 = vmatprep.subr.bf16.mxu0 0
        %2924 = vmatpush2.bf16.msra.mxu0 0
        %2925 = vmatprep.subr.bf16.mxu0 0
        %2926 = vmatpush2.bf16.msra.mxu0 0
        %2927 = vmatprep.subr.bf16.mxu0 0
        %2928 = vmatpush2.bf16.msra.mxu0 0
        %2929 = vmatprep.subr.bf16.mxu0 0
        %2930 = vmatpush2.bf16.msra.mxu0 0
        %2931 = vmatprep.subr.bf16.mxu0 0
        %2932 = vmatpush2.bf16.msra.mxu0 0
        %2933 = vmatprep.mubr.bf16.mxu0 0
        %2934 = vmatmul.mubr.bf16.gmra.mxu0 %v1338
        %v2935 = vpop.f32.mrf.mxu0
        %v2936 = vadd.f32 %v2887, %v2935
        %v2937 = vpop.f32.mrf.mxu0
        %v2938 = vpop.f32.mrf.mxu0
        %v2939 = vadd.f32 %v2887, %v2938
        %v2940 = vpop.f32.mrf.mxu0
        %2941 = vdwg.mxu0
        %v2942 = vpack.c.bf16 %v2809, %v2808
        %v2944 = vunpack.c.l.b16 %v2942
        %v2945 = vunpack.c.h.b16 %v2942
        %v2946 = vpack.c.b16 %v2944, %v2944
        %v2947 = vpack.c.b16 %v2945, %v2945
        %v2948 = vpack.c.bf16 %v2873, %v2870
        %v2950 = vunpack.c.l.b16 %v2948
        %v2951 = vunpack.c.h.b16 %v2948
        %v2952 = vpack.c.b16 %v2950, %v2950
        %v2953 = vpack.c.b16 %v2951, %v2951
        %v2954 = vpack.c.bf16 %v2939, %v2936
        %v2956 = vunpack.c.l.b16 %v2954
        %v2957 = vunpack.c.h.b16 %v2954
        %v2958 = vpack.c.b16 %v2956, %v2956
        %v2959 = vpack.c.b16 %v2957, %v2957
        %v2961 = vsel %vm1529, %v2946, 0
        %v2964 = vsel %vm1529, %v2952, 0
        %2966 = vmatprep.subr.bf16.mxu0 0
        %2967 = vmatpush1.bf16.xpose.msra.mxu0 0
        %2968 = vmatprep.subr.bf16.mxu0 0
        %2969 = vmatpush1.bf16.xpose.msra.mxu0 0
        %2970 = vmatprep.subr.bf16.mxu0 0
        %2971 = vmatpush1.bf16.xpose.msra.mxu0 0
        %2972 = vmatprep.subr.bf16.mxu0 0
        %2973 = vmatpush1.bf16.xpose.msra.mxu0 0
        %2974 = vmatprep.subr.bf16.mxu0 0
        %2975 = vmatpush1.bf16.xpose.msra.mxu0 0
        %2976 = vmatprep.subr.bf16.mxu0 0
        %2977 = vmatpush1.bf16.xpose.msra.mxu0 0
        %2978 = vmatprep.subr.bf16.mxu0 0
        %2979 = vmatpush1.bf16.xpose.msra.mxu0 0
        %2980 = vmatprep.subr.bf16.mxu0 0
        %2981 = vmatpush1.bf16.xpose.msra.mxu0 %v2964
        %2982 = vmatprep.subr.bf16.mxu0 0
        %2983 = vmatpush2.bf16.xpose.msra.mxu0 0
        %2984 = vmatprep.subr.bf16.mxu0 0
        %2985 = vmatpush2.bf16.xpose.msra.mxu0 0
        %2986 = vmatprep.subr.bf16.mxu0 0
        %2987 = vmatpush2.bf16.xpose.msra.mxu0 0
        %2988 = vmatprep.subr.bf16.mxu0 0
        %2989 = vmatpush2.bf16.xpose.msra.mxu0 0
        %2990 = vmatprep.subr.bf16.mxu0 0
        %2991 = vmatpush2.bf16.xpose.msra.mxu0 0
        %2992 = vmatprep.subr.bf16.mxu0 0
        %2993 = vmatpush2.bf16.xpose.msra.mxu0 0
        %2994 = vmatprep.subr.bf16.mxu0 0
        %2995 = vmatpush2.bf16.xpose.msra.mxu0 0
        %2996 = vmatprep.subr.bf16.mxu0 0
        %2997 = vmatpush2.bf16.xpose.msra.mxu0 0
        %2998 = vmatprep.mubr.bf16.mxu0 0
        %2999 = vmatmul.mubr.bf16.gmra.mxu0 %v2961
        %v3000 = vpop.f32.mrf.mxu0
        %v3001 = vadd.f32 0.0, %v3000
        %v3002 = vpop.f32.mrf.mxu0
        %v3003 = vpop.f32.mrf.mxu0
        %v3004 = vpop.f32.mrf.mxu0
        %3005 = vdwg.mxu0
        %v3007 = vsel %vm1529, %v2947, 0
        %v3010 = vsel %vm1529, %v2953, 0
        %3012 = vmatprep.subr.bf16.mxu0 0
        %3013 = vmatpush1.bf16.xpose.msra.mxu0 0
        %3014 = vmatprep.subr.bf16.mxu0 0
        %3015 = vmatpush1.bf16.xpose.msra.mxu0 0
        %3016 = vmatprep.subr.bf16.mxu0 0
        %3017 = vmatpush1.bf16.xpose.msra.mxu0 0
        %3018 = vmatprep.subr.bf16.mxu0 0
        %3019 = vmatpush1.bf16.xpose.msra.mxu0 0
        %3020 = vmatprep.subr.bf16.mxu0 0
        %3021 = vmatpush1.bf16.xpose.msra.mxu0 0
        %3022 = vmatprep.subr.bf16.mxu0 0
        %3023 = vmatpush1.bf16.xpose.msra.mxu0 0
        %3024 = vmatprep.subr.bf16.mxu0 0
        %3025 = vmatpush1.bf16.xpose.msra.mxu0 0
        %3026 = vmatprep.subr.bf16.mxu0 0
        %3027 = vmatpush1.bf16.xpose.msra.mxu0 %v3010
        %3028 = vmatprep.subr.bf16.mxu0 0
        %3029 = vmatpush2.bf16.xpose.msra.mxu0 0
        %3030 = vmatprep.subr.bf16.mxu0 0
        %3031 = vmatpush2.bf16.xpose.msra.mxu0 0
        %3032 = vmatprep.subr.bf16.mxu0 0
        %3033 = vmatpush2.bf16.xpose.msra.mxu0 0
        %3034 = vmatprep.subr.bf16.mxu0 0
        %3035 = vmatpush2.bf16.xpose.msra.mxu0 0
        %3036 = vmatprep.subr.bf16.mxu0 0
        %3037 = vmatpush2.bf16.xpose.msra.mxu0 0
        %3038 = vmatprep.subr.bf16.mxu0 0
        %3039 = vmatpush2.bf16.xpose.msra.mxu0 0
        %3040 = vmatprep.subr.bf16.mxu0 0
        %3041 = vmatpush2.bf16.xpose.msra.mxu0 0
        %3042 = vmatprep.subr.bf16.mxu0 0
        %3043 = vmatpush2.bf16.xpose.msra.mxu0 0
        %3044 = vmatprep.mubr.bf16.mxu0 0
        %3045 = vmatmul.mubr.bf16.gmra.mxu0 %v3007
        %v3046 = vpop.f32.mrf.mxu0
        %v3047 = vadd.f32 0.0, %v3046
        %v3048 = vpop.f32.mrf.mxu0
        %v3049 = vpop.f32.mrf.mxu0
        %v3050 = vpop.f32.mrf.mxu0
        %3051 = vdwg.mxu0
        %v3052 = vsel %vm1529, %v3001, -inf
        %3053 = vmax.xlane.f32.xlu0 %v3052
        %v3054 = vpop.xlane.xlu0 %3053
        %v3055 = vsel %vm1529, %v3047, -inf
        %3056 = vmax.xlane.f32.xlu0 %v3055
        %v3057 = vpop.xlane.xlu0 %3056
        %v3058 = vsub.f32 %v3001, %v3054
        %v3059 = vsub.f32 %v3047, %v3057
        %v3060 = vmul.f32 %v3058, 1.442695
        %v3061 = vpow.pop %v3060
        %v3062 = vmul.f32 %v3059, 1.442695
        %v3063 = vpow.pop %v3062
        %v3064 = vsel %vm1529, %v3061, 0.0
        %3065 = vadd.xlane.f32.xlu0 %v3064
        %v3066 = vpop.xlane.xlu0 %3065
        %v3067 = vsel %vm1529, %v3063, 0.0
        %3068 = vadd.xlane.f32.xlu0 %v3067
        %v3069 = vpop.xlane.xlu0 %3068
        %v3070 = vrcp.pop %v3066
        %v3071 = vmul.f32 %v3061, %v3070
        %v3072 = vrcp.pop %v3069
        %v3073 = vmul.f32 %v3063, %v3072
        %v3074 = vpack.c.bf16 %v3071, %v3071
        %v3075 = vpack.c.bf16 %v3073, %v3073
        %v3077 = vsel %vm1529, %v3074, 0
        %v3080 = vsel %vm1649, %v2958, 0
        %3082 = vmatprep.subr.bf16.mxu0 0
        %3083 = vmatpush1.bf16.msra.mxu0 0
        %3084 = vmatprep.subr.bf16.mxu0 0
        %3085 = vmatpush1.bf16.msra.mxu0 0
        %3086 = vmatprep.subr.bf16.mxu0 0
        %3087 = vmatpush1.bf16.msra.mxu0 0
        %3088 = vmatprep.subr.bf16.mxu0 0
        %3089 = vmatpush1.bf16.msra.mxu0 0
        %3090 = vmatprep.subr.bf16.mxu0 0
        %3091 = vmatpush1.bf16.msra.mxu0 0
        %3092 = vmatprep.subr.bf16.mxu0 0
        %3093 = vmatpush1.bf16.msra.mxu0 0
        %3094 = vmatprep.subr.bf16.mxu0 0
        %3095 = vmatpush1.bf16.msra.mxu0 0
        %3096 = vmatprep.subr.bf16.mxu0 0
        %3097 = vmatpush1.bf16.msra.mxu0 %v3080
        %3098 = vmatprep.subr.bf16.mxu0 0
        %3099 = vmatpush2.bf16.msra.mxu0 0
        %3100 = vmatprep.subr.bf16.mxu0 0
        %3101 = vmatpush2.bf16.msra.mxu0 0
        %3102 = vmatprep.subr.bf16.mxu0 0
        %3103 = vmatpush2.bf16.msra.mxu0 0
        %3104 = vmatprep.subr.bf16.mxu0 0
        %3105 = vmatpush2.bf16.msra.mxu0 0
        %3106 = vmatprep.subr.bf16.mxu0 0
        %3107 = vmatpush2.bf16.msra.mxu0 0
        %3108 = vmatprep.subr.bf16.mxu0 0
        %3109 = vmatpush2.bf16.msra.mxu0 0
        %3110 = vmatprep.subr.bf16.mxu0 0
        %3111 = vmatpush2.bf16.msra.mxu0 0
        %3112 = vmatprep.subr.bf16.mxu0 0
        %3113 = vmatpush2.bf16.msra.mxu0 0
        %3114 = vmatprep.mubr.bf16.mxu0 0
        %3115 = vmatmul.mubr.bf16.gmra.mxu0 %v3077
        %v3116 = vpop.f32.mrf.mxu0
        %v3117 = vadd.f32 0.0, %v3116
        %v3118 = vpop.f32.mrf.mxu0
        %v3119 = vpop.f32.mrf.mxu0
        %v3120 = vpop.f32.mrf.mxu0
        %3121 = vdwg.mxu0
        %v3123 = vsel %vm1529, %v3075, 0
        %v3126 = vsel %vm1649, %v2959, 0
        %3128 = vmatprep.subr.bf16.mxu0 0
        %3129 = vmatpush1.bf16.msra.mxu0 0
        %3130 = vmatprep.subr.bf16.mxu0 0
        %3131 = vmatpush1.bf16.msra.mxu0 0
        %3132 = vmatprep.subr.bf16.mxu0 0
        %3133 = vmatpush1.bf16.msra.mxu0 0
        %3134 = vmatprep.subr.bf16.mxu0 0
        %3135 = vmatpush1.bf16.msra.mxu0 0
        %3136 = vmatprep.subr.bf16.mxu0 0
        %3137 = vmatpush1.bf16.msra.mxu0 0
        %3138 = vmatprep.subr.bf16.mxu0 0
        %3139 = vmatpush1.bf16.msra.mxu0 0
        %3140 = vmatprep.subr.bf16.mxu0 0
        %3141 = vmatpush1.bf16.msra.mxu0 0
        %3142 = vmatprep.subr.bf16.mxu0 0
        %3143 = vmatpush1.bf16.msra.mxu0 %v3126
        %3144 = vmatprep.subr.bf16.mxu0 0
        %3145 = vmatpush2.bf16.msra.mxu0 0
        %3146 = vmatprep.subr.bf16.mxu0 0
        %3147 = vmatpush2.bf16.msra.mxu0 0
        %3148 = vmatprep.subr.bf16.mxu0 0
        %3149 = vmatpush2.bf16.msra.mxu0 0
        %3150 = vmatprep.subr.bf16.mxu0 0
        %3151 = vmatpush2.bf16.msra.mxu0 0
        %3152 = vmatprep.subr.bf16.mxu0 0
        %3153 = vmatpush2.bf16.msra.mxu0 0
        %3154 = vmatprep.subr.bf16.mxu0 0
        %3155 = vmatpush2.bf16.msra.mxu0 0
        %3156 = vmatprep.subr.bf16.mxu0 0
        %3157 = vmatpush2.bf16.msra.mxu0 0
        %3158 = vmatprep.subr.bf16.mxu0 0
        %3159 = vmatpush2.bf16.msra.mxu0 0
        %3160 = vmatprep.mubr.bf16.mxu0 0
        %3161 = vmatmul.mubr.bf16.gmra.mxu0 %v3123
        %v3162 = vpop.f32.mrf.mxu0
        %v3163 = vadd.f32 0.0, %v3162
        %v3164 = vpop.f32.mrf.mxu0
        %v3165 = vpop.f32.mrf.mxu0
        %v3166 = vpop.f32.mrf.mxu0
        %3167 = vdwg.mxu0
        %v3168 = vpack.c.bf16 %v3163, %v3117
        %s3169 = scalar_lea.vmem %s1105, 12
        %v3170 = vld [vmem:[%s3169] sm:$0xf]
        %v3172 = vsel %vm1529, %v3168, 0
        %v3175 = vsel %vm1649, %v3170, 0
        %3177 = vmatprep.subr.bf16.mxu0 0
        %3178 = vmatpush1.bf16.msra.mxu0 0
        %3179 = vmatprep.subr.bf16.mxu0 0
        %3180 = vmatpush1.bf16.msra.mxu0 0
        %3181 = vmatprep.subr.bf16.mxu0 0
        %3182 = vmatpush1.bf16.msra.mxu0 0
        %3183 = vmatprep.subr.bf16.mxu0 0
        %3184 = vmatpush1.bf16.msra.mxu0 0
        %3185 = vmatprep.subr.bf16.mxu0 0
        %3186 = vmatpush1.bf16.msra.mxu0 0
        %3187 = vmatprep.subr.bf16.mxu0 0
        %3188 = vmatpush1.bf16.msra.mxu0 0
        %3189 = vmatprep.subr.bf16.mxu0 0
        %3190 = vmatpush1.bf16.msra.mxu0 0
        %3191 = vmatprep.subr.bf16.mxu0 0
        %3192 = vmatpush1.bf16.msra.mxu0 %v3175
        %3193 = vmatprep.subr.bf16.mxu0 0
        %3194 = vmatpush2.bf16.msra.mxu0 0
        %3195 = vmatprep.subr.bf16.mxu0 0
        %3196 = vmatpush2.bf16.msra.mxu0 0
        %3197 = vmatprep.subr.bf16.mxu0 0
        %3198 = vmatpush2.bf16.msra.mxu0 0
        %3199 = vmatprep.subr.bf16.mxu0 0
        %3200 = vmatpush2.bf16.msra.mxu0 0
        %3201 = vmatprep.subr.bf16.mxu0 0
        %3202 = vmatpush2.bf16.msra.mxu0 0
        %3203 = vmatprep.subr.bf16.mxu0 0
        %3204 = vmatpush2.bf16.msra.mxu0 0
        %3205 = vmatprep.subr.bf16.mxu0 0
        %3206 = vmatpush2.bf16.msra.mxu0 0
        %3207 = vmatprep.subr.bf16.mxu0 0
        %3208 = vmatpush2.bf16.msra.mxu0 0
        %3209 = vmatprep.mubr.bf16.mxu0 0
        %3210 = vmatmul.mubr.bf16.gmra.mxu0 %v3172
        %v3211 = vpop.f32.mrf.mxu0
        %v3212 = vadd.f32 0.0, %v3211
        %v3213 = vpop.f32.mrf.mxu0
        %v3214 = vpop.f32.mrf.mxu0
        %v3215 = vadd.f32 0.0, %v3214
        %v3216 = vpop.f32.mrf.mxu0
        %3217 = vdwg.mxu0
        %v3218 = vadd.f32 %v2740, %v3212
        %v3219 = vadd.f32 %v2741, %v3215
        %v3220 = vld [vmem:[%s1108] sm:$0x1]
        %v3222 = vlaneseq
        %v3223 = vshrl.u32 %v3222, 7
        %v3224 = vsub.s32 0, %v3223
        %v3225 = vrot.slane %v3220, %v3224
        %v3227 = vadd.f32 %v3218, %v3225
        %v3228 = vadd.f32 %v3219, %v3225
        %v3229 = vadd.f32 %v1306, %v3227
        %v3230 = vadd.f32 %v1307, %v3228
        %v3231 = vld [vmem:[%s1111] sm:$0x1]
        %v3232 = vld [vmem:[%s1114] sm:$0x1]
        %v3233 = vsel %vm1336, %v3229, 0.0
        %3234 = vadd.xlane.f32.xlu0 %v3233
        %v3235 = vpop.xlane.xlu0 %3234
        %v3236 = vsel %vm1336, %v3230, 0.0
        %3237 = vadd.xlane.f32.xlu0 %v3236
        %v3238 = vpop.xlane.xlu0 %3237
        %v3239 = vrcp.pop 32.0
        %v3240 = vmul.f32 %v3235, %v3239
        %v3241 = vmul.f32 %v3238, %v3239
        %v3242 = vsub.f32 %v3229, %v3240
        %v3243 = vsub.f32 %v3230, %v3241
        %v3244 = vmul.f32 %v3242, %v3242
        %v3245 = vmul.f32 %v3243, %v3243
        %v3246 = vsel %vm1336, %v3244, 0.0
        %3247 = vadd.xlane.f32.xlu0 %v3246
        %v3248 = vpop.xlane.xlu0 %3247
        %v3249 = vsel %vm1336, %v3245, 0.0
        %3250 = vadd.xlane.f32.xlu0 %v3249
        %v3251 = vpop.xlane.xlu0 %3250
        %v3252 = vmul.f32 %v3248, %v3239
        %v3253 = vmul.f32 %v3251, %v3239
        %v3254 = vadd.f32 %v3252, 1e-05
        %v3255 = vadd.f32 %v3253, 1e-05
        %v3256 = vrsqrt.pop %v3254
        %v3257 = vrsqrt.pop %v3255
        %v3258 = vmul.f32 %v3242, %v3256
        %v3259 = vmul.f32 %v3243, %v3257
        %v3261 = vlaneseq
        %v3262 = vshrl.u32 %v3261, 7
        %v3263 = vsub.s32 0, %v3262
        %v3264 = vrot.slane %v3231, %v3263
        %v3266 = vmul.f32 %v3258, %v3264
        %v3267 = vmul.f32 %v3259, %v3264
        %v3269 = vlaneseq
        %v3270 = vshrl.u32 %v3269, 7
        %v3271 = vsub.s32 0, %v3270
        %v3272 = vrot.slane %v3232, %v3271
        %v3274 = vadd.f32 %v3266, %v3272
        %v3275 = vadd.f32 %v3267, %v3272
        %v3276 = vpack.c.bf16 %v3275, %v3274
        %v3277 = vld [vmem:[%s1119] sm:$0xf]
        %v3278 = vld [vmem:[%s1119 + $0x4] sm:$0xf]
        %v3279 = vld [vmem:[%s1119 + $0x8] sm:$0xf]
        %v3280 = vld [vmem:[%s1119 + $0xc] sm:$0xf]
        %v3281 = vld [vmem:[%s1122] sm:$0x1]
        %v3283 = vlaneseq
        %v3284 = vshrl.u32 %v3283, 7
        %v3285 = vsub.s32 0, %v3284
        %v3286 = vrot.slane %v3281, %v3285
        %v3292 = vunpack.c.l.b16 %v3277
        %v3293 = vunpack.c.l.b16 %v3278
        %v3294 = vunpack.c.l.b16 %v3279
        %v3295 = vunpack.c.l.b16 %v3280
        %v3296 = vpack.c.b16 %v3293, %v3292
        %v3297 = vpack.c.b16 %v3295, %v3294
        %v3301 = vsel %vm1336, %v3276, 0
        %3303 = vmatprep.subr.bf16.mxu0 0
        %3304 = vmatpush1.bf16.msra.mxu0 0
        %3305 = vmatprep.subr.bf16.mxu0 0
        %3306 = vmatpush1.bf16.msra.mxu0 0
        %3307 = vmatprep.subr.bf16.mxu0 0
        %3308 = vmatpush1.bf16.msra.mxu0 0
        %3309 = vmatprep.subr.bf16.mxu0 0
        %3310 = vmatpush1.bf16.msra.mxu0 0
        %3311 = vmatprep.subr.bf16.mxu0 0
        %3312 = vmatpush1.bf16.msra.mxu0 0
        %3313 = vmatprep.subr.bf16.mxu0 0
        %3314 = vmatpush1.bf16.msra.mxu0 0
        %3315 = vmatprep.subr.bf16.mxu0 0
        %3316 = vmatpush1.bf16.msra.mxu0 %v3297
        %3317 = vmatprep.subr.bf16.mxu0 0
        %3318 = vmatpush1.bf16.msra.mxu0 %v3296
        %3319 = vmatprep.subr.bf16.mxu0 0
        %3320 = vmatpush2.bf16.msra.mxu0 0
        %3321 = vmatprep.subr.bf16.mxu0 0
        %3322 = vmatpush2.bf16.msra.mxu0 0
        %3323 = vmatprep.subr.bf16.mxu0 0
        %3324 = vmatpush2.bf16.msra.mxu0 0
        %3325 = vmatprep.subr.bf16.mxu0 0
        %3326 = vmatpush2.bf16.msra.mxu0 0
        %3327 = vmatprep.subr.bf16.mxu0 0
        %3328 = vmatpush2.bf16.msra.mxu0 0
        %3329 = vmatprep.subr.bf16.mxu0 0
        %3330 = vmatpush2.bf16.msra.mxu0 0
        %3331 = vmatprep.subr.bf16.mxu0 0
        %3332 = vmatpush2.bf16.msra.mxu0 0
        %3333 = vmatprep.subr.bf16.mxu0 0
        %3334 = vmatpush2.bf16.msra.mxu0 0
        %3335 = vmatprep.mubr.bf16.mxu0 0
        %3336 = vmatmul.mubr.bf16.gmra.mxu0 %v3301
        %v3337 = vpop.f32.mrf.mxu0
        %v3338 = vadd.f32 %v3286, %v3337
        %v3339 = vpop.f32.mrf.mxu0
        %v3340 = vpop.f32.mrf.mxu0
        %v3341 = vadd.f32 %v3286, %v3340
        %v3342 = vpop.f32.mrf.mxu0
        %3343 = vdwg.mxu0
        %v3344 = vmul.f32 %v3338, 0.5
        %v3345 = vmul.f32 %v3341, 0.5
        %v3346 = vmul.f32 %v3338, 0.044715
        %v3347 = vmul.f32 %v3341, 0.044715
        %v3348 = vmul.f32 %v3346, %v3338
        %v3349 = vmul.f32 %v3347, %v3341
        %v3350 = vmul.f32 %v3348, %v3338
        %v3351 = vmul.f32 %v3349, %v3341
        %v3352 = vadd.f32 %v3338, %v3350
        %v3353 = vadd.f32 %v3341, %v3351
        %v3354 = vmul.f32 %v3352, 0.7978846
        %v3355 = vmul.f32 %v3353, 0.7978846
        %v3356 = vtanh.pop %v3354
        %v3357 = vtanh.pop %v3355
        %v3358 = vadd.f32 %v3356, 1.0
        %v3359 = vadd.f32 %v3357, 1.0
        %v3360 = vmul.f32 %v3344, %v3358
        %v3361 = vmul.f32 %v3345, %v3359
        %v3362 = vpack.c.bf16 %v3361, %v3360
        %v3363 = vld [vmem:[%s1127] sm:$0xf]
        %v3364 = vld [vmem:[%s1127 + $0x4] sm:$0xf]
        %v3365 = vld [vmem:[%s1127 + $0x8] sm:$0xf]
        %v3366 = vld [vmem:[%s1127 + $0xc] sm:$0xf]
        %v3367 = vld [vmem:[%s1127 + $0x10] sm:$0xf]
        %v3368 = vld [vmem:[%s1127 + $0x14] sm:$0xf]
        %v3369 = vld [vmem:[%s1127 + $0x18] sm:$0xf]
        %v3370 = vld [vmem:[%s1127 + $0x1c] sm:$0xf]
        %v3371 = vld [vmem:[%s1130] sm:$0x1]
        %v3373 = vlaneseq
        %v3374 = vshrl.u32 %v3373, 7
        %v3375 = vsub.s32 0, %v3374
        %v3376 = vrot.slane %v3371, %v3375
        %v3386 = vunpack.c.l.b16 %v3363
        %v3387 = vunpack.c.l.b16 %v3364
        %v3388 = vunpack.c.l.b16 %v3365
        %v3389 = vunpack.c.l.b16 %v3366
        %v3390 = vunpack.c.l.b16 %v3367
        %v3391 = vunpack.c.l.b16 %v3368
        %v3392 = vunpack.c.l.b16 %v3369
        %v3393 = vunpack.c.l.b16 %v3370
        %v3394 = vpack.c.b16 %v3387, %v3386
        %v3395 = vpack.c.b16 %v3389, %v3388
        %v3396 = vpack.c.b16 %v3391, %v3390
        %v3397 = vpack.c.b16 %v3393, %v3392
        %vm3402 = vcmask 523264
        %v3404 = vsel %vm3402, %v3362, 0
        %3406 = vmatprep.subr.bf16.mxu0 0
        %3407 = vmatpush1.bf16.msra.mxu0 0
        %3408 = vmatprep.subr.bf16.mxu0 0
        %3409 = vmatpush1.bf16.msra.mxu0 0
        %3410 = vmatprep.subr.bf16.mxu0 0
        %3411 = vmatpush1.bf16.msra.mxu0 0
        %3412 = vmatprep.subr.bf16.mxu0 0
        %3413 = vmatpush1.bf16.msra.mxu0 0
        %3414 = vmatprep.subr.bf16.mxu0 0
        %3415 = vmatpush1.bf16.msra.mxu0 %v3397
        %3416 = vmatprep.subr.bf16.mxu0 0
        %3417 = vmatpush1.bf16.msra.mxu0 %v3396
        %3418 = vmatprep.subr.bf16.mxu0 0
        %3419 = vmatpush1.bf16.msra.mxu0 %v3395
        %3420 = vmatprep.subr.bf16.mxu0 0
        %3421 = vmatpush1.bf16.msra.mxu0 %v3394
        %3422 = vmatprep.subr.bf16.mxu0 0
        %3423 = vmatpush2.bf16.msra.mxu0 0
        %3424 = vmatprep.subr.bf16.mxu0 0
        %3425 = vmatpush2.bf16.msra.mxu0 0
        %3426 = vmatprep.subr.bf16.mxu0 0
        %3427 = vmatpush2.bf16.msra.mxu0 0
        %3428 = vmatprep.subr.bf16.mxu0 0
        %3429 = vmatpush2.bf16.msra.mxu0 0
        %3430 = vmatprep.subr.bf16.mxu0 0
        %3431 = vmatpush2.bf16.msra.mxu0 0
        %3432 = vmatprep.subr.bf16.mxu0 0
        %3433 = vmatpush2.bf16.msra.mxu0 0
        %3434 = vmatprep.subr.bf16.mxu0 0
        %3435 = vmatpush2.bf16.msra.mxu0 0
        %3436 = vmatprep.subr.bf16.mxu0 0
        %3437 = vmatpush2.bf16.msra.mxu0 0
        %3438 = vmatprep.mubr.bf16.mxu0 0
        %3439 = vmatmul.mubr.bf16.gmra.mxu0 %v3404
        %v3440 = vpop.f32.mrf.mxu0
        %v3441 = vadd.f32 %v3376, %v3440
        %v3442 = vpop.f32.mrf.mxu0
        %v3443 = vpop.f32.mrf.mxu0
        %v3444 = vadd.f32 %v3376, %v3443
        %v3445 = vpop.f32.mrf.mxu0
        %3446 = vdwg.mxu0
        %v3447 = vadd.f32 %v3274, %v3441
        %v3448 = vadd.f32 %v3275, %v3444
        %v3449 = vld [vmem:[%s1133] sm:$0x1]
        %v3450 = vld [vmem:[%s1136] sm:$0x1]
        %v3451 = vsel %vm1336, %v3447, 0.0
        %3452 = vadd.xlane.f32.xlu0 %v3451
        %v3453 = vpop.xlane.xlu0 %3452
        %v3454 = vsel %vm1336, %v3448, 0.0
        %3455 = vadd.xlane.f32.xlu0 %v3454
        %v3456 = vpop.xlane.xlu0 %3455
        %v3457 = vmul.f32 %v3453, %v3239
        %v3458 = vmul.f32 %v3456, %v3239
        %v3459 = vsub.f32 %v3447, %v3457
        %v3460 = vsub.f32 %v3448, %v3458
        %v3461 = vmul.f32 %v3459, %v3459
        %v3462 = vmul.f32 %v3460, %v3460
        %v3463 = vsel %vm1336, %v3461, 0.0
        %3464 = vadd.xlane.f32.xlu0 %v3463
        %v3465 = vpop.xlane.xlu0 %3464
        %v3466 = vsel %vm1336, %v3462, 0.0
        %3467 = vadd.xlane.f32.xlu0 %v3466
        %v3468 = vpop.xlane.xlu0 %3467
        %v3469 = vmul.f32 %v3465, %v3239
        %v3470 = vmul.f32 %v3468, %v3239
        %v3471 = vadd.f32 %v3469, 1e-05
        %v3472 = vadd.f32 %v3470, 1e-05
        %v3473 = vrsqrt.pop %v3471
        %v3474 = vrsqrt.pop %v3472
        %v3475 = vmul.f32 %v3459, %v3473
        %v3476 = vmul.f32 %v3460, %v3474
        %v3478 = vlaneseq
        %v3479 = vshrl.u32 %v3478, 7
        %v3480 = vsub.s32 0, %v3479
        %v3481 = vrot.slane %v3449, %v3480
        %v3483 = vmul.f32 %v3475, %v3481
        %v3484 = vmul.f32 %v3476, %v3481
        %v3486 = vlaneseq
        %v3487 = vshrl.u32 %v3486, 7
        %v3488 = vsub.s32 0, %v3487
        %v3489 = vrot.slane %v3450, %v3488
        %v3491 = vadd.f32 %v3483, %v3489
        %v3492 = vadd.f32 %v3484, %v3489
        %v3493 = vpack.c.bf16 %v3492, %v3491
        %v3495 = vunpack.c.l.b16 %v3493
        %v3496 = vunpack.c.h.b16 %v3493
        %v3497 = vpack.c.b16 %v3495, %v3495
        %v3498 = vpack.c.b16 %v3496, %v3496
        %vm3501 = vcmask 257024
        %3502 = vst.msk [vmem:[#allocation2] sm:$0xf] %vm3501, %v3497
        %3503 = vst.msk [vmem:[#allocation2 + $0x4] sm:$0xf] %vm3501, %v3498
        %p3504 = scmp.eq.s32.totalorder %s45, 1
        // Predicated region
        $region137: #{tpu_custom_call.1} parent=131 // pred_check
          %p3505 = pneg %p3504
        $region138: #{tpu_custom_call.1} parent=131 // pred_check_branch
          %3507 = sbr.rel (%p3505) target = $region140
        $region139: #{tpu_custom_call.1} parent=131 // pred_region
          %v3509 = vrot.slane %v3492, 7
          %vm3511 = vcmask 1040384
          %v3512 = vsel %vm3511, %v3491, %v3509
          %v3513 = vpack.c.bf16 %v3512, %v3512
          %v3514 = vld [vmem:[%s22] sm:$0xf]
          %v3515 = vld [vmem:[%s22 + $0x4] sm:$0xf]
          %v3516 = vld [vmem:[%s22 + $0x8] sm:$0xf]
          %v3517 = vld [vmem:[%s22 + $0xc] sm:$0xf]
          %v3518 = vld [vmem:[%s23] sm:$0x1]
          %v3520 = vlaneseq
          %v3521 = vshrl.u32 %v3520, 7
          %v3522 = vsub.s32 0, %v3521
          %v3523 = vrot.slane %v3518, %v3522
          %v3529 = vunpack.c.l.b16 %v3514
          %v3530 = vunpack.c.l.b16 %v3515
          %v3531 = vunpack.c.l.b16 %v3516
          %v3532 = vunpack.c.l.b16 %v3517
          %v3533 = vpack.c.b16 %v3530, %v3529
          %v3534 = vpack.c.b16 %v3532, %v3531
          %v3538 = vsel %vm1336, %v3513, 0
          %3540 = vmatprep.subr.bf16.mxu0 0
          %3541 = vmatpush1.bf16.msra.mxu0 0
          %3542 = vmatprep.subr.bf16.mxu0 0
          %3543 = vmatpush1.bf16.msra.mxu0 0
          %3544 = vmatprep.subr.bf16.mxu0 0
          %3545 = vmatpush1.bf16.msra.mxu0 0
          %3546 = vmatprep.subr.bf16.mxu0 0
          %3547 = vmatpush1.bf16.msra.mxu0 0
          %3548 = vmatprep.subr.bf16.mxu0 0
          %3549 = vmatpush1.bf16.msra.mxu0 0
          %3550 = vmatprep.subr.bf16.mxu0 0
          %3551 = vmatpush1.bf16.msra.mxu0 0
          %3552 = vmatprep.subr.bf16.mxu0 0
          %3553 = vmatpush1.bf16.msra.mxu0 %v3534
          %3554 = vmatprep.subr.bf16.mxu0 0
          %3555 = vmatpush1.bf16.msra.mxu0 %v3533
          %3556 = vmatprep.subr.bf16.mxu0 0
          %3557 = vmatpush2.bf16.msra.mxu0 0
          %3558 = vmatprep.subr.bf16.mxu0 0
          %3559 = vmatpush2.bf16.msra.mxu0 0
          %3560 = vmatprep.subr.bf16.mxu0 0
          %3561 = vmatpush2.bf16.msra.mxu0 0
          %3562 = vmatprep.subr.bf16.mxu0 0
          %3563 = vmatpush2.bf16.msra.mxu0 0
          %3564 = vmatprep.subr.bf16.mxu0 0
          %3565 = vmatpush2.bf16.msra.mxu0 0
          %3566 = vmatprep.subr.bf16.mxu0 0
          %3567 = vmatpush2.bf16.msra.mxu0 0
          %3568 = vmatprep.subr.bf16.mxu0 0
          %3569 = vmatpush2.bf16.msra.mxu0 0
          %3570 = vmatprep.subr.bf16.mxu0 0
          %3571 = vmatpush2.bf16.msra.mxu0 0
          %3572 = vmatprep.mubr.bf16.mxu0 0
          %3573 = vmatmul.mubr.bf16.gmra.mxu0 %v3538
          %v3574 = vpop.f32.mrf.mxu0
          %v3575 = vadd.f32 %v3523, %v3574
          %v3576 = vpop.f32.mrf.mxu0
          %v3577 = vpop.f32.mrf.mxu0
          %v3578 = vpop.f32.mrf.mxu0
          %3579 = vdwg.mxu0
          %v3580 = vmul.f32 %v3575, 0.5
          %v3581 = vmul.f32 %v3575, 0.044715
          %v3582 = vmul.f32 %v3581, %v3575
          %v3583 = vmul.f32 %v3582, %v3575
          %v3584 = vadd.f32 %v3575, %v3583
          %v3585 = vmul.f32 %v3584, 0.7978846
          %v3586 = vtanh.pop %v3585
          %v3587 = vadd.f32 %v3586, 1.0
          %v3588 = vmul.f32 %v3580, %v3587
          %v3589 = vpack.c.bf16 %v3588, %v3588
          %v3590 = vld [vmem:[%s24] sm:$0xf]
          %v3591 = vld [vmem:[%s24 + $0x4] sm:$0xf]
          %v3592 = vld [vmem:[%s25] sm:$0x1]
          %v3594 = vlaneseq
          %v3595 = vshrl.u32 %v3594, 7
          %v3596 = vsub.s32 0, %v3595
          %v3597 = vrot.slane %v3592, %v3596
          %v3601 = vunpack.c.l.b16 %v3590
          %v3602 = vunpack.c.l.b16 %v3591
          %v3603 = vpack.c.b16 %v3602, %v3601
          %vm3605 = vcmask 130048
          %v3607 = vsel %vm3605, %v3589, 0
          %3609 = vmatprep.subr.bf16.mxu0 0
          %3610 = vmatpush1.bf16.msra.mxu0 0
          %3611 = vmatprep.subr.bf16.mxu0 0
          %3612 = vmatpush1.bf16.msra.mxu0 0
          %3613 = vmatprep.subr.bf16.mxu0 0
          %3614 = vmatpush1.bf16.msra.mxu0 0
          %3615 = vmatprep.subr.bf16.mxu0 0
          %3616 = vmatpush1.bf16.msra.mxu0 0
          %3617 = vmatprep.subr.bf16.mxu0 0
          %3618 = vmatpush1.bf16.msra.mxu0 0
          %3619 = vmatprep.subr.bf16.mxu0 0
          %3620 = vmatpush1.bf16.msra.mxu0 0
          %3621 = vmatprep.subr.bf16.mxu0 0
          %3622 = vmatpush1.bf16.msra.mxu0 0
          %3623 = vmatprep.subr.bf16.mxu0 0
          %3624 = vmatpush1.bf16.msra.mxu0 %v3603
          %3625 = vmatprep.subr.bf16.mxu0 0
          %3626 = vmatpush2.bf16.msra.mxu0 0
          %3627 = vmatprep.subr.bf16.mxu0 0
          %3628 = vmatpush2.bf16.msra.mxu0 0
          %3629 = vmatprep.subr.bf16.mxu0 0
          %3630 = vmatpush2.bf16.msra.mxu0 0
          %3631 = vmatprep.subr.bf16.mxu0 0
          %3632 = vmatpush2.bf16.msra.mxu0 0
          %3633 = vmatprep.subr.bf16.mxu0 0
          %3634 = vmatpush2.bf16.msra.mxu0 0
          %3635 = vmatprep.subr.bf16.mxu0 0
          %3636 = vmatpush2.bf16.msra.mxu0 0
          %3637 = vmatprep.subr.bf16.mxu0 0
          %3638 = vmatpush2.bf16.msra.mxu0 0
          %3639 = vmatprep.subr.bf16.mxu0 0
          %3640 = vmatpush2.bf16.msra.mxu0 0
          %3641 = vmatprep.mubr.bf16.mxu0 0
          %3642 = vmatmul.mubr.bf16.gmra.mxu0 %v3607
          %v3643 = vpop.f32.mrf.mxu0
          %v3644 = vadd.f32 %v3597, %v3643
          %v3645 = vpop.f32.mrf.mxu0
          %v3646 = vpop.f32.mrf.mxu0
          %v3647 = vpop.f32.mrf.mxu0
          %3648 = vdwg.mxu0
          %v3649 = vmul.f32 %v3644, 0.5
          %v3650 = vmul.f32 %v3644, 0.044715
          %v3651 = vmul.f32 %v3650, %v3644
          %v3652 = vmul.f32 %v3651, %v3644
          %v3653 = vadd.f32 %v3644, %v3652
          %v3654 = vmul.f32 %v3653, 0.7978846
          %v3655 = vtanh.pop %v3654
          %v3656 = vadd.f32 %v3655, 1.0
          %v3657 = vmul.f32 %v3649, %v3656
          %v3658 = vpack.c.bf16 %v3657, %v3657
          %v3659 = vld [vmem:[%s26] sm:$0xf]
          %v3660 = vld [vmem:[%s26 + $0x4] sm:$0xf]
          %v3661 = vld [vmem:[%s27] sm:$0x1]
          %v3663 = vlaneseq
          %v3664 = vshrl.u32 %v3663, 7
          %v3665 = vsub.s32 0, %v3664
          %v3666 = vrot.slane %v3661, %v3665
          %v3670 = vunpack.c.l.b16 %v3659
          %v3671 = vunpack.c.l.b16 %v3660
          %v3672 = vpack.c.b16 %v3671, %v3670
          %v3675 = vsel %vm3605, %v3658, 0
          %3677 = vmatprep.subr.bf16.mxu0 0
          %3678 = vmatpush1.bf16.msra.mxu0 0
          %3679 = vmatprep.subr.bf16.mxu0 0
          %3680 = vmatpush1.bf16.msra.mxu0 0
          %3681 = vmatprep.subr.bf16.mxu0 0
          %3682 = vmatpush1.bf16.msra.mxu0 0
          %3683 = vmatprep.subr.bf16.mxu0 0
          %3684 = vmatpush1.bf16.msra.mxu0 0
          %3685 = vmatprep.subr.bf16.mxu0 0
          %3686 = vmatpush1.bf16.msra.mxu0 0
          %3687 = vmatprep.subr.bf16.mxu0 0
          %3688 = vmatpush1.bf16.msra.mxu0 0
          %3689 = vmatprep.subr.bf16.mxu0 0
          %3690 = vmatpush1.bf16.msra.mxu0 0
          %3691 = vmatprep.subr.bf16.mxu0 0
          %3692 = vmatpush1.bf16.msra.mxu0 %v3672
          %3693 = vmatprep.subr.bf16.mxu0 0
          %3694 = vmatpush2.bf16.msra.mxu0 0
          %3695 = vmatprep.subr.bf16.mxu0 0
          %3696 = vmatpush2.bf16.msra.mxu0 0
          %3697 = vmatprep.subr.bf16.mxu0 0
          %3698 = vmatpush2.bf16.msra.mxu0 0
          %3699 = vmatprep.subr.bf16.mxu0 0
          %3700 = vmatpush2.bf16.msra.mxu0 0
          %3701 = vmatprep.subr.bf16.mxu0 0
          %3702 = vmatpush2.bf16.msra.mxu0 0
          %3703 = vmatprep.subr.bf16.mxu0 0
          %3704 = vmatpush2.bf16.msra.mxu0 0
          %3705 = vmatprep.subr.bf16.mxu0 0
          %3706 = vmatpush2.bf16.msra.mxu0 0
          %3707 = vmatprep.subr.bf16.mxu0 0
          %3708 = vmatpush2.bf16.msra.mxu0 0
          %3709 = vmatprep.mubr.bf16.mxu0 0
          %3710 = vmatmul.mubr.bf16.gmra.mxu0 %v3675
          %v3711 = vpop.f32.mrf.mxu0
          %v3712 = vadd.f32 %v3666, %v3711
          %v3713 = vpop.f32.mrf.mxu0
          %v3714 = vpop.f32.mrf.mxu0
          %v3715 = vpop.f32.mrf.mxu0
          %3716 = vdwg.mxu0
          %3717 = vst [vmem:[#allocation3] sm:$0x3] %v3712
        $region140: #{tpu_custom_call.1} parent=131 // pred_fallthru
          _
        // Predicated region
        $region141: #{tpu_custom_call.1} parent=131 // pred_check
          %p3718 = pneg %p748
        $region142: #{tpu_custom_call.1} parent=131 // pred_check_branch
          %3720 = sbr.rel (%p3718) target = $region144
        $region143: #{tpu_custom_call.1} parent=131 // pred_region
          %s3722 = ssub.s32 32, 32
          %3723 = vsyncadd [#allocation4], %s3722
          %s3724 = smul.addr %s44, 32
          %s3725 = scalar_lea.hbm %s28, %s3724
          %s3727 = sshll.u32 [#allocation3], 4
          %s3728 = int_to_ptr.vmem [resolvable:$true] %s3727
          %3730 = dma.vmem_to_hbm [thread:$0]  %s3728, 32, %s3725, [#allocation4]
        $region144: #{tpu_custom_call.1} parent=131 // pred_fallthru
          _
        // Predicated region
        $region145: #{tpu_custom_call.1} parent=131 // pred_check
          %p3731 = pneg %p748
        $region146: #{tpu_custom_call.1} parent=131 // pred_check_branch
          %3733 = sbr.rel (%p3731) target = $region148
        $region147: #{tpu_custom_call.1} parent=131 // pred_region
          %3734 = dma.done [#allocation4], 32
        $region148: #{tpu_custom_call.1} parent=131 // pred_fallthru
          _
      $region132: #{tpu_custom_call.1} parent=5 // pred_fallthru
        _
      %p3735 = scmp.le.s32.totalorder 2, %s35
      // Predicated region
      $region149: #{tpu_custom_call.1} parent=5 // pred_check
        %p3736 = pneg %p3735
      $region150: #{tpu_custom_call.1} parent=5 // pred_check_branch
        %3738 = sbr.rel (%p3736) target = $region152
      $region151: #{tpu_custom_call.1} parent=5 // pred_region
        %s3739 = ssub.s32 %s35, 2
      $region152: #{tpu_custom_call.1} parent=5 // pred_fallthru
        _
    $region6: #{tpu_custom_call.1} parent=1 // loop_footer
      %s39 = sadd.s32 1, %s35
    $region7: #{tpu_custom_call.1} parent=1 // loop_footer_branch
      %34 = sbr.rel target = $region3
    $region8: #{tpu_custom_call.1} parent=1 // loop_exit
      _
    %3740 = vsyncpa [#allocation4], 1
    %s3741 = scalar_lea.sflag [#allocation4], 1
    %3742 = vsyncpa %s3741, 1

</llo_original>
